<compile_context>
chip_gen: v5e
topology: v5e:2x2
jax: 0.10.0
libtpu: 0.0.40
codegen_flags: <defaults>
</compile_context>

<pallas_src>
import functools

import jax
import jax.numpy as jnp
from jax import lax
from jax.experimental import pallas as pl
from jax.experimental.pallas import tpu as pltpu

BN_EPS = 1e-5

# Scoped VMEM limit (portable across v5e/v6e 128 MiB and v7x 64 MiB physical).
VMEM_LIMIT_BYTES = 32 * 1024 * 1024
# Budget for the double-buffered per-pass working set used to cap tile_n.
VMEM_TILE_BUDGET_BYTES = 16 * 1024 * 1024


def _round_up(x, m):
    return ((x + m - 1) // m) * m


# ---------------------------------------------------------------------------
# Pass 1: fc1 (lane-dense h^T) + batch sum / sum-of-squares
# ---------------------------------------------------------------------------
def _fc1_stats_kernel(x_ref, w1_ref, b1_ref, ht_ref, sum_ref, ssq_ref, *,
                      n_valid, tile_n, tiles_per_split, needs_mask):
    c = pl.program_id(0)          # per-core split (parallel)
    i = pl.program_id(1)          # batch tile within the split (arbitrary)

    x_bf = x_ref[...].astype(jnp.bfloat16)                       # [T, F]
    # h^T = w1 @ x^T : contract the feature axis of both operands ("NT" form),
    # so the batch lands on the 128-lane axis (lane-dense [H, T] tile).
    h = lax.dot_general(w1_ref[...], x_bf, (((1,), (1,)), ((), ())),
                        preferred_element_type=jnp.float32)      # [H, T]
    h = h + b1_ref[...]                                          # + b1 [H, 1]
    ht_ref[...] = h.astype(jnp.bfloat16)                         # bf16 h^T

    if needs_mask:  # static: only when N is not a multiple of tile_n
        tile = c * tiles_per_split + i
        col = tile * tile_n + lax.broadcasted_iota(jnp.int32, h.shape, 1)
        h = jnp.where(col < n_valid, h, 0.0)

    @pl.when(i == 0)
    def _init():
        sum_ref[...] = jnp.zeros_like(sum_ref)
        ssq_ref[...] = jnp.zeros_like(ssq_ref)

    sum_ref[...] += jnp.sum(h, axis=1, keepdims=True)            # [H, 1]
    ssq_ref[...] += jnp.sum(h * h, axis=1, keepdims=True)        # [H, 1]


# ---------------------------------------------------------------------------
# Pass 2: fused BN FMA + fc3 + sigmoid + softmax(dim=0) denominator
# ---------------------------------------------------------------------------
def _bn_fc3_sigmoid_kernel(ht_ref, scale_ref, shift_ref, w3_ref, b3_ref,
                           s_ref, sumexp_ref, *,
                           n_valid, odim, tile_n, tiles_per_split, needs_mask):
    c = pl.program_id(0)
    i = pl.program_id(1)

    h = ht_ref[...].astype(jnp.float32)                          # [H, T]
    h_bn = h * scale_ref[...] + shift_ref[...]                   # training-BN FMA
    # z = h_bn^T @ w3^T : contract the hidden axis (dim 0 of both operands),
    # producing the batch-major [T, Op] tile directly -> outputs are written
    # in the PyTorch [N, out] layout with no transposes anywhere.
    z = lax.dot_general(h_bn, w3_ref[...], (((0,), (0,)), ((), ())),
                        preferred_element_type=jnp.float32)      # [T, Op]
    z = z + b3_ref[...]                                          # + b3 [1, Op]
    s = 0.5 * jnp.tanh(0.5 * z) + 0.5                            # sigmoid (EUP tanh)
    s_ref[...] = s[:, :odim]                                     # drop Op padding

    # softmax over the batch: s in (0,1) so exp(s) needs no max subtraction.
    e = jnp.exp(s)
    if needs_mask:
        tile = c * tiles_per_split + i
        row = tile * tile_n + lax.broadcasted_iota(jnp.int32, e.shape, 0)
        e = jnp.where(row < n_valid, e, 0.0)

    @pl.when(i == 0)
    def _init():
        sumexp_ref[...] = jnp.zeros_like(sumexp_ref)

    sumexp_ref[...] += jnp.sum(e, axis=0, keepdims=True)         # [1, Op]


# ---------------------------------------------------------------------------
# Pass 3: softmax normalization (pure per-tile, exact reciprocal from wrapper)
# ---------------------------------------------------------------------------
def _softmax_norm_kernel(s_ref, inv_ref, prob_ref):
    prob_ref[...] = jnp.exp(s_ref[...]) * inv_ref[...]


# ---------------------------------------------------------------------------
# Wrapper
# ---------------------------------------------------------------------------
def net_forward(x, params, *, tile_n=2048, core_splits=2):
    """Forward pass of `Net`. Returns (prob_labels, x_sigmoid), both [N, out].

    x: [N, input_size] float32
    params (PyTorch layout): (w1 [H,F], b1 [H], gamma [H], beta [H],
                              w3 [O,H], b3 [O]),  H = 10
    """
    w1, b1, gamma, beta, w3, b3 = params
    n, f = x.shape
    hdim = w1.shape[0]
    odim = w3.shape[0]
    odim_p = _round_up(odim, 8)

    # ---- tile sizing: big enough to amortize per-step overhead, capped by a
    # conservative double-buffered VMEM budget (portable to v7x's 64 MiB). ----
    bytes_per_row = max(8 * _round_up(f, 128) + 64,        # pass 1: x + bf16 h^T
                        16 * _round_up(odim_p, 128))       # passes 2/3: [T, O] blocks
    vmem_cap = max(128, (VMEM_TILE_BUDGET_BYTES // bytes_per_row) // 128 * 128)
    tile_n = max(128, min(_round_up(tile_n, 128), _round_up(n, 128), vmem_cap))
    n_tiles = pl.cdiv(n, tile_n)
    n_pad = n_tiles * tile_n
    needs_mask = (n % tile_n) != 0

    # Per-core partial accumulators (v7x 2-TC): only split when the tile count
    # divides evenly so no fully-out-of-bounds blocks are ever generated.
    splits = core_splits if (core_splits > 1 and n_tiles % core_splits == 0) else 1
    tiles_per_split = n_tiles // splits

    # ---- parameter plumbing (tiny tensors, negligible cost) ----------------
    w1_bf = w1.astype(jnp.bfloat16)                                     # [H, F]
    b1_c = b1.reshape(hdim, 1).astype(jnp.float32)                      # [H, 1]
    # fc3 weights laid out [H, Op] (zero-padded on the output axis to a
    # multiple of 8) so the kernel contracts dim 0 of both matmul operands.
    w3_ho = jnp.zeros((hdim, odim_p), jnp.float32).at[:, :odim].set(
        w3.astype(jnp.float32).T)
    b3_row = jnp.zeros((1, odim_p), jnp.float32).at[:, :odim].set(
        b3.astype(jnp.float32).reshape(1, odim))

    reduce_params = pltpu.CompilerParams(
        dimension_semantics=("parallel", "arbitrary"),
        vmem_limit_bytes=VMEM_LIMIT_BYTES)
    parallel_params = pltpu.CompilerParams(
        dimension_semantics=("parallel",),
        vmem_limit_bytes=VMEM_LIMIT_BYTES)

    # ---- pass 1: fc1 + batch statistics (streams x exactly once) -----------
    ht, hsum, hssq = pl.pallas_call(
        functools.partial(_fc1_stats_kernel, n_valid=n, tile_n=tile_n,
                          tiles_per_split=tiles_per_split,
                          needs_mask=needs_mask),
        grid=(splits, tiles_per_split),
        in_specs=[
            pl.BlockSpec((tile_n, f), lambda c, i: (c * tiles_per_split + i, 0)),
            pl.BlockSpec((hdim, f), lambda c, i: (0, 0)),        # w1 (resident)
            pl.BlockSpec((hdim, 1), lambda c, i: (0, 0)),        # b1 (resident)
        ],
        out_specs=(
            pl.BlockSpec((hdim, tile_n),
                         lambda c, i: (0, c * tiles_per_split + i)),
            pl.BlockSpec((None, hdim, 1), lambda c, i: (c, 0, 0)),   # sum
            pl.BlockSpec((None, hdim, 1), lambda c, i: (c, 0, 0)),   # sumsq
        ),
        out_shape=(
            jax.ShapeDtypeStruct((hdim, n_pad), jnp.bfloat16),
            jax.ShapeDtypeStruct((splits, hdim, 1), jnp.float32),
            jax.ShapeDtypeStruct((splits, hdim, 1), jnp.float32),
        ),
        compiler_params=reduce_params,
    )(x, w1_bf, b1_c)

    # Fold training-mode BN into a single FMA (10 scalars each).
    hsum = jnp.sum(hsum, axis=0)                       # [H, 1]
    hssq = jnp.sum(hssq, axis=0)                       # [H, 1]
    mean = hsum / n
    var = jnp.maximum(hssq / n - mean * mean, 0.0)     # biased var, clamped >= 0
    scale = gamma.reshape(hdim, 1).astype(jnp.float32) * lax.rsqrt(var + BN_EPS)
    shift = beta.reshape(hdim, 1).astype(jnp.float32) - mean * scale

    # ---- pass 2: BN + fc3 + sigmoid + softmax denominator ------------------
    x_sigmoid, sumexp = pl.pallas_call(
        functools.partial(_bn_fc3_sigmoid_kernel, n_valid=n, odim=odim,
                          tile_n=tile_n, tiles_per_split=tiles_per_split,
                          needs_mask=needs_mask),
        grid=(splits, tiles_per_split),
        in_specs=[
            pl.BlockSpec((hdim, tile_n),
                         lambda c, i: (0, c * tiles_per_split + i)),
            pl.BlockSpec((hdim, 1), lambda c, i: (0, 0)),        # BN scale
            pl.BlockSpec((hdim, 1), lambda c, i: (0, 0)),        # BN shift
            pl.BlockSpec((hdim, odim_p), lambda c, i: (0, 0)),   # w3^T
            pl.BlockSpec((1, odim_p), lambda c, i: (0, 0)),      # b3
        ],
        out_specs=(
            pl.BlockSpec((tile_n, odim),
                         lambda c, i: (c * tiles_per_split + i, 0)),
            pl.BlockSpec((None, 1, odim_p), lambda c, i: (c, 0, 0)),  # sum(exp)
        ),
        out_shape=(
            jax.ShapeDtypeStruct((n, odim), jnp.float32),
            jax.ShapeDtypeStruct((splits, 1, odim_p), jnp.float32),
        ),
        compiler_params=reduce_params,
    )(ht, scale, shift, w3_ho, b3_row)

    # Exact softmax-denominator reciprocal (O scalars) in the wrapper.
    sumexp = jnp.sum(sumexp, axis=0)[:, :odim]         # [1, O]
    inv_sumexp = 1.0 / sumexp                          # exact f32 reciprocal

    # ---- pass 3: softmax normalization --------------------------------------
    prob_labels = pl.pallas_call(
        _softmax_norm_kernel,
        grid=(n_tiles,),
        in_specs=[
            pl.BlockSpec((tile_n, odim), lambda i: (i, 0)),
            pl.BlockSpec((1, odim), lambda i: (0, 0)),
        ],
        out_specs=pl.BlockSpec((tile_n, odim), lambda i: (i, 0)),
        out_shape=jax.ShapeDtypeStruct((n, odim), jnp.float32),
        compiler_params=parallel_params,
    )(x_sigmoid, inv_sumexp)

    return prob_labels, x_sigmoid


# ---------------------------------------------------------------------------
# Parameters / pure-JAX reference / demo
# ---------------------------------------------------------------------------
def init_params(key, input_size, output_size, hidden=10):
    """PyTorch-convention params: Linear weight is [out_features, in_features]."""
    k1, k2, k3, k4 = jax.random.split(key, 4)
    bound1 = 1.0 / (input_size ** 0.5)
    w1 = jax.random.uniform(k1, (hidden, input_size), jnp.float32, -bound1, bound1)
    b1 = jax.random.uniform(k2, (hidden,), jnp.float32, -bound1, bound1)
    gamma = jnp.ones((hidden,), jnp.float32)     # bn1.weight
    beta = jnp.zeros((hidden,), jnp.float32)     # bn1.bias
    bound3 = 1.0 / (hidden ** 0.5)
    w3 = jax.random.uniform(k3, (output_size, hidden), jnp.float32, -bound3, bound3)
    b3 = jax.random.uniform(k4, (output_size,), jnp.float32, -bound3, bound3)
    return (w1, b1, gamma, beta, w3, b3)


def net_forward_reference(x, params):
    """Pure-JAX reference of the PyTorch forward, matched to the kernel's
    reduced-precision choices (bf16 fc1 inputs, bf16 h^T storage) so the
    comparison isolates kernel correctness."""
    w1, b1, gamma, beta, w3, b3 = params
    h = jnp.dot(x.astype(jnp.bfloat16), w1.astype(jnp.bfloat16).T,
                preferred_element_type=jnp.float32) + b1
    mean = jnp.mean(h, axis=0, keepdims=True)
    var = jnp.mean((h - mean) ** 2, axis=0, keepdims=True)   # biased (training BN)
    h_q = h.astype(jnp.bfloat16).astype(jnp.float32)         # mirror bf16 h^T store
    h_bn = (h_q - mean) * lax.rsqrt(var + BN_EPS) * gamma + beta
    z = h_bn @ w3.T + b3
    s = jax.nn.sigmoid(z)
    prob = jax.nn.softmax(s, axis=0)                         # softmax over dim=0
    return prob, s


if __name__ == "__main__":
    batch, input_size, output_size = 1000, 32, 16

    key = jax.random.PRNGKey(0)
    kx, kp = jax.random.split(key)
    x = jax.random.normal(kx, (batch, input_size), dtype=jnp.float32)
    params = init_params(kp, input_size, output_size)

    fwd = jax.jit(net_forward, static_argnames=("tile_n", "core_splits"))
    prob_ref, sig_ref = net_forward_reference(x, params)

    # tile_n=256: 4 batch tiles -> 2-way split grid, masked partial last tile.
    # tile_n=2048 (default-sized): single big tile, no split.
    for tn in (256, 2048):
        prob_labels, x_sigmoid = jax.block_until_ready(fwd(x, params, tile_n=tn))

        assert prob_labels.shape == (batch, output_size)
        assert x_sigmoid.shape == (batch, output_size)

        # softmax over dim=0 -> each output column sums to ~1 (exact reciprocal)
        col_sums = jnp.sum(prob_labels, axis=0)
        assert jnp.allclose(col_sums, 1.0, atol=1e-4), col_sums

        assert jnp.allclose(x_sigmoid, sig_ref, atol=5e-3, rtol=5e-3), \
            float(jnp.max(jnp.abs(x_sigmoid - sig_ref)))
        assert jnp.allclose(prob_labels, prob_ref, atol=1e-5, rtol=1e-2), \
            float(jnp.max(jnp.abs(prob_labels - prob_ref)))

    print("KERNEL_OK")
</pallas_src>

<mosaic_0001>
module attributes {stable_mosaic.version = 11 : i64} {
  func.func @_fc1_stats_kernel(%arg0: i32, %arg1: i32, %arg2: memref<256x32xf32, #tpu.memory_space<vmem>>, %arg3: memref<10x32xbf16, #tpu.memory_space<vmem>>, %arg4: memref<10x1xf32, #tpu.memory_space<vmem>>, %arg5: memref<10x256xbf16, #tpu.memory_space<vmem>>, %arg6: memref<1x10x1xf32, #tpu.memory_space<vmem>>, %arg7: memref<1x10x1xf32, #tpu.memory_space<vmem>>) attributes {dimension_semantics = [#tpu.dimension_semantics<parallel>, #tpu.dimension_semantics<arbitrary>], iteration_bounds = array<i64: 2, 2>, scalar_prefetch = 0 : i64, scratch_operands = 0 : i64, tpu.core_type = #tpu.core_type<tc>, window_params = [{transform_indices = @transform_0, window_bounds = array<i64: 256, 32>}, {pipeline_mode = #tpu.pipeline_mode<synchronous>, transform_indices = @transform_1, window_bounds = array<i64: 10, 32>}, {pipeline_mode = #tpu.pipeline_mode<synchronous>, transform_indices = @transform_2, window_bounds = array<i64: 10, 1>}, {transform_indices = @transform_3, window_bounds = array<i64: 10, 256>}, {transform_indices = @transform_4, window_bounds = array<i64: 1, 10, 1>}, {transform_indices = @transform_5, window_bounds = array<i64: 1, 10, 1>}]} {
    %c0 = arith.constant 0 : index
    %c0_0 = arith.constant 0 : index
    %0 = vector.load %arg2[%c0, %c0_0] : memref<256x32xf32, #tpu.memory_space<vmem>>, vector<256x32xf32>
    %1 = arith.truncf %0 : vector<256x32xf32> to vector<256x32xbf16>
    %c0_1 = arith.constant 0 : index
    %c0_2 = arith.constant 0 : index
    %2 = vector.load %arg3[%c0_1, %c0_2] : memref<10x32xbf16, #tpu.memory_space<vmem>>, vector<10x32xbf16>
    %cst = arith.constant dense<0.000000e+00> : vector<10x256xf32>
    %3 = tpu.matmul %2, %1, %cst {dimension_numbers = #tpu.dot_dimension_numbers<[1], [1], [0], [0], [0, 0, 1, 0], [], []>} : vector<10x32xbf16>, vector<256x32xbf16>, vector<10x256xf32> -> vector<10x256xf32>
    %c0_3 = arith.constant 0 : index
    %c0_4 = arith.constant 0 : index
    %4 = vector.load %arg4[%c0_3, %c0_4] : memref<10x1xf32, #tpu.memory_space<vmem>>, vector<10x1xf32>
    %5 = vector.broadcast %4 : vector<10x1xf32> to vector<10x256xf32>
    %6 = arith.addf %3, %5 : vector<10x256xf32>
    %7 = arith.truncf %6 : vector<10x256xf32> to vector<10x256xbf16>
    %c0_5 = arith.constant 0 : index
    %c0_6 = arith.constant 0 : index
    %8 = vector.load %arg5[%c0_5, %c0_6] : memref<10x256xbf16, #tpu.memory_space<vmem>>, vector<10x256xbf16>
    tpu.vector_store %arg5[%c0_5, %c0_6], %7 {strides = array<i32>} : memref<10x256xbf16, #tpu.memory_space<vmem>>, vector<10x256xbf16>,
    %c2_i32 = arith.constant 2 : i32
    %9 = arith.muli %arg0, %c2_i32 : i32
    %10 = arith.addi %9, %arg1 : i32
    %c256_i32 = arith.constant 256 : i32
    %11 = arith.muli %10, %c256_i32 : i32
    %12 = tpu.iota {dimensions = array<i32: 1>} : vector<10x256xi32>
    %13 = vector.broadcast %11 : i32 to vector<10x256xi32>
    %14 = arith.addi %13, %12 : vector<10x256xi32>
    %c1000_i32 = arith.constant 1000 : i32
    %15 = vector.broadcast %c1000_i32 : i32 to vector<10x256xi32>
    %16 = arith.cmpi slt, %14, %15 : vector<10x256xi32>
    %cst_7 = arith.constant 0.000000e+00 : f32
    %17 = vector.broadcast %cst_7 : f32 to vector<10x256xf32>
    %18 = arith.select %16, %6, %17 : vector<10x256xi1>, vector<10x256xf32>
    %c0_i32 = arith.constant 0 : i32
    %19 = arith.cmpi eq, %arg1, %c0_i32 : i32
    %20 = arith.extui %19 : i1 to i32
    %c0_i32_8 = arith.constant 0 : i32
    %21 = arith.cmpi ne, %20, %c0_i32_8 : i32
    scf.if %21 {
      %cst_23 = arith.constant 0.000000e+00 : f32
      %39 = vector.broadcast %cst_23 : f32 to vector<10x1xf32>
      %c0_24 = arith.constant 0 : index
      %c0_25 = arith.constant 0 : index
      %c0_26 = arith.constant 0 : index
      %40 = vector.load %arg6[%c0_24, %c0_25, %c0_26] : memref<1x10x1xf32, #tpu.memory_space<vmem>>, vector<1x10x1xf32>
      %41 = vector.shape_cast %40 : vector<1x10x1xf32> to vector<10x1xf32>
      %42 = vector.shape_cast %39 : vector<10x1xf32> to vector<1x10x1xf32>
      tpu.vector_store %arg6[%c0_24, %c0_25, %c0_26], %42 {strides = array<i32>} : memref<1x10x1xf32, #tpu.memory_space<vmem>>, vector<1x10x1xf32>,
      %cst_27 = arith.constant 0.000000e+00 : f32
      %43 = vector.broadcast %cst_27 : f32 to vector<10x1xf32>
      %c0_28 = arith.constant 0 : index
      %c0_29 = arith.constant 0 : index
      %c0_30 = arith.constant 0 : index
      %44 = vector.load %arg7[%c0_28, %c0_29, %c0_30] : memref<1x10x1xf32, #tpu.memory_space<vmem>>, vector<1x10x1xf32>
      %45 = vector.shape_cast %44 : vector<1x10x1xf32> to vector<10x1xf32>
      %46 = vector.shape_cast %43 : vector<10x1xf32> to vector<1x10x1xf32>
      tpu.vector_store %arg7[%c0_28, %c0_29, %c0_30], %46 {strides = array<i32>} : memref<1x10x1xf32, #tpu.memory_space<vmem>>, vector<1x10x1xf32>,
    } else {
    }
    %c0_9 = arith.constant 0 : index
    %c0_10 = arith.constant 0 : index
    %c0_11 = arith.constant 0 : index
    %22 = vector.load %arg6[%c0_9, %c0_10, %c0_11] : memref<1x10x1xf32, #tpu.memory_space<vmem>>, vector<1x10x1xf32>
    %23 = vector.shape_cast %22 : vector<1x10x1xf32> to vector<10x1xf32>
    %cst_12 = arith.constant dense<0.000000e+00> : vector<10xf32>
    %24 = vector.multi_reduction <add>, %18, %cst_12 [1] : vector<10x256xf32> to vector<10xf32>
    %25 = vector.shape_cast %24 : vector<10xf32> to vector<10x1xf32>
    %26 = arith.addf %23, %25 : vector<10x1xf32>
    %c0_13 = arith.constant 0 : index
    %c0_14 = arith.constant 0 : index
    %c0_15 = arith.constant 0 : index
    %27 = vector.load %arg6[%c0_13, %c0_14, %c0_15] : memref<1x10x1xf32, #tpu.memory_space<vmem>>, vector<1x10x1xf32>
    %28 = vector.shape_cast %27 : vector<1x10x1xf32> to vector<10x1xf32>
    %29 = vector.shape_cast %26 : vector<10x1xf32> to vector<1x10x1xf32>
    tpu.vector_store %arg6[%c0_13, %c0_14, %c0_15], %29 {strides = array<i32>} : memref<1x10x1xf32, #tpu.memory_space<vmem>>, vector<1x10x1xf32>,
    %c0_16 = arith.constant 0 : index
    %c0_17 = arith.constant 0 : index
    %c0_18 = arith.constant 0 : index
    %30 = vector.load %arg7[%c0_16, %c0_17, %c0_18] : memref<1x10x1xf32, #tpu.memory_space<vmem>>, vector<1x10x1xf32>
    %31 = vector.shape_cast %30 : vector<1x10x1xf32> to vector<10x1xf32>
    %32 = arith.mulf %18, %18 : vector<10x256xf32>
    %cst_19 = arith.constant dense<0.000000e+00> : vector<10xf32>
    %33 = vector.multi_reduction <add>, %32, %cst_19 [1] : vector<10x256xf32> to vector<10xf32>
    %34 = vector.shape_cast %33 : vector<10xf32> to vector<10x1xf32>
    %35 = arith.addf %31, %34 : vector<10x1xf32>
    %c0_20 = arith.constant 0 : index
    %c0_21 = arith.constant 0 : index
    %c0_22 = arith.constant 0 : index
    %36 = vector.load %arg7[%c0_20, %c0_21, %c0_22] : memref<1x10x1xf32, #tpu.memory_space<vmem>>, vector<1x10x1xf32>
    %37 = vector.shape_cast %36 : vector<1x10x1xf32> to vector<10x1xf32>
    %38 = vector.shape_cast %35 : vector<10x1xf32> to vector<1x10x1xf32>
    tpu.vector_store %arg7[%c0_20, %c0_21, %c0_22], %38 {strides = array<i32>} : memref<1x10x1xf32, #tpu.memory_space<vmem>>, vector<1x10x1xf32>,
    return
  }
  func.func @transform_0(%arg0: i32, %arg1: i32) -> (i32, i32) {
    %c2_i32 = arith.constant 2 : i32
    %0 = arith.muli %arg0, %c2_i32 : i32
    %1 = arith.addi %0, %arg1 : i32
    %c0_i32 = arith.constant 0 : i32
    %c0_i32_0 = arith.constant 0 : i32
    return %1, %c0_i32 : i32, i32
  }
  func.func @transform_1(%arg0: i32, %arg1: i32) -> (i32, i32) {
    %c0_i32 = arith.constant 0 : i32
    %c0_i32_0 = arith.constant 0 : i32
    %c0_i32_1 = arith.constant 0 : i32
    return %c0_i32, %c0_i32_0 : i32, i32
  }
  func.func @transform_2(%arg0: i32, %arg1: i32) -> (i32, i32) {
    %c0_i32 = arith.constant 0 : i32
    %c0_i32_0 = arith.constant 0 : i32
    %c0_i32_1 = arith.constant 0 : i32
    return %c0_i32, %c0_i32_0 : i32, i32
  }
  func.func @transform_3(%arg0: i32, %arg1: i32) -> (i32, i32) {
    %c2_i32 = arith.constant 2 : i32
    %0 = arith.muli %arg0, %c2_i32 : i32
    %1 = arith.addi %0, %arg1 : i32
    %c0_i32 = arith.constant 0 : i32
    %c0_i32_0 = arith.constant 0 : i32
    return %c0_i32, %1 : i32, i32
  }
  func.func @transform_4(%arg0: i32, %arg1: i32) -> (i32, i32, i32) {
    %c0_i32 = arith.constant 0 : i32
    %c0_i32_0 = arith.constant 0 : i32
    %c0_i32_1 = arith.constant 0 : i32
    return %arg0, %c0_i32, %c0_i32_0 : i32, i32, i32
  }
  func.func @transform_5(%arg0: i32, %arg1: i32) -> (i32, i32, i32) {
    %c0_i32 = arith.constant 0 : i32
    %c0_i32_0 = arith.constant 0 : i32
    %c0_i32_1 = arith.constant 0 : i32
    return %arg0, %c0_i32, %c0_i32_0 : i32, i32, i32
  }
}

module attributes {stable_mosaic.version = 11 : i64} {
  func.func @_bn_fc3_sigmoid_kernel(%arg0: i32, %arg1: i32, %arg2: memref<10x256xbf16, #tpu.memory_space<vmem>>, %arg3: memref<10x1xf32, #tpu.memory_space<vmem>>, %arg4: memref<10x1xf32, #tpu.memory_space<vmem>>, %arg5: memref<10x16xf32, #tpu.memory_space<vmem>>, %arg6: memref<1x16xf32, #tpu.memory_space<vmem>>, %arg7: memref<256x16xf32, #tpu.memory_space<vmem>>, %arg8: memref<1x1x16xf32, #tpu.memory_space<vmem>>) attributes {dimension_semantics = [#tpu.dimension_semantics<parallel>, #tpu.dimension_semantics<arbitrary>], iteration_bounds = array<i64: 2, 2>, scalar_prefetch = 0 : i64, scratch_operands = 0 : i64, tpu.core_type = #tpu.core_type<tc>, window_params = [{transform_indices = @transform_0, window_bounds = array<i64: 10, 256>}, {pipeline_mode = #tpu.pipeline_mode<synchronous>, transform_indices = @transform_1, window_bounds = array<i64: 10, 1>}, {pipeline_mode = #tpu.pipeline_mode<synchronous>, transform_indices = @transform_2, window_bounds = array<i64: 10, 1>}, {pipeline_mode = #tpu.pipeline_mode<synchronous>, transform_indices = @transform_3, window_bounds = array<i64: 10, 16>}, {pipeline_mode = #tpu.pipeline_mode<synchronous>, transform_indices = @transform_4, window_bounds = array<i64: 1, 16>}, {transform_indices = @transform_5, window_bounds = array<i64: 256, 16>}, {transform_indices = @transform_6, window_bounds = array<i64: 1, 1, 16>}]} {
    %c0 = arith.constant 0 : index
    %c0_0 = arith.constant 0 : index
    %0 = vector.load %arg2[%c0, %c0_0] : memref<10x256xbf16, #tpu.memory_space<vmem>>, vector<10x256xbf16>
    %1 = arith.extf %0 : vector<10x256xbf16> to vector<10x256xf32>
    %c0_1 = arith.constant 0 : index
    %c0_2 = arith.constant 0 : index
    %2 = vector.load %arg3[%c0_1, %c0_2] : memref<10x1xf32, #tpu.memory_space<vmem>>, vector<10x1xf32>
    %3 = vector.broadcast %2 : vector<10x1xf32> to vector<10x256xf32>
    %4 = arith.mulf %1, %3 : vector<10x256xf32>
    %c0_3 = arith.constant 0 : index
    %c0_4 = arith.constant 0 : index
    %5 = vector.load %arg4[%c0_3, %c0_4] : memref<10x1xf32, #tpu.memory_space<vmem>>, vector<10x1xf32>
    %6 = vector.broadcast %5 : vector<10x1xf32> to vector<10x256xf32>
    %7 = arith.addf %4, %6 : vector<10x256xf32>
    %c0_5 = arith.constant 0 : index
    %c0_6 = arith.constant 0 : index
    %8 = vector.load %arg5[%c0_5, %c0_6] : memref<10x16xf32, #tpu.memory_space<vmem>>, vector<10x16xf32>
    %cst = arith.constant dense<0.000000e+00> : vector<256x16xf32>
    %9 = tpu.matmul %7, %8, %cst {dimension_numbers = #tpu.dot_dimension_numbers<[0], [0], [1], [1], [0, 1, 1, 1], [], []>} : vector<10x256xf32>, vector<10x16xf32>, vector<256x16xf32> -> vector<256x16xf32>
    %c0_7 = arith.constant 0 : index
    %c0_8 = arith.constant 0 : index
    %10 = vector.load %arg6[%c0_7, %c0_8] : memref<1x16xf32, #tpu.memory_space<vmem>>, vector<1x16xf32>
    %11 = vector.broadcast %10 : vector<1x16xf32> to vector<256x16xf32>
    %12 = arith.addf %9, %11 : vector<256x16xf32>
    %cst_9 = arith.constant 5.000000e-01 : f32
    %13 = vector.broadcast %cst_9 : f32 to vector<256x16xf32>
    %14 = arith.mulf %13, %12 : vector<256x16xf32>
    %15 = math.tanh %14 : vector<256x16xf32>
    %cst_10 = arith.constant 5.000000e-01 : f32
    %16 = vector.broadcast %cst_10 : f32 to vector<256x16xf32>
    %17 = arith.mulf %16, %15 : vector<256x16xf32>
    %cst_11 = arith.constant 5.000000e-01 : f32
    %18 = vector.broadcast %cst_11 : f32 to vector<256x16xf32>
    %19 = arith.addf %17, %18 : vector<256x16xf32>
    %c0_12 = arith.constant 0 : index
    %c0_13 = arith.constant 0 : index
    %20 = vector.load %arg7[%c0_12, %c0_13] : memref<256x16xf32, #tpu.memory_space<vmem>>, vector<256x16xf32>
    tpu.vector_store %arg7[%c0_12, %c0_13], %19 {strides = array<i32>} : memref<256x16xf32, #tpu.memory_space<vmem>>, vector<256x16xf32>,
    %21 = math.exp %19 : vector<256x16xf32>
    %c2_i32 = arith.constant 2 : i32
    %22 = arith.muli %arg0, %c2_i32 : i32
    %23 = arith.addi %22, %arg1 : i32
    %c256_i32 = arith.constant 256 : i32
    %24 = arith.muli %23, %c256_i32 : i32
    %25 = tpu.iota {dimensions = array<i32: 0>} : vector<256x16xi32>
    %26 = vector.broadcast %24 : i32 to vector<256x16xi32>
    %27 = arith.addi %26, %25 : vector<256x16xi32>
    %c1000_i32 = arith.constant 1000 : i32
    %28 = vector.broadcast %c1000_i32 : i32 to vector<256x16xi32>
    %29 = arith.cmpi slt, %27, %28 : vector<256x16xi32>
    %cst_14 = arith.constant 0.000000e+00 : f32
    %30 = vector.broadcast %cst_14 : f32 to vector<256x16xf32>
    %31 = arith.select %29, %21, %30 : vector<256x16xi1>, vector<256x16xf32>
    %c0_i32 = arith.constant 0 : i32
    %32 = arith.cmpi eq, %arg1, %c0_i32 : i32
    %33 = arith.extui %32 : i1 to i32
    %c0_i32_15 = arith.constant 0 : i32
    %34 = arith.cmpi ne, %33, %c0_i32_15 : i32
    scf.if %34 {
      %cst_23 = arith.constant 0.000000e+00 : f32
      %43 = vector.broadcast %cst_23 : f32 to vector<1x16xf32>
      %c0_24 = arith.constant 0 : index
      %c0_25 = arith.constant 0 : index
      %c0_26 = arith.constant 0 : index
      %44 = vector.load %arg8[%c0_24, %c0_25, %c0_26] : memref<1x1x16xf32, #tpu.memory_space<vmem>>, vector<1x1x16xf32>
      %45 = vector.shape_cast %44 : vector<1x1x16xf32> to vector<1x16xf32>
      %46 = vector.shape_cast %43 : vector<1x16xf32> to vector<1x1x16xf32>
      tpu.vector_store %arg8[%c0_24, %c0_25, %c0_26], %46 {strides = array<i32>} : memref<1x1x16xf32, #tpu.memory_space<vmem>>, vector<1x1x16xf32>,
    } else {
    }
    %c0_16 = arith.constant 0 : index
    %c0_17 = arith.constant 0 : index
    %c0_18 = arith.constant 0 : index
    %35 = vector.load %arg8[%c0_16, %c0_17, %c0_18] : memref<1x1x16xf32, #tpu.memory_space<vmem>>, vector<1x1x16xf32>
    %36 = vector.shape_cast %35 : vector<1x1x16xf32> to vector<1x16xf32>
    %cst_19 = arith.constant dense<0.000000e+00> : vector<16xf32>
    %37 = vector.multi_reduction <add>, %31, %cst_19 [0] : vector<256x16xf32> to vector<16xf32>
    %38 = vector.shape_cast %37 : vector<16xf32> to vector<1x16xf32>
    %39 = arith.addf %36, %38 : vector<1x16xf32>
    %c0_20 = arith.constant 0 : index
    %c0_21 = arith.constant 0 : index
    %c0_22 = arith.constant 0 : index
    %40 = vector.load %arg8[%c0_20, %c0_21, %c0_22] : memref<1x1x16xf32, #tpu.memory_space<vmem>>, vector<1x1x16xf32>
    %41 = vector.shape_cast %40 : vector<1x1x16xf32> to vector<1x16xf32>
    %42 = vector.shape_cast %39 : vector<1x16xf32> to vector<1x1x16xf32>
    tpu.vector_store %arg8[%c0_20, %c0_21, %c0_22], %42 {strides = array<i32>} : memref<1x1x16xf32, #tpu.memory_space<vmem>>, vector<1x1x16xf32>,
    return
  }
  func.func @transform_0(%arg0: i32, %arg1: i32) -> (i32, i32) {
    %c2_i32 = arith.constant 2 : i32
    %0 = arith.muli %arg0, %c2_i32 : i32
    %1 = arith.addi %0, %arg1 : i32
    %c0_i32 = arith.constant 0 : i32
    %c0_i32_0 = arith.constant 0 : i32
    return %c0_i32, %1 : i32, i32
  }
  func.func @transform_1(%arg0: i32, %arg1: i32) -> (i32, i32) {
    %c0_i32 = arith.constant 0 : i32
    %c0_i32_0 = arith.constant 0 : i32
    %c0_i32_1 = arith.constant 0 : i32
    return %c0_i32, %c0_i32_0 : i32, i32
  }
  func.func @transform_2(%arg0: i32, %arg1: i32) -> (i32, i32) {
    %c0_i32 = arith.constant 0 : i32
    %c0_i32_0 = arith.constant 0 : i32
    %c0_i32_1 = arith.constant 0 : i32
    return %c0_i32, %c0_i32_0 : i32, i32
  }
  func.func @transform_3(%arg0: i32, %arg1: i32) -> (i32, i32) {
    %c0_i32 = arith.constant 0 : i32
    %c0_i32_0 = arith.constant 0 : i32
    %c0_i32_1 = arith.constant 0 : i32
    return %c0_i32, %c0_i32_0 : i32, i32
  }
  func.func @transform_4(%arg0: i32, %arg1: i32) -> (i32, i32) {
    %c0_i32 = arith.constant 0 : i32
    %c0_i32_0 = arith.constant 0 : i32
    %c0_i32_1 = arith.constant 0 : i32
    return %c0_i32, %c0_i32_0 : i32, i32
  }
  func.func @transform_5(%arg0: i32, %arg1: i32) -> (i32, i32) {
    %c2_i32 = arith.constant 2 : i32
    %0 = arith.muli %arg0, %c2_i32 : i32
    %1 = arith.addi %0, %arg1 : i32
    %c0_i32 = arith.constant 0 : i32
    %c0_i32_0 = arith.constant 0 : i32
    return %1, %c0_i32 : i32, i32
  }
  func.func @transform_6(%arg0: i32, %arg1: i32) -> (i32, i32, i32) {
    %c0_i32 = arith.constant 0 : i32
    %c0_i32_0 = arith.constant 0 : i32
    %c0_i32_1 = arith.constant 0 : i32
    return %arg0, %c0_i32, %c0_i32_0 : i32, i32, i32
  }
}

module attributes {stable_mosaic.version = 11 : i64} {
  func.func @_softmax_norm_kernel(%arg0: i32, %arg1: memref<256x16xf32, #tpu.memory_space<vmem>>, %arg2: memref<1x16xf32, #tpu.memory_space<vmem>>, %arg3: memref<256x16xf32, #tpu.memory_space<vmem>>) attributes {dimension_semantics = [#tpu.dimension_semantics<parallel>], iteration_bounds = array<i64: 4>, scalar_prefetch = 0 : i64, scratch_operands = 0 : i64, tpu.core_type = #tpu.core_type<tc>, window_params = [{transform_indices = @transform_0, window_bounds = array<i64: 256, 16>}, {pipeline_mode = #tpu.pipeline_mode<synchronous>, transform_indices = @transform_1, window_bounds = array<i64: 1, 16>}, {transform_indices = @transform_2, window_bounds = array<i64: 256, 16>}]} {
    %c0 = arith.constant 0 : index
    %c0_0 = arith.constant 0 : index
    %0 = vector.load %arg1[%c0, %c0_0] : memref<256x16xf32, #tpu.memory_space<vmem>>, vector<256x16xf32>
    %1 = math.exp %0 : vector<256x16xf32>
    %c0_1 = arith.constant 0 : index
    %c0_2 = arith.constant 0 : index
    %2 = vector.load %arg2[%c0_1, %c0_2] : memref<1x16xf32, #tpu.memory_space<vmem>>, vector<1x16xf32>
    %3 = vector.broadcast %2 : vector<1x16xf32> to vector<256x16xf32>
    %4 = arith.mulf %1, %3 : vector<256x16xf32>
    %c0_3 = arith.constant 0 : index
    %c0_4 = arith.constant 0 : index
    %5 = vector.load %arg3[%c0_3, %c0_4] : memref<256x16xf32, #tpu.memory_space<vmem>>, vector<256x16xf32>
    tpu.vector_store %arg3[%c0_3, %c0_4], %4 {strides = array<i32>} : memref<256x16xf32, #tpu.memory_space<vmem>>, vector<256x16xf32>,
    return
  }
  func.func @transform_0(%arg0: i32) -> (i32, i32) {
    %c0_i32 = arith.constant 0 : i32
    %c0_i32_0 = arith.constant 0 : i32
    return %arg0, %c0_i32 : i32, i32
  }
  func.func @transform_1(%arg0: i32) -> (i32, i32) {
    %c0_i32 = arith.constant 0 : i32
    %c0_i32_0 = arith.constant 0 : i32
    %c0_i32_1 = arith.constant 0 : i32
    return %c0_i32, %c0_i32_0 : i32, i32
  }
  func.func @transform_2(%arg0: i32) -> (i32, i32) {
    %c0_i32 = arith.constant 0 : i32
    %c0_i32_0 = arith.constant 0 : i32
    return %arg0, %c0_i32 : i32, i32
  }
}

</mosaic_0001>

<llo_original>
// kernel: net_forward.5
$region0: #{net_forward.5}
  #allocation0 [shape = 'u32[]', space=smem, size = 0x4, offset = 0x4, fixed_abs, tag = 'smem constant byte address 0x4 - core index']
  #allocation1 [shape = 'u32[72,128]{1,0:T(1,128)}', space=vmem, size = 0x9000, scoped, tag = 'internal scratch']
  %s0 = inlined_call_operand.vmem [shape: f32[1000,16], index: 0, kind: input, shape index: {}]
  %s1 = inlined_call_operand.vmem [shape: f32[1,16], index: 1, kind: input, shape index: {}]
  %s2 = inlined_call_operand.vmem [shape: f32[1000,16], index: 2, kind: output, shape index: {}]
  %s3 = sld [smem:[#allocation0]]
  $region89: #{net_forward.5} parent=0
    _
  %s5 = ssub.s32 1, %s3
  %s6 = scalar_select 0, %s5, %s3
  $region1: #{net_forward.5} parent=0
    #allocation2 [shape = 'u8[262144]{0}', space=vmem, size = 0x40000, scoped, tag = 'output window, operand 0']
    loop: start=0, step=1, limit=6
    $region2: #{net_forward.5} parent=1 // loop_pre_header
      _
    $region3: #{net_forward.5} parent=1 // loop_header
      %s8 = sphi 0, %s12
      %p9 = scmp.ge.s32.totalorder %s8, 6
      %s18 = sphi 0, %s20
      %s21 = sphi 0, %s18
      %s22 = sphi 0, %s21
      %s38 = sphi 0, %s22
      %s42 = sphi 0, %s42
      %s44 = sphi 0, %s42
      %s45 = sphi 0, %s44
      %s59 = sphi 0, %s45
      %s65 = sphi 0, %s67
      %s68 = sphi 0, %s65
      %s69 = sphi 0, %s68
      %s85 = sphi 0, %s69
    $region4: #{net_forward.5} parent=1 // loop_header_branch
      %11 = sbr.rel (%p9) target = $region8
    $region5: #{net_forward.5} parent=1 // loop_body
      %s13 = ssub.s32 %s8, 1
      %s14 = ssub.s32 %s8, 2
      %s15 = sadd.s32 %s8, 1
      %s16 = ssub.s32 %s8, %s15
      %p17 = scmp.eq.s32.totalorder %s16, 0
      %s19 = sadd.s32 %s18, 1
      %s20 = scalar_select %p17, %s18, %s19
      %p23 = pneg %p17
      %p24 = scmp.eq.s32.totalorder %s8, 3
      %p25 = por %p23, %p24
      %p26 = scmp.ne.s32.totalorder %s18, %s21
      %p27 = scmp.eq.s32.totalorder %s8, 0
      %p28 = por %p26, %p27
      %p29 = scmp.ne.s32.totalorder %s18, %s21
      %p30 = scmp.eq.s32.totalorder %s13, 3
      %p31 = por %p29, %p30
      %p32 = scmp.ne.s32.totalorder %s21, %s22
      %p33 = scmp.eq.s32.totalorder %s13, 0
      %p34 = por %p32, %p33
      %p35 = scmp.ne.s32.totalorder %s21, %s22
      %p36 = scmp.eq.s32.totalorder %s14, 3
      %p37 = por %p35, %p36
      %p39 = scmp.ne.s32.totalorder %s22, %s38
      %p40 = scmp.eq.s32.totalorder %s14, 0
      %p41 = por %p39, %p40
      %s43 = sadd.s32 %s42, 1
      %p46 = scmp.eq.s32.totalorder %s8, 3
      %p47 = scmp.ne.s32.totalorder %s42, %s44
      %p48 = scmp.eq.s32.totalorder %s8, 0
      %p49 = por %p47, %p48
      %p50 = scmp.ne.s32.totalorder %s42, %s44
      %p51 = scmp.eq.s32.totalorder %s13, 3
      %p52 = por %p50, %p51
      %p53 = scmp.ne.s32.totalorder %s44, %s45
      %p54 = scmp.eq.s32.totalorder %s13, 0
      %p55 = por %p53, %p54
      %p56 = scmp.ne.s32.totalorder %s44, %s45
      %p57 = scmp.eq.s32.totalorder %s14, 3
      %p58 = por %p56, %p57
      %p60 = scmp.ne.s32.totalorder %s45, %s59
      %p61 = scmp.eq.s32.totalorder %s14, 0
      %p62 = por %p60, %p61
      %s63 = ssub.s32 %s8, %s15
      %p64 = scmp.eq.s32.totalorder %s63, 0
      %s66 = sadd.s32 %s65, 1
      %s67 = scalar_select %p64, %s65, %s66
      %p70 = pneg %p64
      %p71 = scmp.eq.s32.totalorder %s8, 3
      %p72 = por %p70, %p71
      %p73 = scmp.ne.s32.totalorder %s65, %s68
      %p74 = scmp.eq.s32.totalorder %s8, 0
      %p75 = por %p73, %p74
      %p76 = scmp.ne.s32.totalorder %s65, %s68
      %p77 = scmp.eq.s32.totalorder %s13, 3
      %p78 = por %p76, %p77
      %p79 = scmp.ne.s32.totalorder %s68, %s69
      %p80 = scmp.eq.s32.totalorder %s13, 0
      %p81 = por %p79, %p80
      %p82 = scmp.ne.s32.totalorder %s68, %s69
      %p83 = scmp.eq.s32.totalorder %s14, 3
      %p84 = por %p82, %p83
      %p86 = scmp.ne.s32.totalorder %s69, %s85
      %p87 = scmp.eq.s32.totalorder %s14, 0
      %p88 = por %p86, %p87
      %p89 = scmp.le.s32.totalorder 1, %s8
      %p90 = scmp.lt.s32.totalorder %s8, 5
      %p91 = pnand %p89, %p90
      %p92 = pneg %p91
      // Predicated region
      $region9: #{net_forward.5} parent=5 // pred_check
        _
      $region10: #{net_forward.5} parent=5 // pred_check_branch
        %94 = sbr.rel (%p91) target = $region12
      $region11: #{net_forward.5} parent=5 // pred_region
        %s95 = ssub.s32 %s8, 1
        // Predicated region
        $region13: #{net_forward.5} parent=11 // pred_check
          %p96 = pneg %p55
        $region14: #{net_forward.5} parent=11 // pred_check_branch
          %98 = sbr.rel (%p96) target = $region16
        $region15: #{net_forward.5} parent=11 // pred_region
          _
        $region16: #{net_forward.5} parent=11 // pred_fallthru
          _
      $region12: #{net_forward.5} parent=5 // pred_fallthru
        _
      %p99 = scmp.lt.s32.totalorder %s8, 4
      // Predicated region
      $region17: #{net_forward.5} parent=5 // pred_check
        %p100 = pneg %p99
      $region18: #{net_forward.5} parent=5 // pred_check_branch
        %102 = sbr.rel (%p100) target = $region20
      $region19: #{net_forward.5} parent=5 // pred_region
        // Predicated region
        $region21: #{net_forward.5} parent=19 // pred_check
          %p103 = pneg %p28
        $region22: #{net_forward.5} parent=19 // pred_check_branch
          %105 = sbr.rel (%p103) target = $region24
        $region23: #{net_forward.5} parent=19 // pred_region
          %s106 = smul.u32 32, %s8
          %s107 = ssub.s32 125, %s106
          %p108 = scmp.lt.s32.totalorder %s107, 32
          %s109 = scalar_select %p108, %s107, 32
          %s110 = smul.u32 8, %s109
          %p111 = scmp.lt.s32.totalorder %s106, 124
          %s112 = scalar_select %p111, %s106, 124
          %s113 = smul.addr %s112, 8
          %s114 = scalar_lea.vmem %s0, %s113
          %s115 = smul.u32 32, %s8
          %s116 = ssub.s32 125, %s115
          %p117 = scmp.lt.s32.totalorder %s116, 32
          %s118 = scalar_select %p117, %s116, 32
          %s119 = smul.u32 8, %s118
        $region24: #{net_forward.5} parent=19 // pred_fallthru
          _
      $region20: #{net_forward.5} parent=5 // pred_fallthru
        _
      %p120 = scmp.le.s32.totalorder 1, %s8
      %p121 = scmp.lt.s32.totalorder %s8, 5
      %p122 = pnand %p120, %p121
      %p123 = pneg %p122
      // Predicated region
      $region25: #{net_forward.5} parent=5 // pred_check
        _
      $region26: #{net_forward.5} parent=5 // pred_check_branch
        %125 = sbr.rel (%p122) target = $region28
      $region27: #{net_forward.5} parent=5 // pred_region
        %s126 = ssub.s32 %s8, 1
        %s127 = smul.u32 32, %s13
        %s128 = ssub.s32 125, %s127
        %p129 = scmp.lt.s32.totalorder %s128, 32
        %s130 = scalar_select %p129, %s128, 32
        %s131 = smul.u32 8, %s130
        %p132 = scmp.lt.s32.totalorder %s127, 124
        %s133 = scalar_select %p132, %s127, 124
        %s134 = smul.addr %s133, 8
        %s135 = scalar_lea.vmem %s0, %s134
        %p136 = pneg %p34
        %p137 = pneg %p31
        %p138 = pneg %p55
        %p139 = pneg %p52
        %p140 = pneg %p81
        %p141 = pneg %p78
        %s142 = sand.u32 %s68, 1
        %s143 = sand.u32 %s68, 1
        %s144 = smul.addr %s143, 256
        %s145 = scalar_lea.vmem [#allocation2], %s144
        %s146 = smul.u32 32, %s13
        %s147 = ssub.s32 125, %s146
        %p148 = scmp.lt.s32.totalorder %s147, 32
        %s149 = scalar_select %p148, %s147, 32
        %s150 = smul.u32 8, %s149
        %p151 = scmp.lt.s32.totalorder %s146, 124
        %s152 = scalar_select %p151, %s146, 124
        %s153 = smul.addr %s152, 8
        %s154 = scalar_lea.vmem %s0, %s153
        %s155 = smul.u32 32, %s13
        %s156 = ssub.s32 125, %s155
        %p157 = scmp.lt.s32.totalorder %s156, 32
        %s158 = scalar_select %p157, %s156, 32
        %s159 = smul.u32 8, %s158
        %s160 = smul.u32 32, %s13
        %s161 = ssub.s32 125, %s160
        %p162 = scmp.lt.s32.totalorder %s161, 32
        %s163 = scalar_select %p162, %s161, 32
        %s164 = smul.u32 8, %s163
        %v165 = vld [vmem:[%s154] sm:$0xff]
        %v166 = vld [vmem:[%s154 + $0x8] sm:$0xff]
        %v167 = vld [vmem:[%s154 + $0x10] sm:$0xff]
        %v168 = vld [vmem:[%s154 + $0x18] sm:$0xff]
        %v169 = vld [vmem:[%s154 + $0x20] sm:$0xff]
        %v170 = vld [vmem:[%s154 + $0x28] sm:$0xff]
        %v171 = vld [vmem:[%s154 + $0x30] sm:$0xff]
        %v172 = vld [vmem:[%s154 + $0x38] sm:$0xff]
        %v173 = vld [vmem:[%s154 + $0x40] sm:$0xff]
        %v174 = vld [vmem:[%s154 + $0x48] sm:$0xff]
        %v175 = vld [vmem:[%s154 + $0x50] sm:$0xff]
        %v176 = vld [vmem:[%s154 + $0x58] sm:$0xff]
        %v177 = vld [vmem:[%s154 + $0x60] sm:$0xff]
        %v178 = vld [vmem:[%s154 + $0x68] sm:$0xff]
        %v179 = vld [vmem:[%s154 + $0x70] sm:$0xff]
        %v180 = vld [vmem:[%s154 + $0x78] sm:$0xff]
        %v181 = vld [vmem:[%s154 + $0x80] sm:$0xff]
        %v182 = vld [vmem:[%s154 + $0x88] sm:$0xff]
        %v183 = vld [vmem:[%s154 + $0x90] sm:$0xff]
        %v184 = vld [vmem:[%s154 + $0x98] sm:$0xff]
        %v185 = vld [vmem:[%s154 + $0xa0] sm:$0xff]
        %v186 = vld [vmem:[%s154 + $0xa8] sm:$0xff]
        %v187 = vld [vmem:[%s154 + $0xb0] sm:$0xff]
        %v188 = vld [vmem:[%s154 + $0xb8] sm:$0xff]
        %v189 = vld [vmem:[%s154 + $0xc0] sm:$0xff]
        %v190 = vld [vmem:[%s154 + $0xc8] sm:$0xff]
        %v191 = vld [vmem:[%s154 + $0xd0] sm:$0xff]
        %v192 = vld [vmem:[%s154 + $0xd8] sm:$0xff]
        %v193 = vld [vmem:[%s154 + $0xe0] sm:$0xff]
        %v194 = vld [vmem:[%s154 + $0xe8] sm:$0xff]
        %v195 = vld [vmem:[%s154 + $0xf0] sm:$0xff]
        %v196 = vld [vmem:[%s154 + $0xf8] sm:$0xff]
        %v197 = vmul.f32 %v165, 1.442695
        %v198 = vpow.pop %v197
        %v199 = vmul.f32 %v166, 1.442695
        %v200 = vpow.pop %v199
        %v201 = vmul.f32 %v167, 1.442695
        %v202 = vpow.pop %v201
        %v203 = vmul.f32 %v168, 1.442695
        %v204 = vpow.pop %v203
        %v205 = vmul.f32 %v169, 1.442695
        %v206 = vpow.pop %v205
        %v207 = vmul.f32 %v170, 1.442695
        %v208 = vpow.pop %v207
        %v209 = vmul.f32 %v171, 1.442695
        %v210 = vpow.pop %v209
        %v211 = vmul.f32 %v172, 1.442695
        %v212 = vpow.pop %v211
        %v213 = vmul.f32 %v173, 1.442695
        %v214 = vpow.pop %v213
        %v215 = vmul.f32 %v174, 1.442695
        %v216 = vpow.pop %v215
        %v217 = vmul.f32 %v175, 1.442695
        %v218 = vpow.pop %v217
        %v219 = vmul.f32 %v176, 1.442695
        %v220 = vpow.pop %v219
        %v221 = vmul.f32 %v177, 1.442695
        %v222 = vpow.pop %v221
        %v223 = vmul.f32 %v178, 1.442695
        %v224 = vpow.pop %v223
        %v225 = vmul.f32 %v179, 1.442695
        %v226 = vpow.pop %v225
        %v227 = vmul.f32 %v180, 1.442695
        %v228 = vpow.pop %v227
        %v229 = vmul.f32 %v181, 1.442695
        %v230 = vpow.pop %v229
        %v231 = vmul.f32 %v182, 1.442695
        %v232 = vpow.pop %v231
        %v233 = vmul.f32 %v183, 1.442695
        %v234 = vpow.pop %v233
        %v235 = vmul.f32 %v184, 1.442695
        %v236 = vpow.pop %v235
        %v237 = vmul.f32 %v185, 1.442695
        %v238 = vpow.pop %v237
        %v239 = vmul.f32 %v186, 1.442695
        %v240 = vpow.pop %v239
        %v241 = vmul.f32 %v187, 1.442695
        %v242 = vpow.pop %v241
        %v243 = vmul.f32 %v188, 1.442695
        %v244 = vpow.pop %v243
        %v245 = vmul.f32 %v189, 1.442695
        %v246 = vpow.pop %v245
        %v247 = vmul.f32 %v190, 1.442695
        %v248 = vpow.pop %v247
        %v249 = vmul.f32 %v191, 1.442695
        %v250 = vpow.pop %v249
        %v251 = vmul.f32 %v192, 1.442695
        %v252 = vpow.pop %v251
        %v253 = vmul.f32 %v193, 1.442695
        %v254 = vpow.pop %v253
        %v255 = vmul.f32 %v194, 1.442695
        %v256 = vpow.pop %v255
        %v257 = vmul.f32 %v195, 1.442695
        %v258 = vpow.pop %v257
        %v259 = vmul.f32 %v196, 1.442695
        %v260 = vpow.pop %v259
        %v261 = vld [vmem:[%s1] sm:$0x1]
        %v263 = vperm.slane %v261, 0
        %v265 = vmul.f32 %v198, %v263
        %v266 = vmul.f32 %v200, %v263
        %v267 = vmul.f32 %v202, %v263
        %v268 = vmul.f32 %v204, %v263
        %v269 = vmul.f32 %v206, %v263
        %v270 = vmul.f32 %v208, %v263
        %v271 = vmul.f32 %v210, %v263
        %v272 = vmul.f32 %v212, %v263
        %v273 = vmul.f32 %v214, %v263
        %v274 = vmul.f32 %v216, %v263
        %v275 = vmul.f32 %v218, %v263
        %v276 = vmul.f32 %v220, %v263
        %v277 = vmul.f32 %v222, %v263
        %v278 = vmul.f32 %v224, %v263
        %v279 = vmul.f32 %v226, %v263
        %v280 = vmul.f32 %v228, %v263
        %v281 = vmul.f32 %v230, %v263
        %v282 = vmul.f32 %v232, %v263
        %v283 = vmul.f32 %v234, %v263
        %v284 = vmul.f32 %v236, %v263
        %v285 = vmul.f32 %v238, %v263
        %v286 = vmul.f32 %v240, %v263
        %v287 = vmul.f32 %v242, %v263
        %v288 = vmul.f32 %v244, %v263
        %v289 = vmul.f32 %v246, %v263
        %v290 = vmul.f32 %v248, %v263
        %v291 = vmul.f32 %v250, %v263
        %v292 = vmul.f32 %v252, %v263
        %v293 = vmul.f32 %v254, %v263
        %v294 = vmul.f32 %v256, %v263
        %v295 = vmul.f32 %v258, %v263
        %v296 = vmul.f32 %v260, %v263
        %vm297 = vcmask 130048
        %298 = vst.msk [vmem:[%s145] sm:$0xff] %vm297, %v265
        %299 = vst.msk [vmem:[%s145 + $0x8] sm:$0xff] %vm297, %v266
        %300 = vst.msk [vmem:[%s145 + $0x10] sm:$0xff] %vm297, %v267
        %301 = vst.msk [vmem:[%s145 + $0x18] sm:$0xff] %vm297, %v268
        %302 = vst.msk [vmem:[%s145 + $0x20] sm:$0xff] %vm297, %v269
        %303 = vst.msk [vmem:[%s145 + $0x28] sm:$0xff] %vm297, %v270
        %304 = vst.msk [vmem:[%s145 + $0x30] sm:$0xff] %vm297, %v271
        %305 = vst.msk [vmem:[%s145 + $0x38] sm:$0xff] %vm297, %v272
        %306 = vst.msk [vmem:[%s145 + $0x40] sm:$0xff] %vm297, %v273
        %307 = vst.msk [vmem:[%s145 + $0x48] sm:$0xff] %vm297, %v274
        %308 = vst.msk [vmem:[%s145 + $0x50] sm:$0xff] %vm297, %v275
        %309 = vst.msk [vmem:[%s145 + $0x58] sm:$0xff] %vm297, %v276
        %310 = vst.msk [vmem:[%s145 + $0x60] sm:$0xff] %vm297, %v277
        %311 = vst.msk [vmem:[%s145 + $0x68] sm:$0xff] %vm297, %v278
        %312 = vst.msk [vmem:[%s145 + $0x70] sm:$0xff] %vm297, %v279
        %313 = vst.msk [vmem:[%s145 + $0x78] sm:$0xff] %vm297, %v280
        %314 = vst.msk [vmem:[%s145 + $0x80] sm:$0xff] %vm297, %v281
        %315 = vst.msk [vmem:[%s145 + $0x88] sm:$0xff] %vm297, %v282
        %316 = vst.msk [vmem:[%s145 + $0x90] sm:$0xff] %vm297, %v283
        %317 = vst.msk [vmem:[%s145 + $0x98] sm:$0xff] %vm297, %v284
        %318 = vst.msk [vmem:[%s145 + $0xa0] sm:$0xff] %vm297, %v285
        %319 = vst.msk [vmem:[%s145 + $0xa8] sm:$0xff] %vm297, %v286
        %320 = vst.msk [vmem:[%s145 + $0xb0] sm:$0xff] %vm297, %v287
        %321 = vst.msk [vmem:[%s145 + $0xb8] sm:$0xff] %vm297, %v288
        %322 = vst.msk [vmem:[%s145 + $0xc0] sm:$0xff] %vm297, %v289
        %323 = vst.msk [vmem:[%s145 + $0xc8] sm:$0xff] %vm297, %v290
        %324 = vst.msk [vmem:[%s145 + $0xd0] sm:$0xff] %vm297, %v291
        %325 = vst.msk [vmem:[%s145 + $0xd8] sm:$0xff] %vm297, %v292
        %326 = vst.msk [vmem:[%s145 + $0xe0] sm:$0xff] %vm297, %v293
        %327 = vst.msk [vmem:[%s145 + $0xe8] sm:$0xff] %vm297, %v294
        %328 = vst.msk [vmem:[%s145 + $0xf0] sm:$0xff] %vm297, %v295
        %329 = vst.msk [vmem:[%s145 + $0xf8] sm:$0xff] %vm297, %v296
        %s330 = sand.u32 %s68, 1
        %s331 = sand.u32 %s68, 1
        %s332 = smul.addr %s331, 256
        %s333 = scalar_lea.vmem [#allocation2], %s332
        // Predicated region
        $region29: #{net_forward.5} parent=27 // pred_check
          %p334 = pneg %p78
        $region30: #{net_forward.5} parent=27 // pred_check_branch
          %336 = sbr.rel (%p334) target = $region32
        $region31: #{net_forward.5} parent=27 // pred_region
          %s337 = smul.u32 32, %s13
          %s338 = ssub.s32 125, %s337
          %p339 = scmp.lt.s32.totalorder %s338, 32
          %s340 = scalar_select %p339, %s338, 32
          %s341 = smul.u32 8, %s340
          %p342 = scmp.ne.s32.totalorder 0, %s341
          %s343 = smul.addr %s337, 8
          %s344 = scalar_lea.vmem %s2, %s343
          // Predicated region
          $region33: #{net_forward.5} parent=31 // pred_check
            %p345 = pneg %p342
          $region34: #{net_forward.5} parent=31 // pred_check_branch
            %347 = sbr.rel (%p345) target = $region36
          $region35: #{net_forward.5} parent=31 // pred_region
            // Predicated region
            $region37: #{net_forward.5} parent=35 // pred_check
              _
            $region38: #{net_forward.5} parent=35 // pred_check_branch
              %349 = sbr.rel (0) target = $region40
            $region39: #{net_forward.5} parent=35 // pred_region
              // Predicated region
              $region59: #{net_forward.5} parent=39 // pred_check
                _
              $region60: #{net_forward.5} parent=39 // pred_check_branch
                %461 = sbr.rel (0) target = $region62
              $region61: #{net_forward.5} parent=39 // pred_region
                %s462 = sshrl.u32 %s340, 5
                // While loop
                $region63: #{net_forward.5} parent=61 // loop_pre_header
                  _
                $region64: #{net_forward.5} parent=61 // loop_header
                  %s464 = sphi 0, %s466
                  %p465 = scmp.ge.s32.totalorder %s464, %s462
                  %s469 = sphi 0, %s538
                  %s470 = sphi %s333, %s541
                  %s471 = sphi %s344, %s542
                $region65: #{net_forward.5} parent=61 // loop_header_branch
                  %468 = sbr.rel (%p465) target = $region69
                $region66: #{net_forward.5} parent=61 // loop_body
                  %v472 = vld [vmem:[%s470] sm:$0xff]
                  %473 = vst [vmem:[%s471] sm:$0xff] %v472
                  %v474 = vld [vmem:[%s470 + $0x8] sm:$0xff]
                  %475 = vst [vmem:[%s471 + $0x8] sm:$0xff] %v474
                  %v476 = vld [vmem:[%s470 + $0x10] sm:$0xff]
                  %477 = vst [vmem:[%s471 + $0x10] sm:$0xff] %v476
                  %v478 = vld [vmem:[%s470 + $0x18] sm:$0xff]
                  %479 = vst [vmem:[%s471 + $0x18] sm:$0xff] %v478
                  %v480 = vld [vmem:[%s470 + $0x20] sm:$0xff]
                  %481 = vst [vmem:[%s471 + $0x20] sm:$0xff] %v480
                  %v482 = vld [vmem:[%s470 + $0x28] sm:$0xff]
                  %483 = vst [vmem:[%s471 + $0x28] sm:$0xff] %v482
                  %v484 = vld [vmem:[%s470 + $0x30] sm:$0xff]
                  %485 = vst [vmem:[%s471 + $0x30] sm:$0xff] %v484
                  %v486 = vld [vmem:[%s470 + $0x38] sm:$0xff]
                  %487 = vst [vmem:[%s471 + $0x38] sm:$0xff] %v486
                  %v488 = vld [vmem:[%s470 + $0x40] sm:$0xff]
                  %489 = vst [vmem:[%s471 + $0x40] sm:$0xff] %v488
                  %v490 = vld [vmem:[%s470 + $0x48] sm:$0xff]
                  %491 = vst [vmem:[%s471 + $0x48] sm:$0xff] %v490
                  %v492 = vld [vmem:[%s470 + $0x50] sm:$0xff]
                  %493 = vst [vmem:[%s471 + $0x50] sm:$0xff] %v492
                  %v494 = vld [vmem:[%s470 + $0x58] sm:$0xff]
                  %495 = vst [vmem:[%s471 + $0x58] sm:$0xff] %v494
                  %v496 = vld [vmem:[%s470 + $0x60] sm:$0xff]
                  %497 = vst [vmem:[%s471 + $0x60] sm:$0xff] %v496
                  %v498 = vld [vmem:[%s470 + $0x68] sm:$0xff]
                  %499 = vst [vmem:[%s471 + $0x68] sm:$0xff] %v498
                  %v500 = vld [vmem:[%s470 + $0x70] sm:$0xff]
                  %501 = vst [vmem:[%s471 + $0x70] sm:$0xff] %v500
                  %v502 = vld [vmem:[%s470 + $0x78] sm:$0xff]
                  %503 = vst [vmem:[%s471 + $0x78] sm:$0xff] %v502
                  %v504 = vld [vmem:[%s470 + $0x80] sm:$0xff]
                  %505 = vst [vmem:[%s471 + $0x80] sm:$0xff] %v504
                  %v506 = vld [vmem:[%s470 + $0x88] sm:$0xff]
                  %507 = vst [vmem:[%s471 + $0x88] sm:$0xff] %v506
                  %v508 = vld [vmem:[%s470 + $0x90] sm:$0xff]
                  %509 = vst [vmem:[%s471 + $0x90] sm:$0xff] %v508
                  %v510 = vld [vmem:[%s470 + $0x98] sm:$0xff]
                  %511 = vst [vmem:[%s471 + $0x98] sm:$0xff] %v510
                  %v512 = vld [vmem:[%s470 + $0xa0] sm:$0xff]
                  %513 = vst [vmem:[%s471 + $0xa0] sm:$0xff] %v512
                  %v514 = vld [vmem:[%s470 + $0xa8] sm:$0xff]
                  %515 = vst [vmem:[%s471 + $0xa8] sm:$0xff] %v514
                  %v516 = vld [vmem:[%s470 + $0xb0] sm:$0xff]
                  %517 = vst [vmem:[%s471 + $0xb0] sm:$0xff] %v516
                  %v518 = vld [vmem:[%s470 + $0xb8] sm:$0xff]
                  %519 = vst [vmem:[%s471 + $0xb8] sm:$0xff] %v518
                  %v520 = vld [vmem:[%s470 + $0xc0] sm:$0xff]
                  %521 = vst [vmem:[%s471 + $0xc0] sm:$0xff] %v520
                  %v522 = vld [vmem:[%s470 + $0xc8] sm:$0xff]
                  %523 = vst [vmem:[%s471 + $0xc8] sm:$0xff] %v522
                  %v524 = vld [vmem:[%s470 + $0xd0] sm:$0xff]
                  %525 = vst [vmem:[%s471 + $0xd0] sm:$0xff] %v524
                  %v526 = vld [vmem:[%s470 + $0xd8] sm:$0xff]
                  %527 = vst [vmem:[%s471 + $0xd8] sm:$0xff] %v526
                  %v528 = vld [vmem:[%s470 + $0xe0] sm:$0xff]
                  %529 = vst [vmem:[%s471 + $0xe0] sm:$0xff] %v528
                  %v530 = vld [vmem:[%s470 + $0xe8] sm:$0xff]
                  %531 = vst [vmem:[%s471 + $0xe8] sm:$0xff] %v530
                  %v532 = vld [vmem:[%s470 + $0xf0] sm:$0xff]
                  %533 = vst [vmem:[%s471 + $0xf0] sm:$0xff] %v532
                  %v534 = vld [vmem:[%s470 + $0xf8] sm:$0xff]
                  %535 = vst [vmem:[%s471 + $0xf8] sm:$0xff] %v534
                  %s536 = sadd.s32 1, %s469
                  %p537 = scmp.ge.s32.totalorder %s536, %s462
                  %s538 = scalar_select %p537, 0, %s536
                  %s539 = smul.u32 %s538, 256
                  %s540 = smul.u32 %s538, 256
                  %s541 = scalar_lea.vmem %s333, %s539 [#allocation2]
                  %s542 = scalar_lea.vmem %s344, %s540
                $region67: #{net_forward.5} parent=61 // loop_footer
                  %s466 = sadd.s32 %s464, 1
                $region68: #{net_forward.5} parent=61 // loop_footer_branch
                  %463 = sbr.rel target = $region64
                $region69: #{net_forward.5} parent=61 // loop_exit
                  _
                %s543 = sshrl.u32 %s340, 5
                %s544 = sand.u32 %s340, 31
                %s545 = smul.u32 %s543, 32
                %s546 = smul.u32 8, %s545
                %s547 = scalar_lea.vmem %s333, %s546 [#allocation2]
                %s548 = smul.u32 8, %s545
                %s549 = scalar_lea.vmem %s344, %s548
                // While loop
                $region70: #{net_forward.5} parent=61 // loop_pre_header
                  _
                $region71: #{net_forward.5} parent=61 // loop_header
                  %s551 = sphi 0, %s553
                  %p552 = scmp.ge.s32.totalorder %s551, %s544
                  %s556 = sphi 0, %s563
                  %s557 = sphi %s547, %s566
                  %s558 = sphi %s549, %s567
                $region72: #{net_forward.5} parent=61 // loop_header_branch
                  %555 = sbr.rel (%p552) target = $region76
                $region73: #{net_forward.5} parent=61 // loop_body
                  %v559 = vld [vmem:[%s557] sm:$0xff]
                  %560 = vst [vmem:[%s558] sm:$0xff] %v559
                  %s561 = sadd.s32 1, %s556
                  %p562 = scmp.ge.s32.totalorder %s561, %s544
                  %s563 = scalar_select %p562, 0, %s561
                  %s564 = smul.u32 %s563, 8
                  %s565 = smul.u32 %s563, 8
                  %s566 = scalar_lea.vmem %s547, %s564 [#allocation2]
                  %s567 = scalar_lea.vmem %s549, %s565
                $region74: #{net_forward.5} parent=61 // loop_footer
                  %s553 = sadd.s32 %s551, 1
                $region75: #{net_forward.5} parent=61 // loop_footer_branch
                  %550 = sbr.rel target = $region71
                $region76: #{net_forward.5} parent=61 // loop_exit
                  _
              $region62: #{net_forward.5} parent=39 // pred_fallthru
                _
              // Predicated region
              $region77: #{net_forward.5} parent=39 // pred_check
                _
              $region78: #{net_forward.5} parent=39 // pred_check_branch
                %569 = sbr.rel target = $region80
              $region79: #{net_forward.5} parent=39 // pred_region
                _
              $region80: #{net_forward.5} parent=39 // pred_fallthru
                _
            $region40: #{net_forward.5} parent=35 // pred_fallthru
              _
            // Predicated region
            $region41: #{net_forward.5} parent=35 // pred_check
              _
            $region42: #{net_forward.5} parent=35 // pred_check_branch
              %351 = sbr.rel target = $region44
            $region43: #{net_forward.5} parent=35 // pred_region
              %s353 = ssub.s32 256, 1
              %s354 = sshrl.u32 %s340, 5
              // While loop
              $region45: #{net_forward.5} parent=43 // loop_pre_header
                _
              $region46: #{net_forward.5} parent=43 // loop_header
                %s356 = sphi 0, %s358
                %p357 = scmp.ge.s32.totalorder %s356, %s354
                %s361 = sphi 0, %s430
                %s362 = sphi %s333, %s433
                %s363 = sphi %s344, %s434
              $region47: #{net_forward.5} parent=43 // loop_header_branch
                %360 = sbr.rel (%p357) target = $region51
              $region48: #{net_forward.5} parent=43 // loop_body
                %v364 = vld [vmem:[%s362] sm:%s353]
                %365 = vst [vmem:[%s363] sm:%s353] %v364
                %v366 = vld [vmem:[%s362 + $0x8] sm:%s353]
                %367 = vst [vmem:[%s363 + $0x8] sm:%s353] %v366
                %v368 = vld [vmem:[%s362 + $0x10] sm:%s353]
                %369 = vst [vmem:[%s363 + $0x10] sm:%s353] %v368
                %v370 = vld [vmem:[%s362 + $0x18] sm:%s353]
                %371 = vst [vmem:[%s363 + $0x18] sm:%s353] %v370
                %v372 = vld [vmem:[%s362 + $0x20] sm:%s353]
                %373 = vst [vmem:[%s363 + $0x20] sm:%s353] %v372
                %v374 = vld [vmem:[%s362 + $0x28] sm:%s353]
                %375 = vst [vmem:[%s363 + $0x28] sm:%s353] %v374
                %v376 = vld [vmem:[%s362 + $0x30] sm:%s353]
                %377 = vst [vmem:[%s363 + $0x30] sm:%s353] %v376
                %v378 = vld [vmem:[%s362 + $0x38] sm:%s353]
                %379 = vst [vmem:[%s363 + $0x38] sm:%s353] %v378
                %v380 = vld [vmem:[%s362 + $0x40] sm:%s353]
                %381 = vst [vmem:[%s363 + $0x40] sm:%s353] %v380
                %v382 = vld [vmem:[%s362 + $0x48] sm:%s353]
                %383 = vst [vmem:[%s363 + $0x48] sm:%s353] %v382
                %v384 = vld [vmem:[%s362 + $0x50] sm:%s353]
                %385 = vst [vmem:[%s363 + $0x50] sm:%s353] %v384
                %v386 = vld [vmem:[%s362 + $0x58] sm:%s353]
                %387 = vst [vmem:[%s363 + $0x58] sm:%s353] %v386
                %v388 = vld [vmem:[%s362 + $0x60] sm:%s353]
                %389 = vst [vmem:[%s363 + $0x60] sm:%s353] %v388
                %v390 = vld [vmem:[%s362 + $0x68] sm:%s353]
                %391 = vst [vmem:[%s363 + $0x68] sm:%s353] %v390
                %v392 = vld [vmem:[%s362 + $0x70] sm:%s353]
                %393 = vst [vmem:[%s363 + $0x70] sm:%s353] %v392
                %v394 = vld [vmem:[%s362 + $0x78] sm:%s353]
                %395 = vst [vmem:[%s363 + $0x78] sm:%s353] %v394
                %v396 = vld [vmem:[%s362 + $0x80] sm:%s353]
                %397 = vst [vmem:[%s363 + $0x80] sm:%s353] %v396
                %v398 = vld [vmem:[%s362 + $0x88] sm:%s353]
                %399 = vst [vmem:[%s363 + $0x88] sm:%s353] %v398
                %v400 = vld [vmem:[%s362 + $0x90] sm:%s353]
                %401 = vst [vmem:[%s363 + $0x90] sm:%s353] %v400
                %v402 = vld [vmem:[%s362 + $0x98] sm:%s353]
                %403 = vst [vmem:[%s363 + $0x98] sm:%s353] %v402
                %v404 = vld [vmem:[%s362 + $0xa0] sm:%s353]
                %405 = vst [vmem:[%s363 + $0xa0] sm:%s353] %v404
                %v406 = vld [vmem:[%s362 + $0xa8] sm:%s353]
                %407 = vst [vmem:[%s363 + $0xa8] sm:%s353] %v406
                %v408 = vld [vmem:[%s362 + $0xb0] sm:%s353]
                %409 = vst [vmem:[%s363 + $0xb0] sm:%s353] %v408
                %v410 = vld [vmem:[%s362 + $0xb8] sm:%s353]
                %411 = vst [vmem:[%s363 + $0xb8] sm:%s353] %v410
                %v412 = vld [vmem:[%s362 + $0xc0] sm:%s353]
                %413 = vst [vmem:[%s363 + $0xc0] sm:%s353] %v412
                %v414 = vld [vmem:[%s362 + $0xc8] sm:%s353]
                %415 = vst [vmem:[%s363 + $0xc8] sm:%s353] %v414
                %v416 = vld [vmem:[%s362 + $0xd0] sm:%s353]
                %417 = vst [vmem:[%s363 + $0xd0] sm:%s353] %v416
                %v418 = vld [vmem:[%s362 + $0xd8] sm:%s353]
                %419 = vst [vmem:[%s363 + $0xd8] sm:%s353] %v418
                %v420 = vld [vmem:[%s362 + $0xe0] sm:%s353]
                %421 = vst [vmem:[%s363 + $0xe0] sm:%s353] %v420
                %v422 = vld [vmem:[%s362 + $0xe8] sm:%s353]
                %423 = vst [vmem:[%s363 + $0xe8] sm:%s353] %v422
                %v424 = vld [vmem:[%s362 + $0xf0] sm:%s353]
                %425 = vst [vmem:[%s363 + $0xf0] sm:%s353] %v424
                %v426 = vld [vmem:[%s362 + $0xf8] sm:%s353]
                %427 = vst [vmem:[%s363 + $0xf8] sm:%s353] %v426
                %s428 = sadd.s32 1, %s361
                %p429 = scmp.ge.s32.totalorder %s428, %s354
                %s430 = scalar_select %p429, 0, %s428
                %s431 = smul.u32 %s430, 256
                %s432 = smul.u32 %s430, 256
                %s433 = scalar_lea.vmem %s333, %s431 [#allocation2]
                %s434 = scalar_lea.vmem %s344, %s432
              $region49: #{net_forward.5} parent=43 // loop_footer
                %s358 = sadd.s32 %s356, 1
              $region50: #{net_forward.5} parent=43 // loop_footer_branch
                %355 = sbr.rel target = $region46
              $region51: #{net_forward.5} parent=43 // loop_exit
                _
              %s435 = sshrl.u32 %s340, 5
              %s436 = sand.u32 %s340, 31
              %s437 = smul.u32 %s435, 32
              %s438 = smul.u32 8, %s437
              %s439 = scalar_lea.vmem %s333, %s438 [#allocation2]
              %s440 = smul.u32 8, %s437
              %s441 = scalar_lea.vmem %s344, %s440
              // While loop
              $region52: #{net_forward.5} parent=43 // loop_pre_header
                _
              $region53: #{net_forward.5} parent=43 // loop_header
                %s443 = sphi 0, %s445
                %p444 = scmp.ge.s32.totalorder %s443, %s436
                %s448 = sphi 0, %s455
                %s449 = sphi %s439, %s458
                %s450 = sphi %s441, %s459
              $region54: #{net_forward.5} parent=43 // loop_header_branch
                %447 = sbr.rel (%p444) target = $region58
              $region55: #{net_forward.5} parent=43 // loop_body
                %v451 = vld [vmem:[%s449] sm:%s353]
                %452 = vst [vmem:[%s450] sm:%s353] %v451
                %s453 = sadd.s32 1, %s448
                %p454 = scmp.ge.s32.totalorder %s453, %s436
                %s455 = scalar_select %p454, 0, %s453
                %s456 = smul.u32 %s455, 8
                %s457 = smul.u32 %s455, 8
                %s458 = scalar_lea.vmem %s439, %s456 [#allocation2]
                %s459 = scalar_lea.vmem %s441, %s457
              $region56: #{net_forward.5} parent=43 // loop_footer
                %s445 = sadd.s32 %s443, 1
              $region57: #{net_forward.5} parent=43 // loop_footer_branch
                %442 = sbr.rel target = $region53
              $region58: #{net_forward.5} parent=43 // loop_exit
                _
            $region44: #{net_forward.5} parent=35 // pred_fallthru
              _
          $region36: #{net_forward.5} parent=31 // pred_fallthru
            _
          %570 = vnop
        $region32: #{net_forward.5} parent=27 // pred_fallthru
          _
      $region28: #{net_forward.5} parent=5 // pred_fallthru
        _
      %p571 = scmp.le.s32.totalorder 2, %s8
      // Predicated region
      $region81: #{net_forward.5} parent=5 // pred_check
        %p572 = pneg %p571
      $region82: #{net_forward.5} parent=5 // pred_check_branch
        %574 = sbr.rel (%p572) target = $region84
      $region83: #{net_forward.5} parent=5 // pred_region
        %s575 = ssub.s32 %s8, 2
        // Predicated region
        $region85: #{net_forward.5} parent=83 // pred_check
          %p576 = pneg %p84
        $region86: #{net_forward.5} parent=83 // pred_check_branch
          %578 = sbr.rel (%p576) target = $region88
        $region87: #{net_forward.5} parent=83 // pred_region
          %s579 = sand.u32 %s69, 1
          %s580 = sand.u32 %s69, 1
          %s581 = smul.addr %s580, 256
          %s582 = scalar_lea.vmem [#allocation2], %s581
        $region88: #{net_forward.5} parent=83 // pred_fallthru
          _
      $region84: #{net_forward.5} parent=5 // pred_fallthru
        _
    $region6: #{net_forward.5} parent=1 // loop_footer
      %s12 = sadd.s32 1, %s8
    $region7: #{net_forward.5} parent=1 // loop_footer_branch
      %7 = sbr.rel target = $region3
    $region8: #{net_forward.5} parent=1 // loop_exit
      _

// kernel: net_forward.3
$region0: #{net_forward.3}
  #allocation0 [shape = 'u32[]', space=smem, size = 0x4, offset = 0x4, fixed_abs, tag = 'smem constant byte address 0x4 - core index']
  #allocation1 [shape = 'u32[72,128]{1,0:T(1,128)}', space=vmem, size = 0x9000, scoped, tag = 'internal scratch']
  %s0 = inlined_call_operand.vmem [shape: f32[1000,32], index: 0, kind: input, shape index: {}]
  %s1 = inlined_call_operand.vmem [shape: bf16[10,32], index: 1, kind: input, shape index: {}]
  %s2 = inlined_call_operand.vmem [shape: f32[10,1], index: 2, kind: input, shape index: {}]
  %s3 = inlined_call_operand.vmem [shape: bf16[10,1024], index: 3, kind: output, shape index: {0}]
  %s4 = inlined_call_operand.vmem [shape: f32[2,10,1], index: 4, kind: output, shape index: {1}]
  %s5 = inlined_call_operand.vmem [shape: f32[2,10,1], index: 5, kind: output, shape index: {2}]
  %6 = xla_tuple %s3, %s4, %s5
  %s7 = sld [smem:[#allocation0]]
  $region99: #{net_forward.3} parent=0
    _
  %s9 = ssub.s32 1, %s7
  %s10 = scalar_select 0, %s9, %s7
  $region1: #{net_forward.3} parent=0
    #allocation2 [shape = 'u8[16384]{0}', space=vmem, size = 0x4000, scoped, tag = 'output window, operand 0']
    loop: start=0, step=1, limit=6
    $region2: #{net_forward.3} parent=1 // loop_pre_header
      _
    $region3: #{net_forward.3} parent=1 // loop_header
      %s12 = sphi 0, %s16
      %p13 = scmp.ge.s32.totalorder %s12, 6
      %s19 = sphi 0, %s31
      %s20 = sphi 0, %s27
      %s21 = sphi 0, %s19
      %s22 = sphi 0, %s20
      %s23 = sphi 0, %s21
      %s24 = sphi 0, %s22
      %s38 = sphi 0, %s40
      %s41 = sphi 0, %s38
      %s42 = sphi 0, %s41
      %s58 = sphi 0, %s42
      %s62 = sphi 0, %s62
      %s64 = sphi 0, %s62
      %s65 = sphi 0, %s64
      %s79 = sphi 0, %s65
      %s83 = sphi 0, %s83
      %s85 = sphi 0, %s83
      %s86 = sphi 0, %s85
      %s100 = sphi 0, %s86
      %s110 = sphi 0, %s112
      %s113 = sphi 0, %s110
      %s114 = sphi 0, %s113
      %s130 = sphi 0, %s114
      %s136 = sphi 0, %s138
      %s139 = sphi 0, %s136
      %s140 = sphi 0, %s139
      %s156 = sphi 0, %s140
      %s162 = sphi 0, %s164
      %s165 = sphi 0, %s162
      %s166 = sphi 0, %s165
      %s182 = sphi 0, %s166
    $region4: #{net_forward.3} parent=1 // loop_header_branch
      %15 = sbr.rel (%p13) target = $region8
    $region5: #{net_forward.3} parent=1 // loop_body
      %s17 = ssub.s32 %s12, 1
      %s18 = ssub.s32 %s12, 2
      %s25 = sadd.s32 1, %s20
      %p26 = scmp.ge.s32.totalorder %s25, 2
      %s27 = scalar_select %p26, 0, %s25
      %s28 = sadd.s32 1, %s19
      %s29 = scalar_select %p26, %s28, %s19
      %p30 = scmp.ge.s32.totalorder %s29, 2
      %s31 = scalar_select %p30, 0, %s29
      %s32 = smul.u32 %s19, 2
      %s33 = sadd.s32 %s32, %s20
      %s34 = smul.u32 %s31, 2
      %s35 = sadd.s32 %s34, %s27
      %s36 = ssub.s32 %s33, %s35
      %p37 = scmp.eq.s32.totalorder %s36, 0
      %s39 = sadd.s32 %s38, 1
      %s40 = scalar_select %p37, %s38, %s39
      %p43 = pneg %p37
      %p44 = scmp.eq.s32.totalorder %s12, 3
      %p45 = por %p43, %p44
      %p46 = scmp.ne.s32.totalorder %s38, %s41
      %p47 = scmp.eq.s32.totalorder %s12, 0
      %p48 = por %p46, %p47
      %p49 = scmp.ne.s32.totalorder %s38, %s41
      %p50 = scmp.eq.s32.totalorder %s17, 3
      %p51 = por %p49, %p50
      %p52 = scmp.ne.s32.totalorder %s41, %s42
      %p53 = scmp.eq.s32.totalorder %s17, 0
      %p54 = por %p52, %p53
      %p55 = scmp.ne.s32.totalorder %s41, %s42
      %p56 = scmp.eq.s32.totalorder %s18, 3
      %p57 = por %p55, %p56
      %p59 = scmp.ne.s32.totalorder %s42, %s58
      %p60 = scmp.eq.s32.totalorder %s18, 0
      %p61 = por %p59, %p60
      %s63 = sadd.s32 %s62, 1
      %p66 = scmp.eq.s32.totalorder %s12, 3
      %p67 = scmp.ne.s32.totalorder %s62, %s64
      %p68 = scmp.eq.s32.totalorder %s12, 0
      %p69 = por %p67, %p68
      %p70 = scmp.ne.s32.totalorder %s62, %s64
      %p71 = scmp.eq.s32.totalorder %s17, 3
      %p72 = por %p70, %p71
      %p73 = scmp.ne.s32.totalorder %s64, %s65
      %p74 = scmp.eq.s32.totalorder %s17, 0
      %p75 = por %p73, %p74
      %p76 = scmp.ne.s32.totalorder %s64, %s65
      %p77 = scmp.eq.s32.totalorder %s18, 3
      %p78 = por %p76, %p77
      %p80 = scmp.ne.s32.totalorder %s65, %s79
      %p81 = scmp.eq.s32.totalorder %s18, 0
      %p82 = por %p80, %p81
      %s84 = sadd.s32 %s83, 1
      %p87 = scmp.eq.s32.totalorder %s12, 3
      %p88 = scmp.ne.s32.totalorder %s83, %s85
      %p89 = scmp.eq.s32.totalorder %s12, 0
      %p90 = por %p88, %p89
      %p91 = scmp.ne.s32.totalorder %s83, %s85
      %p92 = scmp.eq.s32.totalorder %s17, 3
      %p93 = por %p91, %p92
      %p94 = scmp.ne.s32.totalorder %s85, %s86
      %p95 = scmp.eq.s32.totalorder %s17, 0
      %p96 = por %p94, %p95
      %p97 = scmp.ne.s32.totalorder %s85, %s86
      %p98 = scmp.eq.s32.totalorder %s18, 3
      %p99 = por %p97, %p98
      %p101 = scmp.ne.s32.totalorder %s86, %s100
      %p102 = scmp.eq.s32.totalorder %s18, 0
      %p103 = por %p101, %p102
      %s104 = smul.u32 %s19, 2
      %s105 = sadd.s32 %s104, %s20
      %s106 = smul.u32 %s31, 2
      %s107 = sadd.s32 %s106, %s27
      %s108 = ssub.s32 %s105, %s107
      %p109 = scmp.eq.s32.totalorder %s108, 0
      %s111 = sadd.s32 %s110, 1
      %s112 = scalar_select %p109, %s110, %s111
      %p115 = pneg %p109
      %p116 = scmp.eq.s32.totalorder %s12, 3
      %p117 = por %p115, %p116
      %p118 = scmp.ne.s32.totalorder %s110, %s113
      %p119 = scmp.eq.s32.totalorder %s12, 0
      %p120 = por %p118, %p119
      %p121 = scmp.ne.s32.totalorder %s110, %s113
      %p122 = scmp.eq.s32.totalorder %s17, 3
      %p123 = por %p121, %p122
      %p124 = scmp.ne.s32.totalorder %s113, %s114
      %p125 = scmp.eq.s32.totalorder %s17, 0
      %p126 = por %p124, %p125
      %p127 = scmp.ne.s32.totalorder %s113, %s114
      %p128 = scmp.eq.s32.totalorder %s18, 3
      %p129 = por %p127, %p128
      %p131 = scmp.ne.s32.totalorder %s114, %s130
      %p132 = scmp.eq.s32.totalorder %s18, 0
      %p133 = por %p131, %p132
      %s134 = ssub.s32 %s19, %s31
      %p135 = scmp.eq.s32.totalorder %s134, 0
      %s137 = sadd.s32 %s136, 1
      %s138 = scalar_select %p135, %s136, %s137
      %p141 = pneg %p135
      %p142 = scmp.eq.s32.totalorder %s12, 3
      %p143 = por %p141, %p142
      %p144 = scmp.ne.s32.totalorder %s136, %s139
      %p145 = scmp.eq.s32.totalorder %s12, 0
      %p146 = por %p144, %p145
      %p147 = scmp.ne.s32.totalorder %s136, %s139
      %p148 = scmp.eq.s32.totalorder %s17, 3
      %p149 = por %p147, %p148
      %p150 = scmp.ne.s32.totalorder %s139, %s140
      %p151 = scmp.eq.s32.totalorder %s17, 0
      %p152 = por %p150, %p151
      %p153 = scmp.ne.s32.totalorder %s139, %s140
      %p154 = scmp.eq.s32.totalorder %s18, 3
      %p155 = por %p153, %p154
      %p157 = scmp.ne.s32.totalorder %s140, %s156
      %p158 = scmp.eq.s32.totalorder %s18, 0
      %p159 = por %p157, %p158
      %s160 = ssub.s32 %s19, %s31
      %p161 = scmp.eq.s32.totalorder %s160, 0
      %s163 = sadd.s32 %s162, 1
      %s164 = scalar_select %p161, %s162, %s163
      %p167 = pneg %p161
      %p168 = scmp.eq.s32.totalorder %s12, 3
      %p169 = por %p167, %p168
      %p170 = scmp.ne.s32.totalorder %s162, %s165
      %p171 = scmp.eq.s32.totalorder %s12, 0
      %p172 = por %p170, %p171
      %p173 = scmp.ne.s32.totalorder %s162, %s165
      %p174 = scmp.eq.s32.totalorder %s17, 3
      %p175 = por %p173, %p174
      %p176 = scmp.ne.s32.totalorder %s165, %s166
      %p177 = scmp.eq.s32.totalorder %s17, 0
      %p178 = por %p176, %p177
      %p179 = scmp.ne.s32.totalorder %s165, %s166
      %p180 = scmp.eq.s32.totalorder %s18, 3
      %p181 = por %p179, %p180
      %p183 = scmp.ne.s32.totalorder %s166, %s182
      %p184 = scmp.eq.s32.totalorder %s18, 0
      %p185 = por %p183, %p184
      %p186 = scmp.le.s32.totalorder 1, %s12
      %p187 = scmp.lt.s32.totalorder %s12, 5
      %p188 = pnand %p186, %p187
      %p189 = pneg %p188
      // Predicated region
      $region9: #{net_forward.3} parent=5 // pred_check
        _
      $region10: #{net_forward.3} parent=5 // pred_check_branch
        %191 = sbr.rel (%p188) target = $region12
      $region11: #{net_forward.3} parent=5 // pred_region
        %s192 = ssub.s32 %s12, 1
        // Predicated region
        $region13: #{net_forward.3} parent=11 // pred_check
          %p193 = pneg %p75
        $region14: #{net_forward.3} parent=11 // pred_check_branch
          %195 = sbr.rel (%p193) target = $region16
        $region15: #{net_forward.3} parent=11 // pred_region
          _
        $region16: #{net_forward.3} parent=11 // pred_fallthru
          _
        // Predicated region
        $region17: #{net_forward.3} parent=11 // pred_check
          %p196 = pneg %p96
        $region18: #{net_forward.3} parent=11 // pred_check_branch
          %198 = sbr.rel (%p196) target = $region20
        $region19: #{net_forward.3} parent=11 // pred_region
          _
        $region20: #{net_forward.3} parent=11 // pred_fallthru
          _
      $region12: #{net_forward.3} parent=5 // pred_fallthru
        _
      %p199 = scmp.lt.s32.totalorder %s12, 4
      // Predicated region
      $region21: #{net_forward.3} parent=5 // pred_check
        %p200 = pneg %p199
      $region22: #{net_forward.3} parent=5 // pred_check_branch
        %202 = sbr.rel (%p200) target = $region24
      $region23: #{net_forward.3} parent=5 // pred_region
        // Predicated region
        $region25: #{net_forward.3} parent=23 // pred_check
          %p203 = pneg %p48
        $region26: #{net_forward.3} parent=23 // pred_check_branch
          %205 = sbr.rel (%p203) target = $region28
        $region27: #{net_forward.3} parent=23 // pred_region
          %s206 = smul.u32 %s19, 2
          %s207 = sadd.s32 %s206, %s20
          %s208 = smul.u32 32, %s207
          %s209 = ssub.s32 125, %s208
          %p210 = scmp.lt.s32.totalorder %s209, 32
          %s211 = scalar_select %p210, %s209, 32
          %s212 = smul.u32 8, %s211
          %p213 = scmp.lt.s32.totalorder %s208, 124
          %s214 = scalar_select %p213, %s208, 124
          %s215 = smul.addr %s214, 8
          %s216 = scalar_lea.vmem %s0, %s215
          %s217 = smul.u32 %s19, 2
          %s218 = sadd.s32 %s217, %s20
          %s219 = smul.u32 32, %s218
          %s220 = ssub.s32 125, %s219
          %p221 = scmp.lt.s32.totalorder %s220, 32
          %s222 = scalar_select %p221, %s220, 32
          %s223 = smul.u32 8, %s222
        $region28: #{net_forward.3} parent=23 // pred_fallthru
          _
      $region24: #{net_forward.3} parent=5 // pred_fallthru
        _
      %p224 = scmp.le.s32.totalorder 1, %s12
      %p225 = scmp.lt.s32.totalorder %s12, 5
      %p226 = pnand %p224, %p225
      %p227 = pneg %p226
      // Predicated region
      $region29: #{net_forward.3} parent=5 // pred_check
        _
      $region30: #{net_forward.3} parent=5 // pred_check_branch
        %229 = sbr.rel (%p226) target = $region32
      $region31: #{net_forward.3} parent=5 // pred_region
        %s230 = ssub.s32 %s12, 1
        %s231 = smul.u32 %s21, 2
        %s232 = sadd.s32 %s231, %s22
        %s233 = smul.u32 32, %s232
        %s234 = ssub.s32 125, %s233
        %p235 = scmp.lt.s32.totalorder %s234, 32
        %s236 = scalar_select %p235, %s234, 32
        %s237 = smul.u32 8, %s236
        %p238 = scmp.lt.s32.totalorder %s233, 124
        %s239 = scalar_select %p238, %s233, 124
        %s240 = smul.addr %s239, 8
        %s241 = scalar_lea.vmem %s0, %s240
        %p242 = pneg %p54
        %p243 = pneg %p51
        %p244 = pneg %p75
        %p245 = pneg %p72
        %p246 = pneg %p96
        %p247 = pneg %p93
        %p248 = pneg %p126
        %p249 = pneg %p123
        %s250 = sand.u32 %s113, 1
        %s251 = sand.u32 %s113, 1
        %s252 = smul.addr %s251, 16
        %s253 = scalar_lea.vmem [#allocation2], %s252
        %p254 = pneg %p152
        %p255 = pneg %p149
        %p256 = scmp.lt.s32.totalorder %s21, 1
        %s257 = scalar_select %p256, %s21, 1
        %s258 = smul.addr %s257, 2
        %s259 = smul.addr %s258, 8
        %s260 = scalar_lea.vmem %s4, %s259
        %p261 = pneg %p178
        %p262 = pneg %p175
        %p263 = scmp.lt.s32.totalorder %s21, 1
        %s264 = scalar_select %p263, %s21, 1
        %s265 = smul.addr %s264, 2
        %s266 = smul.addr %s265, 8
        %s267 = scalar_lea.vmem %s5, %s266
        %s268 = smul.u32 %s21, 2
        %s269 = sadd.s32 %s268, %s22
        %s270 = smul.u32 32, %s269
        %s271 = ssub.s32 125, %s270
        %p272 = scmp.lt.s32.totalorder %s271, 32
        %s273 = scalar_select %p272, %s271, 32
        %s274 = smul.u32 8, %s273
        %p275 = scmp.lt.s32.totalorder %s270, 124
        %s276 = scalar_select %p275, %s270, 124
        %s277 = smul.addr %s276, 8
        %s278 = scalar_lea.vmem %s0, %s277
        %s279 = smul.u32 %s21, 2
        %s280 = sadd.s32 %s279, %s22
        %s281 = smul.u32 32, %s280
        %s282 = ssub.s32 125, %s281
        %p283 = scmp.lt.s32.totalorder %s282, 32
        %s284 = scalar_select %p283, %s282, 32
        %s285 = smul.u32 8, %s284
        %s286 = smul.u32 %s21, 2
        %s287 = sadd.s32 %s286, %s22
        %s288 = smul.u32 2, %s287
        %p289 = scmp.lt.s32.totalorder %s21, 1
        %s290 = scalar_select %p289, %s21, 1
        %s291 = smul.addr %s290, 2
        %s292 = smul.addr %s291, 8
        %s293 = scalar_lea.vmem %s4, %s292
        %p294 = scmp.lt.s32.totalorder %s21, 1
        %s295 = scalar_select %p294, %s21, 1
        %s296 = smul.addr %s295, 2
        %s297 = smul.addr %s296, 8
        %s298 = scalar_lea.vmem %s5, %s297
        %v299 = vld [vmem:[%s278] sm:$0xff]
        %v300 = vld [vmem:[%s278 + $0x8] sm:$0xff]
        %v301 = vld [vmem:[%s278 + $0x10] sm:$0xff]
        %v302 = vld [vmem:[%s278 + $0x18] sm:$0xff]
        %v303 = vld [vmem:[%s278 + $0x20] sm:$0xff]
        %v304 = vld [vmem:[%s278 + $0x28] sm:$0xff]
        %v305 = vld [vmem:[%s278 + $0x30] sm:$0xff]
        %v306 = vld [vmem:[%s278 + $0x38] sm:$0xff]
        %v307 = vld [vmem:[%s278 + $0x40] sm:$0xff]
        %v308 = vld [vmem:[%s278 + $0x48] sm:$0xff]
        %v309 = vld [vmem:[%s278 + $0x50] sm:$0xff]
        %v310 = vld [vmem:[%s278 + $0x58] sm:$0xff]
        %v311 = vld [vmem:[%s278 + $0x60] sm:$0xff]
        %v312 = vld [vmem:[%s278 + $0x68] sm:$0xff]
        %v313 = vld [vmem:[%s278 + $0x70] sm:$0xff]
        %v314 = vld [vmem:[%s278 + $0x78] sm:$0xff]
        %v315 = vld [vmem:[%s278 + $0x80] sm:$0xff]
        %v316 = vld [vmem:[%s278 + $0x88] sm:$0xff]
        %v317 = vld [vmem:[%s278 + $0x90] sm:$0xff]
        %v318 = vld [vmem:[%s278 + $0x98] sm:$0xff]
        %v319 = vld [vmem:[%s278 + $0xa0] sm:$0xff]
        %v320 = vld [vmem:[%s278 + $0xa8] sm:$0xff]
        %v321 = vld [vmem:[%s278 + $0xb0] sm:$0xff]
        %v322 = vld [vmem:[%s278 + $0xb8] sm:$0xff]
        %v323 = vld [vmem:[%s278 + $0xc0] sm:$0xff]
        %v324 = vld [vmem:[%s278 + $0xc8] sm:$0xff]
        %v325 = vld [vmem:[%s278 + $0xd0] sm:$0xff]
        %v326 = vld [vmem:[%s278 + $0xd8] sm:$0xff]
        %v327 = vld [vmem:[%s278 + $0xe0] sm:$0xff]
        %v328 = vld [vmem:[%s278 + $0xe8] sm:$0xff]
        %v329 = vld [vmem:[%s278 + $0xf0] sm:$0xff]
        %v330 = vld [vmem:[%s278 + $0xf8] sm:$0xff]
        %v331 = vpack.c.bf16 %v300, %v299
        %v332 = vpack.c.bf16 %v302, %v301
        %v333 = vpack.c.bf16 %v304, %v303
        %v334 = vpack.c.bf16 %v306, %v305
        %v335 = vpack.c.bf16 %v308, %v307
        %v336 = vpack.c.bf16 %v310, %v309
        %v337 = vpack.c.bf16 %v312, %v311
        %v338 = vpack.c.bf16 %v314, %v313
        %v339 = vpack.c.bf16 %v316, %v315
        %v340 = vpack.c.bf16 %v318, %v317
        %v341 = vpack.c.bf16 %v320, %v319
        %v342 = vpack.c.bf16 %v322, %v321
        %v343 = vpack.c.bf16 %v324, %v323
        %v344 = vpack.c.bf16 %v326, %v325
        %v345 = vpack.c.bf16 %v328, %v327
        %v346 = vpack.c.bf16 %v330, %v329
        %v347 = vld [vmem:[%s1] sm:$0xf]
        %v348 = vld [vmem:[%s1 + $0x4] sm:$0x1]
        %v349 = vld [vmem:[%s2] sm:$0xff]
        %v350 = vld [vmem:[%s2 + $0x8] sm:$0x3]
        %352 = vset.pattern.permute.xlu0 0
        %353 = vperm.xlu0 %352, %v349
        %v354 = vpop.permute.xlu0 %353
        %357 = vset.pattern.permute.xlu0 0
        %358 = vperm.xlu0 %357, %v350
        %v359 = vpop.permute.xlu0 %358
        %v363 = vunpack.c.l.b16 %v347
        %v364 = vunpack.c.l.b16 %v348
        %v365 = vpack.c.b16 %v364, %v363
        %vm366 = vcmask 261120
        %v368 = vsel %vm366, %v365, 0
        %v371 = vsel %vm366, %v331, 0
        %v374 = vsel %vm366, %v332, 0
        %v377 = vsel %vm366, %v333, 0
        %v380 = vsel %vm366, %v334, 0
        %v383 = vsel %vm366, %v335, 0
        %v386 = vsel %vm366, %v336, 0
        %v389 = vsel %vm366, %v337, 0
        %v392 = vsel %vm366, %v338, 0
        %v395 = vsel %vm366, %v339, 0
        %v398 = vsel %vm366, %v340, 0
        %v401 = vsel %vm366, %v341, 0
        %v404 = vsel %vm366, %v342, 0
        %v407 = vsel %vm366, %v343, 0
        %v410 = vsel %vm366, %v344, 0
        %v413 = vsel %vm366, %v345, 0
        %v416 = vsel %vm366, %v346, 0
        %418 = vmatpush.bf16.xpose.msra.mxu0 %v392
        %419 = vmatpush.bf16.xpose.msra.mxu0 %v389
        %420 = vmatpush.bf16.xpose.msra.mxu0 %v386
        %421 = vmatpush.bf16.xpose.msra.mxu0 %v383
        %422 = vmatpush.bf16.xpose.msra.mxu0 %v380
        %423 = vmatpush.bf16.xpose.msra.mxu0 %v377
        %424 = vmatpush.bf16.xpose.msra.mxu0 %v374
        %425 = vmatpush.bf16.xpose.msra.mxu0 %v371
        %426 = vmatmul.bf16.gmra.mxu0 %v368
        %v427 = vpop.f32.mrf.mxu0
        %v428 = vadd.f32 %v354, %v427
        %v429 = vpop.f32.mrf.mxu0
        %v430 = vadd.f32 %v359, %v429
        %431 = vdwg.mxu0
        %432 = vmatpush.bf16.xpose.msra.mxu0 %v416
        %433 = vmatpush.bf16.xpose.msra.mxu0 %v413
        %434 = vmatpush.bf16.xpose.msra.mxu0 %v410
        %435 = vmatpush.bf16.xpose.msra.mxu0 %v407
        %436 = vmatpush.bf16.xpose.msra.mxu0 %v404
        %437 = vmatpush.bf16.xpose.msra.mxu0 %v401
        %438 = vmatpush.bf16.xpose.msra.mxu0 %v398
        %439 = vmatpush.bf16.xpose.msra.mxu0 %v395
        %440 = vmatmul.bf16.gmra.mxu0 %v368
        %v441 = vpop.f32.mrf.mxu0
        %v442 = vadd.f32 %v354, %v441
        %v443 = vpop.f32.mrf.mxu0
        %v444 = vadd.f32 %v359, %v443
        %445 = vdwg.mxu0
        %v446 = vpack.c.bf16 %v442, %v428
        %v447 = vpack.c.bf16 %v444, %v430
        %448 = vst [vmem:[%s253] sm:$0xff] %v446
        %449 = vst [vmem:[%s253 + $0x8] sm:$0x11] %v447
        %s450 = smul.u32 %s21, 2
        %s451 = sadd.s32 %s450, %s22
        %s452 = smul.u32 %s451, 256
        %v453 = vlaneseq
        %v454 = vand.u32 %v453, 127
        %v455 = vadd.s32 %v454, 128
        %v456 = vstv %s452
        %v457 = vadd.s32 %v456, %v454
        %v458 = vadd.s32 %v456, %v455
        %vm459 = vcmp.lt.s32.totalorder %v457, 1000
        %vm460 = vcmp.lt.s32.totalorder %v458, 1000
        %v461 = vsel %vm459, %v428, 0.0
        %v462 = vsel %vm460, %v442, 0.0
        %v463 = vsel %vm459, %v430, 0.0
        %v464 = vsel %vm460, %v444, 0.0
        %p465 = scmp.eq.s32.totalorder %s22, 0
        // Predicated region
        $region33: #{net_forward.3} parent=31 // pred_check
          %p466 = pneg %p465
        $region34: #{net_forward.3} parent=31 // pred_check_branch
          %468 = sbr.rel (%p466) target = $region36
        $region35: #{net_forward.3} parent=31 // pred_region
          %vm469 = vcmask 7168
          %470 = vst.msk [vmem:[%s293] sm:$0xff] %vm469, 0.0
          %vm471 = vcmask 1024
          %472 = vst.msk [vmem:[%s293 + $0x8] sm:$0x3] %vm471, 0.0
          %473 = vst.msk [vmem:[%s298] sm:$0xff] %vm469, 0.0
          %474 = vst.msk [vmem:[%s298 + $0x8] sm:$0x3] %vm471, 0.0
        $region36: #{net_forward.3} parent=31 // pred_fallthru
          _
        %v475 = vld [vmem:[%s293] sm:$0xff]
        %v476 = vld [vmem:[%s293 + $0x8] sm:$0x3]
        %v477 = vadd.f32 %v461, %v462
        %478 = vadd.xlane.f32.xlu0 %v477
        %v479 = vpop.xlane.xlu0 %478
        %vm480 = vcmask 1041408
        %v481 = vsel %vm480, %v463, 0.0
        %v482 = vsel %vm480, %v464, 0.0
        %v483 = vadd.f32 %v481, %v482
        %484 = vadd.xlane.f32.xlu0 %v483
        %v485 = vpop.xlane.xlu0 %484
        %v486 = vadd.f32 %v475, %v479
        %v487 = vadd.f32 %v476, %v485
        %vm488 = vcmask 7168
        %489 = vst.msk [vmem:[%s293] sm:$0xff] %vm488, %v486
        %vm490 = vcmask 1024
        %491 = vst.msk [vmem:[%s293 + $0x8] sm:$0x3] %vm490, %v487
        %v492 = vld [vmem:[%s298] sm:$0xff]
        %v493 = vld [vmem:[%s298 + $0x8] sm:$0x3]
        %v494 = vmul.f32 %v461, %v461
        %v495 = vmul.f32 %v462, %v462
        %v496 = vmul.f32 %v463, %v463
        %v497 = vmul.f32 %v464, %v464
        %v498 = vadd.f32 %v494, %v495
        %499 = vadd.xlane.f32.xlu0 %v498
        %v500 = vpop.xlane.xlu0 %499
        %v501 = vsel %vm480, %v496, 0.0
        %v502 = vsel %vm480, %v497, 0.0
        %v503 = vadd.f32 %v501, %v502
        %504 = vadd.xlane.f32.xlu0 %v503
        %v505 = vpop.xlane.xlu0 %504
        %v506 = vadd.f32 %v492, %v500
        %v507 = vadd.f32 %v493, %v505
        %508 = vst.msk [vmem:[%s298] sm:$0xff] %vm488, %v506
        %509 = vst.msk [vmem:[%s298 + $0x8] sm:$0x3] %vm490, %v507
        %s510 = sand.u32 %s113, 1
        %s511 = sand.u32 %s113, 1
        %s512 = smul.addr %s511, 16
        %s513 = scalar_lea.vmem [#allocation2], %s512
        %p514 = scmp.lt.s32.totalorder %s21, 1
        %s515 = scalar_select %p514, %s21, 1
        %s516 = smul.addr %s515, 2
        %s517 = smul.addr %s516, 8
        %s518 = scalar_lea.vmem %s4, %s517
        %p519 = scmp.lt.s32.totalorder %s21, 1
        %s520 = scalar_select %p519, %s21, 1
        %s521 = smul.addr %s520, 2
        %s522 = smul.addr %s521, 8
        %s523 = scalar_lea.vmem %s5, %s522
        // Predicated region
        $region37: #{net_forward.3} parent=31 // pred_check
          %p524 = pneg %p123
        $region38: #{net_forward.3} parent=31 // pred_check_branch
          %526 = sbr.rel (%p524) target = $region40
        $region39: #{net_forward.3} parent=31 // pred_region
          %s527 = smul.u32 %s21, 2
          %s528 = sadd.s32 %s527, %s22
          %s529 = smul.u32 2, %s528
          %s530 = smul.addr %s529, 4
          %s531 = scalar_lea.vmem %s3, %s530
          // Predicated region
          $region41: #{net_forward.3} parent=39 // pred_check
            _
          $region42: #{net_forward.3} parent=39 // pred_check_branch
            %533 = sbr.rel (0) target = $region44
          $region43: #{net_forward.3} parent=39 // pred_region
            // Predicated region
            $region45: #{net_forward.3} parent=43 // pred_check
              _
            $region46: #{net_forward.3} parent=43 // pred_check_branch
              %535 = sbr.rel (0) target = $region48
            $region47: #{net_forward.3} parent=43 // pred_region
              // Predicated region
              $region60: #{net_forward.3} parent=47 // pred_check
                _
              $region61: #{net_forward.3} parent=47 // pred_check_branch
                %553 = sbr.rel (0) target = $region63
              $region62: #{net_forward.3} parent=47 // pred_region
                loop: start=0, step=1, limit=1
                $region64: #{net_forward.3} parent=62 // loop_pre_header
                  _
                $region65: #{net_forward.3} parent=62 // loop_header
                  %s555 = sphi 0, %s559
                  %p556 = scmp.ge.s32.totalorder %s555, 1
                  %s560 = sphi %s513, %s513
                  %s561 = sphi %s531, %s531
                $region66: #{net_forward.3} parent=62 // loop_header_branch
                  %558 = sbr.rel (%p556) target = $region70
                $region67: #{net_forward.3} parent=62 // loop_body
                  %v562 = vld [vmem:[%s560] sm:$0xff]
                  %563 = vst [vmem:[%s561] sm:$0xff] %v562
                  %v564 = vld [vmem:[%s560 + $0x8] sm:$0xff]
                  %565 = vst [vmem:[%s561 + $0x20] sm:$0xff] %v564
                $region68: #{net_forward.3} parent=62 // loop_footer
                  %s559 = sadd.s32 1, %s555
                $region69: #{net_forward.3} parent=62 // loop_footer_branch
                  %554 = sbr.rel target = $region65
                $region70: #{net_forward.3} parent=62 // loop_exit
                  _
              $region63: #{net_forward.3} parent=47 // pred_fallthru
                _
              // Predicated region
              $region71: #{net_forward.3} parent=47 // pred_check
                _
              $region72: #{net_forward.3} parent=47 // pred_check_branch
                %567 = sbr.rel target = $region74
              $region73: #{net_forward.3} parent=47 // pred_region
                _
              $region74: #{net_forward.3} parent=47 // pred_fallthru
                _
            $region48: #{net_forward.3} parent=43 // pred_fallthru
              _
            // Predicated region
            $region49: #{net_forward.3} parent=43 // pred_check
              _
            $region50: #{net_forward.3} parent=43 // pred_check_branch
              %537 = sbr.rel target = $region52
            $region51: #{net_forward.3} parent=43 // pred_region
              %s539 = ssub.s32 256, 1
              loop: start=0, step=1, limit=1
              $region53: #{net_forward.3} parent=51 // loop_pre_header
                _
              $region54: #{net_forward.3} parent=51 // loop_header
                %s541 = sphi 0, %s545
                %p542 = scmp.ge.s32.totalorder %s541, 1
                %s546 = sphi %s513, %s513
                %s547 = sphi %s531, %s531
              $region55: #{net_forward.3} parent=51 // loop_header_branch
                %544 = sbr.rel (%p542) target = $region59
              $region56: #{net_forward.3} parent=51 // loop_body
                %v548 = vld [vmem:[%s546] sm:%s539]
                %549 = vst [vmem:[%s547] sm:%s539] %v548
                %v550 = vld [vmem:[%s546 + $0x8] sm:%s539]
                %551 = vst [vmem:[%s547 + $0x20] sm:%s539] %v550
              $region57: #{net_forward.3} parent=51 // loop_footer
                %s545 = sadd.s32 1, %s541
              $region58: #{net_forward.3} parent=51 // loop_footer_branch
                %540 = sbr.rel target = $region54
              $region59: #{net_forward.3} parent=51 // loop_exit
                _
            $region52: #{net_forward.3} parent=43 // pred_fallthru
              _
          $region44: #{net_forward.3} parent=39 // pred_fallthru
            _
          %568 = vnop
        $region40: #{net_forward.3} parent=31 // pred_fallthru
          _
        // Predicated region
        $region75: #{net_forward.3} parent=31 // pred_check
          %p569 = pneg %p149
        $region76: #{net_forward.3} parent=31 // pred_check_branch
          %571 = sbr.rel (%p569) target = $region78
        $region77: #{net_forward.3} parent=31 // pred_region
          _
        $region78: #{net_forward.3} parent=31 // pred_fallthru
          _
        // Predicated region
        $region79: #{net_forward.3} parent=31 // pred_check
          %p572 = pneg %p175
        $region80: #{net_forward.3} parent=31 // pred_check_branch
          %574 = sbr.rel (%p572) target = $region82
        $region81: #{net_forward.3} parent=31 // pred_region
          _
        $region82: #{net_forward.3} parent=31 // pred_fallthru
          _
      $region32: #{net_forward.3} parent=5 // pred_fallthru
        _
      %p575 = scmp.le.s32.totalorder 2, %s12
      // Predicated region
      $region83: #{net_forward.3} parent=5 // pred_check
        %p576 = pneg %p575
      $region84: #{net_forward.3} parent=5 // pred_check_branch
        %578 = sbr.rel (%p576) target = $region86
      $region85: #{net_forward.3} parent=5 // pred_region
        %s579 = ssub.s32 %s12, 2
        // Predicated region
        $region87: #{net_forward.3} parent=85 // pred_check
          %p580 = pneg %p129
        $region88: #{net_forward.3} parent=85 // pred_check_branch
          %582 = sbr.rel (%p580) target = $region90
        $region89: #{net_forward.3} parent=85 // pred_region
          %s583 = sand.u32 %s114, 1
          %s584 = sand.u32 %s114, 1
          %s585 = smul.addr %s584, 16
          %s586 = scalar_lea.vmem [#allocation2], %s585
        $region90: #{net_forward.3} parent=85 // pred_fallthru
          _
        // Predicated region
        $region91: #{net_forward.3} parent=85 // pred_check
          %p587 = pneg %p155
        $region92: #{net_forward.3} parent=85 // pred_check_branch
          %589 = sbr.rel (%p587) target = $region94
        $region93: #{net_forward.3} parent=85 // pred_region
          %p590 = scmp.lt.s32.totalorder %s23, 1
          %s591 = scalar_select %p590, %s23, 1
          %s592 = smul.addr %s591, 2
          %s593 = smul.addr %s592, 8
          %s594 = scalar_lea.vmem %s4, %s593
        $region94: #{net_forward.3} parent=85 // pred_fallthru
          _
        // Predicated region
        $region95: #{net_forward.3} parent=85 // pred_check
          %p595 = pneg %p181
        $region96: #{net_forward.3} parent=85 // pred_check_branch
          %597 = sbr.rel (%p595) target = $region98
        $region97: #{net_forward.3} parent=85 // pred_region
          %p598 = scmp.lt.s32.totalorder %s23, 1
          %s599 = scalar_select %p598, %s23, 1
          %s600 = smul.addr %s599, 2
          %s601 = smul.addr %s600, 8
          %s602 = scalar_lea.vmem %s5, %s601
        $region98: #{net_forward.3} parent=85 // pred_fallthru
          _
      $region86: #{net_forward.3} parent=5 // pred_fallthru
        _
    $region6: #{net_forward.3} parent=1 // loop_footer
      %s16 = sadd.s32 1, %s12
    $region7: #{net_forward.3} parent=1 // loop_footer_branch
      %11 = sbr.rel target = $region3
    $region8: #{net_forward.3} parent=1 // loop_exit
      _

// kernel: net_forward.4
$region0: #{net_forward.4}
  #allocation0 [shape = 'u32[]', space=smem, size = 0x4, offset = 0x4, fixed_abs, tag = 'smem constant byte address 0x4 - core index']
  #allocation1 [shape = 'u32[72,128]{1,0:T(1,128)}', space=vmem, size = 0x9000, scoped, tag = 'internal scratch']
  %s0 = inlined_call_operand.vmem [shape: bf16[10,1024], index: 0, kind: input, shape index: {}]
  %s1 = inlined_call_operand.vmem [shape: f32[10,1], index: 1, kind: input, shape index: {}]
  %s2 = inlined_call_operand.vmem [shape: f32[10,1], index: 2, kind: input, shape index: {}]
  %s3 = inlined_call_operand.vmem [shape: f32[10,16], index: 3, kind: input, shape index: {}]
  %s4 = inlined_call_operand.vmem [shape: f32[1,16], index: 4, kind: input, shape index: {}]
  %s5 = inlined_call_operand.vmem [shape: f32[1000,16], index: 5, kind: output, shape index: {0}]
  %s6 = inlined_call_operand.vmem [shape: f32[2,1,16], index: 6, kind: output, shape index: {1}]
  %7 = xla_tuple %s5, %s6
  %s8 = sld [smem:[#allocation0]]
  $region151: #{net_forward.4} parent=0
    _
  %s10 = ssub.s32 1, %s8
  %s11 = scalar_select 0, %s10, %s8
  $region1: #{net_forward.4} parent=0
    #allocation2 [shape = 'u8[16384]{0}', space=vmem, size = 0x4000, scoped, tag = 'input window, operand 0']
    #allocation3 [shape = 'u8[262144]{0}', space=vmem, size = 0x40000, scoped, tag = 'output window, operand 0']
    loop: start=0, step=1, limit=6
    $region2: #{net_forward.4} parent=1 // loop_pre_header
      _
    $region3: #{net_forward.4} parent=1 // loop_header
      %s13 = sphi 0, %s17
      %p14 = scmp.ge.s32.totalorder %s13, 6
      %s20 = sphi 0, %s32
      %s21 = sphi 0, %s28
      %s22 = sphi 0, %s20
      %s23 = sphi 0, %s21
      %s24 = sphi 0, %s22
      %s25 = sphi 0, %s23
      %s39 = sphi 0, %s41
      %s42 = sphi 0, %s39
      %s43 = sphi 0, %s42
      %s59 = sphi 0, %s43
      %s63 = sphi 0, %s63
      %s65 = sphi 0, %s63
      %s66 = sphi 0, %s65
      %s80 = sphi 0, %s66
      %s84 = sphi 0, %s84
      %s86 = sphi 0, %s84
      %s87 = sphi 0, %s86
      %s101 = sphi 0, %s87
      %s105 = sphi 0, %s105
      %s107 = sphi 0, %s105
      %s108 = sphi 0, %s107
      %s122 = sphi 0, %s108
      %s126 = sphi 0, %s126
      %s128 = sphi 0, %s126
      %s129 = sphi 0, %s128
      %s143 = sphi 0, %s129
      %s153 = sphi 0, %s155
      %s156 = sphi 0, %s153
      %s157 = sphi 0, %s156
      %s173 = sphi 0, %s157
      %s179 = sphi 0, %s181
      %s182 = sphi 0, %s179
      %s183 = sphi 0, %s182
      %s199 = sphi 0, %s183
    $region4: #{net_forward.4} parent=1 // loop_header_branch
      %16 = sbr.rel (%p14) target = $region8
    $region5: #{net_forward.4} parent=1 // loop_body
      %s18 = ssub.s32 %s13, 1
      %s19 = ssub.s32 %s13, 2
      %s26 = sadd.s32 1, %s21
      %p27 = scmp.ge.s32.totalorder %s26, 2
      %s28 = scalar_select %p27, 0, %s26
      %s29 = sadd.s32 1, %s20
      %s30 = scalar_select %p27, %s29, %s20
      %p31 = scmp.ge.s32.totalorder %s30, 2
      %s32 = scalar_select %p31, 0, %s30
      %s33 = smul.u32 %s20, 2
      %s34 = sadd.s32 %s33, %s21
      %s35 = smul.u32 %s32, 2
      %s36 = sadd.s32 %s35, %s28
      %s37 = ssub.s32 %s34, %s36
      %p38 = scmp.eq.s32.totalorder %s37, 0
      %s40 = sadd.s32 %s39, 1
      %s41 = scalar_select %p38, %s39, %s40
      %p44 = pneg %p38
      %p45 = scmp.eq.s32.totalorder %s13, 3
      %p46 = por %p44, %p45
      %p47 = scmp.ne.s32.totalorder %s39, %s42
      %p48 = scmp.eq.s32.totalorder %s13, 0
      %p49 = por %p47, %p48
      %p50 = scmp.ne.s32.totalorder %s39, %s42
      %p51 = scmp.eq.s32.totalorder %s18, 3
      %p52 = por %p50, %p51
      %p53 = scmp.ne.s32.totalorder %s42, %s43
      %p54 = scmp.eq.s32.totalorder %s18, 0
      %p55 = por %p53, %p54
      %p56 = scmp.ne.s32.totalorder %s42, %s43
      %p57 = scmp.eq.s32.totalorder %s19, 3
      %p58 = por %p56, %p57
      %p60 = scmp.ne.s32.totalorder %s43, %s59
      %p61 = scmp.eq.s32.totalorder %s19, 0
      %p62 = por %p60, %p61
      %s64 = sadd.s32 %s63, 1
      %p67 = scmp.eq.s32.totalorder %s13, 3
      %p68 = scmp.ne.s32.totalorder %s63, %s65
      %p69 = scmp.eq.s32.totalorder %s13, 0
      %p70 = por %p68, %p69
      %p71 = scmp.ne.s32.totalorder %s63, %s65
      %p72 = scmp.eq.s32.totalorder %s18, 3
      %p73 = por %p71, %p72
      %p74 = scmp.ne.s32.totalorder %s65, %s66
      %p75 = scmp.eq.s32.totalorder %s18, 0
      %p76 = por %p74, %p75
      %p77 = scmp.ne.s32.totalorder %s65, %s66
      %p78 = scmp.eq.s32.totalorder %s19, 3
      %p79 = por %p77, %p78
      %p81 = scmp.ne.s32.totalorder %s66, %s80
      %p82 = scmp.eq.s32.totalorder %s19, 0
      %p83 = por %p81, %p82
      %s85 = sadd.s32 %s84, 1
      %p88 = scmp.eq.s32.totalorder %s13, 3
      %p89 = scmp.ne.s32.totalorder %s84, %s86
      %p90 = scmp.eq.s32.totalorder %s13, 0
      %p91 = por %p89, %p90
      %p92 = scmp.ne.s32.totalorder %s84, %s86
      %p93 = scmp.eq.s32.totalorder %s18, 3
      %p94 = por %p92, %p93
      %p95 = scmp.ne.s32.totalorder %s86, %s87
      %p96 = scmp.eq.s32.totalorder %s18, 0
      %p97 = por %p95, %p96
      %p98 = scmp.ne.s32.totalorder %s86, %s87
      %p99 = scmp.eq.s32.totalorder %s19, 3
      %p100 = por %p98, %p99
      %p102 = scmp.ne.s32.totalorder %s87, %s101
      %p103 = scmp.eq.s32.totalorder %s19, 0
      %p104 = por %p102, %p103
      %s106 = sadd.s32 %s105, 1
      %p109 = scmp.eq.s32.totalorder %s13, 3
      %p110 = scmp.ne.s32.totalorder %s105, %s107
      %p111 = scmp.eq.s32.totalorder %s13, 0
      %p112 = por %p110, %p111
      %p113 = scmp.ne.s32.totalorder %s105, %s107
      %p114 = scmp.eq.s32.totalorder %s18, 3
      %p115 = por %p113, %p114
      %p116 = scmp.ne.s32.totalorder %s107, %s108
      %p117 = scmp.eq.s32.totalorder %s18, 0
      %p118 = por %p116, %p117
      %p119 = scmp.ne.s32.totalorder %s107, %s108
      %p120 = scmp.eq.s32.totalorder %s19, 3
      %p121 = por %p119, %p120
      %p123 = scmp.ne.s32.totalorder %s108, %s122
      %p124 = scmp.eq.s32.totalorder %s19, 0
      %p125 = por %p123, %p124
      %s127 = sadd.s32 %s126, 1
      %p130 = scmp.eq.s32.totalorder %s13, 3
      %p131 = scmp.ne.s32.totalorder %s126, %s128
      %p132 = scmp.eq.s32.totalorder %s13, 0
      %p133 = por %p131, %p132
      %p134 = scmp.ne.s32.totalorder %s126, %s128
      %p135 = scmp.eq.s32.totalorder %s18, 3
      %p136 = por %p134, %p135
      %p137 = scmp.ne.s32.totalorder %s128, %s129
      %p138 = scmp.eq.s32.totalorder %s18, 0
      %p139 = por %p137, %p138
      %p140 = scmp.ne.s32.totalorder %s128, %s129
      %p141 = scmp.eq.s32.totalorder %s19, 3
      %p142 = por %p140, %p141
      %p144 = scmp.ne.s32.totalorder %s129, %s143
      %p145 = scmp.eq.s32.totalorder %s19, 0
      %p146 = por %p144, %p145
      %s147 = smul.u32 %s20, 2
      %s148 = sadd.s32 %s147, %s21
      %s149 = smul.u32 %s32, 2
      %s150 = sadd.s32 %s149, %s28
      %s151 = ssub.s32 %s148, %s150
      %p152 = scmp.eq.s32.totalorder %s151, 0
      %s154 = sadd.s32 %s153, 1
      %s155 = scalar_select %p152, %s153, %s154
      %p158 = pneg %p152
      %p159 = scmp.eq.s32.totalorder %s13, 3
      %p160 = por %p158, %p159
      %p161 = scmp.ne.s32.totalorder %s153, %s156
      %p162 = scmp.eq.s32.totalorder %s13, 0
      %p163 = por %p161, %p162
      %p164 = scmp.ne.s32.totalorder %s153, %s156
      %p165 = scmp.eq.s32.totalorder %s18, 3
      %p166 = por %p164, %p165
      %p167 = scmp.ne.s32.totalorder %s156, %s157
      %p168 = scmp.eq.s32.totalorder %s18, 0
      %p169 = por %p167, %p168
      %p170 = scmp.ne.s32.totalorder %s156, %s157
      %p171 = scmp.eq.s32.totalorder %s19, 3
      %p172 = por %p170, %p171
      %p174 = scmp.ne.s32.totalorder %s157, %s173
      %p175 = scmp.eq.s32.totalorder %s19, 0
      %p176 = por %p174, %p175
      %s177 = ssub.s32 %s20, %s32
      %p178 = scmp.eq.s32.totalorder %s177, 0
      %s180 = sadd.s32 %s179, 1
      %s181 = scalar_select %p178, %s179, %s180
      %p184 = pneg %p178
      %p185 = scmp.eq.s32.totalorder %s13, 3
      %p186 = por %p184, %p185
      %p187 = scmp.ne.s32.totalorder %s179, %s182
      %p188 = scmp.eq.s32.totalorder %s13, 0
      %p189 = por %p187, %p188
      %p190 = scmp.ne.s32.totalorder %s179, %s182
      %p191 = scmp.eq.s32.totalorder %s18, 3
      %p192 = por %p190, %p191
      %p193 = scmp.ne.s32.totalorder %s182, %s183
      %p194 = scmp.eq.s32.totalorder %s18, 0
      %p195 = por %p193, %p194
      %p196 = scmp.ne.s32.totalorder %s182, %s183
      %p197 = scmp.eq.s32.totalorder %s19, 3
      %p198 = por %p196, %p197
      %p200 = scmp.ne.s32.totalorder %s183, %s199
      %p201 = scmp.eq.s32.totalorder %s19, 0
      %p202 = por %p200, %p201
      %p203 = scmp.le.s32.totalorder 1, %s13
      %p204 = scmp.lt.s32.totalorder %s13, 5
      %p205 = pnand %p203, %p204
      %p206 = pneg %p205
      // Predicated region
      $region9: #{net_forward.4} parent=5 // pred_check
        _
      $region10: #{net_forward.4} parent=5 // pred_check_branch
        %208 = sbr.rel (%p205) target = $region12
      $region11: #{net_forward.4} parent=5 // pred_region
        %s209 = ssub.s32 %s13, 1
        // Predicated region
        $region13: #{net_forward.4} parent=11 // pred_check
          %p210 = pneg %p76
        $region14: #{net_forward.4} parent=11 // pred_check_branch
          %212 = sbr.rel (%p210) target = $region16
        $region15: #{net_forward.4} parent=11 // pred_region
          _
        $region16: #{net_forward.4} parent=11 // pred_fallthru
          _
        // Predicated region
        $region17: #{net_forward.4} parent=11 // pred_check
          %p213 = pneg %p97
        $region18: #{net_forward.4} parent=11 // pred_check_branch
          %215 = sbr.rel (%p213) target = $region20
        $region19: #{net_forward.4} parent=11 // pred_region
          _
        $region20: #{net_forward.4} parent=11 // pred_fallthru
          _
        // Predicated region
        $region21: #{net_forward.4} parent=11 // pred_check
          %p216 = pneg %p118
        $region22: #{net_forward.4} parent=11 // pred_check_branch
          %218 = sbr.rel (%p216) target = $region24
        $region23: #{net_forward.4} parent=11 // pred_region
          _
        $region24: #{net_forward.4} parent=11 // pred_fallthru
          _
        // Predicated region
        $region25: #{net_forward.4} parent=11 // pred_check
          %p219 = pneg %p139
        $region26: #{net_forward.4} parent=11 // pred_check_branch
          %221 = sbr.rel (%p219) target = $region28
        $region27: #{net_forward.4} parent=11 // pred_region
          _
        $region28: #{net_forward.4} parent=11 // pred_fallthru
          _
      $region12: #{net_forward.4} parent=5 // pred_fallthru
        _
      %p222 = scmp.lt.s32.totalorder %s13, 4
      // Predicated region
      $region29: #{net_forward.4} parent=5 // pred_check
        %p223 = pneg %p222
      $region30: #{net_forward.4} parent=5 // pred_check_branch
        %225 = sbr.rel (%p223) target = $region32
      $region31: #{net_forward.4} parent=5 // pred_region
        // Predicated region
        $region33: #{net_forward.4} parent=31 // pred_check
          %p226 = pneg %p49
        $region34: #{net_forward.4} parent=31 // pred_check_branch
          %228 = sbr.rel (%p226) target = $region36
        $region35: #{net_forward.4} parent=31 // pred_region
          %s229 = sand.u32 %s39, 1
          %s230 = sand.u32 %s39, 1
          %s231 = smul.addr %s230, 16
          %s232 = scalar_lea.vmem [#allocation2], %s231
          %s233 = smul.u32 %s20, 2
          %s234 = sadd.s32 %s233, %s21
          %s235 = smul.u32 2, %s234
          %s236 = smul.addr %s235, 4
          %s237 = scalar_lea.vmem %s0, %s236
          // Predicated region
          $region37: #{net_forward.4} parent=35 // pred_check
            _
          $region38: #{net_forward.4} parent=35 // pred_check_branch
            %239 = sbr.rel (0) target = $region40
          $region39: #{net_forward.4} parent=35 // pred_region
            // Predicated region
            $region41: #{net_forward.4} parent=39 // pred_check
              _
            $region42: #{net_forward.4} parent=39 // pred_check_branch
              %241 = sbr.rel (0) target = $region44
            $region43: #{net_forward.4} parent=39 // pred_region
              // Predicated region
              $region56: #{net_forward.4} parent=43 // pred_check
                _
              $region57: #{net_forward.4} parent=43 // pred_check_branch
                %259 = sbr.rel (0) target = $region59
              $region58: #{net_forward.4} parent=43 // pred_region
                loop: start=0, step=1, limit=1
                $region60: #{net_forward.4} parent=58 // loop_pre_header
                  _
                $region61: #{net_forward.4} parent=58 // loop_header
                  %s261 = sphi 0, %s265
                  %p262 = scmp.ge.s32.totalorder %s261, 1
                  %s266 = sphi %s237, %s237
                  %s267 = sphi %s232, %s232
                $region62: #{net_forward.4} parent=58 // loop_header_branch
                  %264 = sbr.rel (%p262) target = $region66
                $region63: #{net_forward.4} parent=58 // loop_body
                  %v268 = vld [vmem:[%s266] sm:$0xff]
                  %269 = vst [vmem:[%s267] sm:$0xff] %v268
                  %v270 = vld [vmem:[%s266 + $0x20] sm:$0xff]
                  %271 = vst [vmem:[%s267 + $0x8] sm:$0xff] %v270
                $region64: #{net_forward.4} parent=58 // loop_footer
                  %s265 = sadd.s32 1, %s261
                $region65: #{net_forward.4} parent=58 // loop_footer_branch
                  %260 = sbr.rel target = $region61
                $region66: #{net_forward.4} parent=58 // loop_exit
                  _
              $region59: #{net_forward.4} parent=43 // pred_fallthru
                _
              // Predicated region
              $region67: #{net_forward.4} parent=43 // pred_check
                _
              $region68: #{net_forward.4} parent=43 // pred_check_branch
                %273 = sbr.rel target = $region70
              $region69: #{net_forward.4} parent=43 // pred_region
                _
              $region70: #{net_forward.4} parent=43 // pred_fallthru
                _
            $region44: #{net_forward.4} parent=39 // pred_fallthru
              _
            // Predicated region
            $region45: #{net_forward.4} parent=39 // pred_check
              _
            $region46: #{net_forward.4} parent=39 // pred_check_branch
              %243 = sbr.rel target = $region48
            $region47: #{net_forward.4} parent=39 // pred_region
              %s245 = ssub.s32 256, 1
              loop: start=0, step=1, limit=1
              $region49: #{net_forward.4} parent=47 // loop_pre_header
                _
              $region50: #{net_forward.4} parent=47 // loop_header
                %s247 = sphi 0, %s251
                %p248 = scmp.ge.s32.totalorder %s247, 1
                %s252 = sphi %s237, %s237
                %s253 = sphi %s232, %s232
              $region51: #{net_forward.4} parent=47 // loop_header_branch
                %250 = sbr.rel (%p248) target = $region55
              $region52: #{net_forward.4} parent=47 // loop_body
                %v254 = vld [vmem:[%s252] sm:%s245]
                %255 = vst [vmem:[%s253] sm:%s245] %v254
                %v256 = vld [vmem:[%s252 + $0x20] sm:%s245]
                %257 = vst [vmem:[%s253 + $0x8] sm:%s245] %v256
              $region53: #{net_forward.4} parent=47 // loop_footer
                %s251 = sadd.s32 1, %s247
              $region54: #{net_forward.4} parent=47 // loop_footer_branch
                %246 = sbr.rel target = $region50
              $region55: #{net_forward.4} parent=47 // loop_exit
                _
            $region48: #{net_forward.4} parent=39 // pred_fallthru
              _
          $region40: #{net_forward.4} parent=35 // pred_fallthru
            _
          %274 = vnop
        $region36: #{net_forward.4} parent=31 // pred_fallthru
          _
      $region32: #{net_forward.4} parent=5 // pred_fallthru
        _
      %p275 = scmp.le.s32.totalorder 1, %s13
      %p276 = scmp.lt.s32.totalorder %s13, 5
      %p277 = pnand %p275, %p276
      %p278 = pneg %p277
      // Predicated region
      $region71: #{net_forward.4} parent=5 // pred_check
        _
      $region72: #{net_forward.4} parent=5 // pred_check_branch
        %280 = sbr.rel (%p277) target = $region74
      $region73: #{net_forward.4} parent=5 // pred_region
        %s281 = ssub.s32 %s13, 1
        %s282 = sand.u32 %s42, 1
        %s283 = sand.u32 %s42, 1
        %s284 = smul.addr %s283, 16
        %s285 = scalar_lea.vmem [#allocation2], %s284
        // Predicated region
        $region75: #{net_forward.4} parent=73 // pred_check
          %p286 = pneg %p55
        $region76: #{net_forward.4} parent=73 // pred_check_branch
          %288 = sbr.rel (%p286) target = $region78
        $region77: #{net_forward.4} parent=73 // pred_region
          _
        $region78: #{net_forward.4} parent=73 // pred_fallthru
          _
        %s289 = sand.u32 %s42, 1
        %s290 = sand.u32 %s42, 1
        %s291 = smul.addr %s290, 16
        %s292 = scalar_lea.vmem [#allocation2], %s291
        %p293 = pneg %p55
        %p294 = pneg %p52
        %p295 = pneg %p76
        %p296 = pneg %p73
        %p297 = pneg %p97
        %p298 = pneg %p94
        %p299 = pneg %p118
        %p300 = pneg %p115
        %p301 = pneg %p139
        %p302 = pneg %p136
        %p303 = pneg %p169
        %p304 = pneg %p166
        %s305 = sand.u32 %s156, 1
        %s306 = sand.u32 %s156, 1
        %s307 = smul.addr %s306, 256
        %s308 = scalar_lea.vmem [#allocation3], %s307
        %p309 = pneg %p195
        %p310 = pneg %p192
        %p311 = scmp.lt.s32.totalorder %s22, 1
        %s312 = scalar_select %p311, %s22, 1
        %s313 = scalar_lea.vmem %s6, %s312
        %s314 = smul.u32 %s22, 2
        %s315 = sadd.s32 %s314, %s23
        %s316 = smul.u32 2, %s315
        %s317 = smul.u32 %s22, 2
        %s318 = sadd.s32 %s317, %s23
        %s319 = smul.u32 32, %s318
        %s320 = ssub.s32 125, %s319
        %p321 = scmp.lt.s32.totalorder %s320, 32
        %s322 = scalar_select %p321, %s320, 32
        %s323 = smul.u32 8, %s322
        %p324 = scmp.lt.s32.totalorder %s22, 1
        %s325 = scalar_select %p324, %s22, 1
        %s326 = scalar_lea.vmem %s6, %s325
        %v327 = vld [vmem:[%s285] sm:$0xff]
        %v328 = vld [vmem:[%s285 + $0x8] sm:$0x11]
        %v329 = vunpack.c.l.bf16 %v327
        %v330 = vunpack.c.h.bf16 %v327
        %v331 = vunpack.c.l.bf16 %v328
        %v332 = vunpack.c.h.bf16 %v328
        %v333 = vld [vmem:[%s1] sm:$0xff]
        %v334 = vld [vmem:[%s1 + $0x8] sm:$0x3]
        %336 = vset.pattern.permute.xlu0 0
        %337 = vperm.xlu0 %336, %v333
        %v338 = vpop.permute.xlu0 %337
        %341 = vset.pattern.permute.xlu0 0
        %342 = vperm.xlu0 %341, %v334
        %v343 = vpop.permute.xlu0 %342
        %v345 = vmul.f32 %v329, %v338
        %v346 = vmul.f32 %v330, %v338
        %v347 = vmul.f32 %v331, %v343
        %v348 = vmul.f32 %v332, %v343
        %v349 = vld [vmem:[%s2] sm:$0xff]
        %v350 = vld [vmem:[%s2 + $0x8] sm:$0x3]
        %352 = vset.pattern.permute.xlu0 0
        %353 = vperm.xlu0 %352, %v349
        %v354 = vpop.permute.xlu0 %353
        %357 = vset.pattern.permute.xlu0 0
        %358 = vperm.xlu0 %357, %v350
        %v359 = vpop.permute.xlu0 %358
        %v361 = vadd.f32 %v345, %v354
        %v362 = vadd.f32 %v346, %v354
        %v363 = vadd.f32 %v347, %v359
        %v364 = vadd.f32 %v348, %v359
        %v365 = vld [vmem:[%s3] sm:$0xff]
        %v366 = vld [vmem:[%s3 + $0x8] sm:$0x3]
        %v367 = vld [vmem:[%s4] sm:$0x1]
        %v369 = vperm.slane %v367, 0
        %371 = vxpose.xlu0.b32.start [1/16] %v361, 128
        %372 = vxpose.xlu0.b32.cont [2/16] %v363, 128
        %373 = vxpose.xlu0.b32.cont [3/16] 0.0, 128
        %374 = vxpose.xlu0.b32.cont [4/16] 0.0, 128
        %375 = vxpose.xlu0.b32.cont [5/16] 0.0, 128
        %376 = vxpose.xlu0.b32.cont [6/16] 0.0, 128
        %377 = vxpose.xlu0.b32.cont [7/16] 0.0, 128
        %378 = vxpose.xlu0.b32.cont [8/16] 0.0, 128
        %379 = vxpose.xlu0.b32.cont [9/16] 0.0, 128
        %380 = vxpose.xlu0.b32.cont [10/16] 0.0, 128
        %381 = vxpose.xlu0.b32.cont [11/16] 0.0, 128
        %382 = vxpose.xlu0.b32.cont [12/16] 0.0, 128
        %383 = vxpose.xlu0.b32.cont [13/16] 0.0, 128
        %384 = vxpose.xlu0.b32.cont [14/16] 0.0, 128
        %385 = vxpose.xlu0.b32.cont [15/16] 0.0, 128
        %386 = vxpose.xlu0.b32.end [16/16] 0.0, 128
        %v387 = vpop.trf.xlu0
        %v388 = vpop.trf.xlu0
        %v389 = vpop.trf.xlu0
        %v390 = vpop.trf.xlu0
        %v391 = vpop.trf.xlu0
        %v392 = vpop.trf.xlu0
        %v393 = vpop.trf.xlu0
        %v394 = vpop.trf.xlu0
        %v395 = vpop.trf.xlu0
        %v396 = vpop.trf.xlu0
        %v397 = vpop.trf.xlu0
        %v398 = vpop.trf.xlu0
        %v399 = vpop.trf.xlu0
        %v400 = vpop.trf.xlu0
        %v401 = vpop.trf.xlu0
        %v402 = vpop.trf.xlu0
        %403 = vxpose.xlu0.b32.start [1/16] %v362, 128
        %404 = vxpose.xlu0.b32.cont [2/16] %v364, 128
        %405 = vxpose.xlu0.b32.cont [3/16] 0.0, 128
        %406 = vxpose.xlu0.b32.cont [4/16] 0.0, 128
        %407 = vxpose.xlu0.b32.cont [5/16] 0.0, 128
        %408 = vxpose.xlu0.b32.cont [6/16] 0.0, 128
        %409 = vxpose.xlu0.b32.cont [7/16] 0.0, 128
        %410 = vxpose.xlu0.b32.cont [8/16] 0.0, 128
        %411 = vxpose.xlu0.b32.cont [9/16] 0.0, 128
        %412 = vxpose.xlu0.b32.cont [10/16] 0.0, 128
        %413 = vxpose.xlu0.b32.cont [11/16] 0.0, 128
        %414 = vxpose.xlu0.b32.cont [12/16] 0.0, 128
        %415 = vxpose.xlu0.b32.cont [13/16] 0.0, 128
        %416 = vxpose.xlu0.b32.cont [14/16] 0.0, 128
        %417 = vxpose.xlu0.b32.cont [15/16] 0.0, 128
        %418 = vxpose.xlu0.b32.end [16/16] 0.0, 128
        %v419 = vpop.trf.xlu0
        %v420 = vpop.trf.xlu0
        %v421 = vpop.trf.xlu0
        %v422 = vpop.trf.xlu0
        %v423 = vpop.trf.xlu0
        %v424 = vpop.trf.xlu0
        %v425 = vpop.trf.xlu0
        %v426 = vpop.trf.xlu0
        %v427 = vpop.trf.xlu0
        %v428 = vpop.trf.xlu0
        %v429 = vpop.trf.xlu0
        %v430 = vpop.trf.xlu0
        %v431 = vpop.trf.xlu0
        %v432 = vpop.trf.xlu0
        %v433 = vpop.trf.xlu0
        %v434 = vpop.trf.xlu0
        %vm435 = vcmask 80896
        %v437 = vsel %vm435, %v387, 0
        %v440 = vsel %vm435, %v388, 0
        %v443 = vsel %vm435, %v389, 0
        %v446 = vsel %vm435, %v390, 0
        %v449 = vsel %vm435, %v391, 0
        %v452 = vsel %vm435, %v392, 0
        %v455 = vsel %vm435, %v393, 0
        %v458 = vsel %vm435, %v394, 0
        %v461 = vsel %vm435, %v395, 0
        %v464 = vsel %vm435, %v396, 0
        %v467 = vsel %vm435, %v397, 0
        %v470 = vsel %vm435, %v398, 0
        %v473 = vsel %vm435, %v399, 0
        %v476 = vsel %vm435, %v400, 0
        %v479 = vsel %vm435, %v401, 0
        %v482 = vsel %vm435, %v402, 0
        %v485 = vsel %vm435, %v419, 0
        %v488 = vsel %vm435, %v420, 0
        %v491 = vsel %vm435, %v421, 0
        %v494 = vsel %vm435, %v422, 0
        %v497 = vsel %vm435, %v423, 0
        %v500 = vsel %vm435, %v424, 0
        %v503 = vsel %vm435, %v425, 0
        %v506 = vsel %vm435, %v426, 0
        %v509 = vsel %vm435, %v427, 0
        %v512 = vsel %vm435, %v428, 0
        %v515 = vsel %vm435, %v429, 0
        %v518 = vsel %vm435, %v430, 0
        %v521 = vsel %vm435, %v431, 0
        %v524 = vsel %vm435, %v432, 0
        %v527 = vsel %vm435, %v433, 0
        %v530 = vsel %vm435, %v434, 0
        %vm532 = vcmask 1041408
        %v534 = vsel %vm532, %v366, 0
        %536 = vmatpush.msra.mxu0 0.0
        %537 = vmatpush.msra.mxu0 0.0
        %538 = vmatpush.msra.mxu0 0.0
        %539 = vmatpush.msra.mxu0 0.0
        %540 = vmatpush.msra.mxu0 0.0
        %541 = vmatpush.msra.mxu0 0.0
        %542 = vmatpush.msra.mxu0 0.0
        %543 = vmatpush.msra.mxu0 0.0
        %544 = vmatpush.msra.mxu0 0.0
        %545 = vmatpush.msra.mxu0 0.0
        %546 = vmatpush.msra.mxu0 0.0
        %547 = vmatpush.msra.mxu0 0.0
        %548 = vmatpush.msra.mxu0 0.0
        %549 = vmatpush.msra.mxu0 0.0
        %550 = vmatpush.msra.mxu0 %v534
        %551 = vmatpush.msra.mxu0 %v365
        %552 = vmatmul.f32.gmra.mxu0 %v437
        %v553 = vpop.f32.mrf.mxu0
        %v554 = vadd.f32 %v369, %v553
        %555 = vmatmul.f32.gmra.mxu0 %v440
        %v556 = vpop.f32.mrf.mxu0
        %v557 = vadd.f32 %v369, %v556
        %558 = vmatmul.f32.gmra.mxu0 %v443
        %v559 = vpop.f32.mrf.mxu0
        %v560 = vadd.f32 %v369, %v559
        %561 = vmatmul.f32.gmra.mxu0 %v446
        %v562 = vpop.f32.mrf.mxu0
        %v563 = vadd.f32 %v369, %v562
        %564 = vmatmul.f32.gmra.mxu0 %v449
        %v565 = vpop.f32.mrf.mxu0
        %v566 = vadd.f32 %v369, %v565
        %567 = vmatmul.f32.gmra.mxu0 %v452
        %v568 = vpop.f32.mrf.mxu0
        %v569 = vadd.f32 %v369, %v568
        %570 = vmatmul.f32.gmra.mxu0 %v455
        %v571 = vpop.f32.mrf.mxu0
        %v572 = vadd.f32 %v369, %v571
        %573 = vmatmul.f32.gmra.mxu0 %v458
        %v574 = vpop.f32.mrf.mxu0
        %v575 = vadd.f32 %v369, %v574
        %576 = vmatmul.f32.gmra.mxu0 %v461
        %v577 = vpop.f32.mrf.mxu0
        %v578 = vadd.f32 %v369, %v577
        %579 = vmatmul.f32.gmra.mxu0 %v464
        %v580 = vpop.f32.mrf.mxu0
        %v581 = vadd.f32 %v369, %v580
        %582 = vmatmul.f32.gmra.mxu0 %v467
        %v583 = vpop.f32.mrf.mxu0
        %v584 = vadd.f32 %v369, %v583
        %585 = vmatmul.f32.gmra.mxu0 %v470
        %v586 = vpop.f32.mrf.mxu0
        %v587 = vadd.f32 %v369, %v586
        %588 = vmatmul.f32.gmra.mxu0 %v473
        %v589 = vpop.f32.mrf.mxu0
        %v590 = vadd.f32 %v369, %v589
        %591 = vmatmul.f32.gmra.mxu0 %v476
        %v592 = vpop.f32.mrf.mxu0
        %v593 = vadd.f32 %v369, %v592
        %594 = vmatmul.f32.gmra.mxu0 %v479
        %v595 = vpop.f32.mrf.mxu0
        %v596 = vadd.f32 %v369, %v595
        %597 = vmatmul.f32.gmra.mxu0 %v482
        %v598 = vpop.f32.mrf.mxu0
        %v599 = vadd.f32 %v369, %v598
        %600 = vmatmul.f32.gmra.mxu0 %v485
        %v601 = vpop.f32.mrf.mxu0
        %v602 = vadd.f32 %v369, %v601
        %603 = vmatmul.f32.gmra.mxu0 %v488
        %v604 = vpop.f32.mrf.mxu0
        %v605 = vadd.f32 %v369, %v604
        %606 = vmatmul.f32.gmra.mxu0 %v491
        %v607 = vpop.f32.mrf.mxu0
        %v608 = vadd.f32 %v369, %v607
        %609 = vmatmul.f32.gmra.mxu0 %v494
        %v610 = vpop.f32.mrf.mxu0
        %v611 = vadd.f32 %v369, %v610
        %612 = vmatmul.f32.gmra.mxu0 %v497
        %v613 = vpop.f32.mrf.mxu0
        %v614 = vadd.f32 %v369, %v613
        %615 = vmatmul.f32.gmra.mxu0 %v500
        %v616 = vpop.f32.mrf.mxu0
        %v617 = vadd.f32 %v369, %v616
        %618 = vmatmul.f32.gmra.mxu0 %v503
        %v619 = vpop.f32.mrf.mxu0
        %v620 = vadd.f32 %v369, %v619
        %621 = vmatmul.f32.gmra.mxu0 %v506
        %v622 = vpop.f32.mrf.mxu0
        %v623 = vadd.f32 %v369, %v622
        %624 = vmatmul.f32.gmra.mxu0 %v509
        %v625 = vpop.f32.mrf.mxu0
        %v626 = vadd.f32 %v369, %v625
        %627 = vmatmul.f32.gmra.mxu0 %v512
        %v628 = vpop.f32.mrf.mxu0
        %v629 = vadd.f32 %v369, %v628
        %630 = vmatmul.f32.gmra.mxu0 %v515
        %v631 = vpop.f32.mrf.mxu0
        %v632 = vadd.f32 %v369, %v631
        %633 = vmatmul.f32.gmra.mxu0 %v518
        %v634 = vpop.f32.mrf.mxu0
        %v635 = vadd.f32 %v369, %v634
        %636 = vmatmul.f32.gmra.mxu0 %v521
        %v637 = vpop.f32.mrf.mxu0
        %v638 = vadd.f32 %v369, %v637
        %639 = vmatmul.f32.gmra.mxu0 %v524
        %v640 = vpop.f32.mrf.mxu0
        %v641 = vadd.f32 %v369, %v640
        %642 = vmatmul.f32.gmra.mxu0 %v527
        %v643 = vpop.f32.mrf.mxu0
        %v644 = vadd.f32 %v369, %v643
        %645 = vmatmul.f32.gmra.mxu0 %v530
        %v646 = vpop.f32.mrf.mxu0
        %v647 = vadd.f32 %v369, %v646
        %648 = vdwg.mxu0
        %v649 = vmul.f32 %v554, 0.5
        %v650 = vmul.f32 %v557, 0.5
        %v651 = vmul.f32 %v560, 0.5
        %v652 = vmul.f32 %v563, 0.5
        %v653 = vmul.f32 %v566, 0.5
        %v654 = vmul.f32 %v569, 0.5
        %v655 = vmul.f32 %v572, 0.5
        %v656 = vmul.f32 %v575, 0.5
        %v657 = vmul.f32 %v578, 0.5
        %v658 = vmul.f32 %v581, 0.5
        %v659 = vmul.f32 %v584, 0.5
        %v660 = vmul.f32 %v587, 0.5
        %v661 = vmul.f32 %v590, 0.5
        %v662 = vmul.f32 %v593, 0.5
        %v663 = vmul.f32 %v596, 0.5
        %v664 = vmul.f32 %v599, 0.5
        %v665 = vmul.f32 %v602, 0.5
        %v666 = vmul.f32 %v605, 0.5
        %v667 = vmul.f32 %v608, 0.5
        %v668 = vmul.f32 %v611, 0.5
        %v669 = vmul.f32 %v614, 0.5
        %v670 = vmul.f32 %v617, 0.5
        %v671 = vmul.f32 %v620, 0.5
        %v672 = vmul.f32 %v623, 0.5
        %v673 = vmul.f32 %v626, 0.5
        %v674 = vmul.f32 %v629, 0.5
        %v675 = vmul.f32 %v632, 0.5
        %v676 = vmul.f32 %v635, 0.5
        %v677 = vmul.f32 %v638, 0.5
        %v678 = vmul.f32 %v641, 0.5
        %v679 = vmul.f32 %v644, 0.5
        %v680 = vmul.f32 %v647, 0.5
        %v681 = vtanh.pop %v649
        %v682 = vtanh.pop %v650
        %v683 = vtanh.pop %v651
        %v684 = vtanh.pop %v652
        %v685 = vtanh.pop %v653
        %v686 = vtanh.pop %v654
        %v687 = vtanh.pop %v655
        %v688 = vtanh.pop %v656
        %v689 = vtanh.pop %v657
        %v690 = vtanh.pop %v658
        %v691 = vtanh.pop %v659
        %v692 = vtanh.pop %v660
        %v693 = vtanh.pop %v661
        %v694 = vtanh.pop %v662
        %v695 = vtanh.pop %v663
        %v696 = vtanh.pop %v664
        %v697 = vtanh.pop %v665
        %v698 = vtanh.pop %v666
        %v699 = vtanh.pop %v667
        %v700 = vtanh.pop %v668
        %v701 = vtanh.pop %v669
        %v702 = vtanh.pop %v670
        %v703 = vtanh.pop %v671
        %v704 = vtanh.pop %v672
        %v705 = vtanh.pop %v673
        %v706 = vtanh.pop %v674
        %v707 = vtanh.pop %v675
        %v708 = vtanh.pop %v676
        %v709 = vtanh.pop %v677
        %v710 = vtanh.pop %v678
        %v711 = vtanh.pop %v679
        %v712 = vtanh.pop %v680
        %v713 = vmul.f32 %v681, 0.5
        %v714 = vmul.f32 %v682, 0.5
        %v715 = vmul.f32 %v683, 0.5
        %v716 = vmul.f32 %v684, 0.5
        %v717 = vmul.f32 %v685, 0.5
        %v718 = vmul.f32 %v686, 0.5
        %v719 = vmul.f32 %v687, 0.5
        %v720 = vmul.f32 %v688, 0.5
        %v721 = vmul.f32 %v689, 0.5
        %v722 = vmul.f32 %v690, 0.5
        %v723 = vmul.f32 %v691, 0.5
        %v724 = vmul.f32 %v692, 0.5
        %v725 = vmul.f32 %v693, 0.5
        %v726 = vmul.f32 %v694, 0.5
        %v727 = vmul.f32 %v695, 0.5
        %v728 = vmul.f32 %v696, 0.5
        %v729 = vmul.f32 %v697, 0.5
        %v730 = vmul.f32 %v698, 0.5
        %v731 = vmul.f32 %v699, 0.5
        %v732 = vmul.f32 %v700, 0.5
        %v733 = vmul.f32 %v701, 0.5
        %v734 = vmul.f32 %v702, 0.5
        %v735 = vmul.f32 %v703, 0.5
        %v736 = vmul.f32 %v704, 0.5
        %v737 = vmul.f32 %v705, 0.5
        %v738 = vmul.f32 %v706, 0.5
        %v739 = vmul.f32 %v707, 0.5
        %v740 = vmul.f32 %v708, 0.5
        %v741 = vmul.f32 %v709, 0.5
        %v742 = vmul.f32 %v710, 0.5
        %v743 = vmul.f32 %v711, 0.5
        %v744 = vmul.f32 %v712, 0.5
        %v745 = vadd.f32 %v713, 0.5
        %v746 = vadd.f32 %v714, 0.5
        %v747 = vadd.f32 %v715, 0.5
        %v748 = vadd.f32 %v716, 0.5
        %v749 = vadd.f32 %v717, 0.5
        %v750 = vadd.f32 %v718, 0.5
        %v751 = vadd.f32 %v719, 0.5
        %v752 = vadd.f32 %v720, 0.5
        %v753 = vadd.f32 %v721, 0.5
        %v754 = vadd.f32 %v722, 0.5
        %v755 = vadd.f32 %v723, 0.5
        %v756 = vadd.f32 %v724, 0.5
        %v757 = vadd.f32 %v725, 0.5
        %v758 = vadd.f32 %v726, 0.5
        %v759 = vadd.f32 %v727, 0.5
        %v760 = vadd.f32 %v728, 0.5
        %v761 = vadd.f32 %v729, 0.5
        %v762 = vadd.f32 %v730, 0.5
        %v763 = vadd.f32 %v731, 0.5
        %v764 = vadd.f32 %v732, 0.5
        %v765 = vadd.f32 %v733, 0.5
        %v766 = vadd.f32 %v734, 0.5
        %v767 = vadd.f32 %v735, 0.5
        %v768 = vadd.f32 %v736, 0.5
        %v769 = vadd.f32 %v737, 0.5
        %v770 = vadd.f32 %v738, 0.5
        %v771 = vadd.f32 %v739, 0.5
        %v772 = vadd.f32 %v740, 0.5
        %v773 = vadd.f32 %v741, 0.5
        %v774 = vadd.f32 %v742, 0.5
        %v775 = vadd.f32 %v743, 0.5
        %v776 = vadd.f32 %v744, 0.5
        %vm777 = vcmask 130048
        %778 = vst.msk [vmem:[%s308] sm:$0xff] %vm777, %v745
        %779 = vst.msk [vmem:[%s308 + $0x8] sm:$0xff] %vm777, %v746
        %780 = vst.msk [vmem:[%s308 + $0x10] sm:$0xff] %vm777, %v747
        %781 = vst.msk [vmem:[%s308 + $0x18] sm:$0xff] %vm777, %v748
        %782 = vst.msk [vmem:[%s308 + $0x20] sm:$0xff] %vm777, %v749
        %783 = vst.msk [vmem:[%s308 + $0x28] sm:$0xff] %vm777, %v750
        %784 = vst.msk [vmem:[%s308 + $0x30] sm:$0xff] %vm777, %v751
        %785 = vst.msk [vmem:[%s308 + $0x38] sm:$0xff] %vm777, %v752
        %786 = vst.msk [vmem:[%s308 + $0x40] sm:$0xff] %vm777, %v753
        %787 = vst.msk [vmem:[%s308 + $0x48] sm:$0xff] %vm777, %v754
        %788 = vst.msk [vmem:[%s308 + $0x50] sm:$0xff] %vm777, %v755
        %789 = vst.msk [vmem:[%s308 + $0x58] sm:$0xff] %vm777, %v756
        %790 = vst.msk [vmem:[%s308 + $0x60] sm:$0xff] %vm777, %v757
        %791 = vst.msk [vmem:[%s308 + $0x68] sm:$0xff] %vm777, %v758
        %792 = vst.msk [vmem:[%s308 + $0x70] sm:$0xff] %vm777, %v759
        %793 = vst.msk [vmem:[%s308 + $0x78] sm:$0xff] %vm777, %v760
        %794 = vst.msk [vmem:[%s308 + $0x80] sm:$0xff] %vm777, %v761
        %795 = vst.msk [vmem:[%s308 + $0x88] sm:$0xff] %vm777, %v762
        %796 = vst.msk [vmem:[%s308 + $0x90] sm:$0xff] %vm777, %v763
        %797 = vst.msk [vmem:[%s308 + $0x98] sm:$0xff] %vm777, %v764
        %798 = vst.msk [vmem:[%s308 + $0xa0] sm:$0xff] %vm777, %v765
        %799 = vst.msk [vmem:[%s308 + $0xa8] sm:$0xff] %vm777, %v766
        %800 = vst.msk [vmem:[%s308 + $0xb0] sm:$0xff] %vm777, %v767
        %801 = vst.msk [vmem:[%s308 + $0xb8] sm:$0xff] %vm777, %v768
        %802 = vst.msk [vmem:[%s308 + $0xc0] sm:$0xff] %vm777, %v769
        %803 = vst.msk [vmem:[%s308 + $0xc8] sm:$0xff] %vm777, %v770
        %804 = vst.msk [vmem:[%s308 + $0xd0] sm:$0xff] %vm777, %v771
        %805 = vst.msk [vmem:[%s308 + $0xd8] sm:$0xff] %vm777, %v772
        %806 = vst.msk [vmem:[%s308 + $0xe0] sm:$0xff] %vm777, %v773
        %807 = vst.msk [vmem:[%s308 + $0xe8] sm:$0xff] %vm777, %v774
        %808 = vst.msk [vmem:[%s308 + $0xf0] sm:$0xff] %vm777, %v775
        %809 = vst.msk [vmem:[%s308 + $0xf8] sm:$0xff] %vm777, %v776
        %v810 = vmul.f32 %v745, 1.442695
        %v811 = vpow.pop %v810
        %v812 = vmul.f32 %v746, 1.442695
        %v813 = vpow.pop %v812
        %v814 = vmul.f32 %v747, 1.442695
        %v815 = vpow.pop %v814
        %v816 = vmul.f32 %v748, 1.442695
        %v817 = vpow.pop %v816
        %v818 = vmul.f32 %v749, 1.442695
        %v819 = vpow.pop %v818
        %v820 = vmul.f32 %v750, 1.442695
        %v821 = vpow.pop %v820
        %v822 = vmul.f32 %v751, 1.442695
        %v823 = vpow.pop %v822
        %v824 = vmul.f32 %v752, 1.442695
        %v825 = vpow.pop %v824
        %v826 = vmul.f32 %v753, 1.442695
        %v827 = vpow.pop %v826
        %v828 = vmul.f32 %v754, 1.442695
        %v829 = vpow.pop %v828
        %v830 = vmul.f32 %v755, 1.442695
        %v831 = vpow.pop %v830
        %v832 = vmul.f32 %v756, 1.442695
        %v833 = vpow.pop %v832
        %v834 = vmul.f32 %v757, 1.442695
        %v835 = vpow.pop %v834
        %v836 = vmul.f32 %v758, 1.442695
        %v837 = vpow.pop %v836
        %v838 = vmul.f32 %v759, 1.442695
        %v839 = vpow.pop %v838
        %v840 = vmul.f32 %v760, 1.442695
        %v841 = vpow.pop %v840
        %v842 = vmul.f32 %v761, 1.442695
        %v843 = vpow.pop %v842
        %v844 = vmul.f32 %v762, 1.442695
        %v845 = vpow.pop %v844
        %v846 = vmul.f32 %v763, 1.442695
        %v847 = vpow.pop %v846
        %v848 = vmul.f32 %v764, 1.442695
        %v849 = vpow.pop %v848
        %v850 = vmul.f32 %v765, 1.442695
        %v851 = vpow.pop %v850
        %v852 = vmul.f32 %v766, 1.442695
        %v853 = vpow.pop %v852
        %v854 = vmul.f32 %v767, 1.442695
        %v855 = vpow.pop %v854
        %v856 = vmul.f32 %v768, 1.442695
        %v857 = vpow.pop %v856
        %v858 = vmul.f32 %v769, 1.442695
        %v859 = vpow.pop %v858
        %v860 = vmul.f32 %v770, 1.442695
        %v861 = vpow.pop %v860
        %v862 = vmul.f32 %v771, 1.442695
        %v863 = vpow.pop %v862
        %v864 = vmul.f32 %v772, 1.442695
        %v865 = vpow.pop %v864
        %v866 = vmul.f32 %v773, 1.442695
        %v867 = vpow.pop %v866
        %v868 = vmul.f32 %v774, 1.442695
        %v869 = vpow.pop %v868
        %v870 = vmul.f32 %v775, 1.442695
        %v871 = vpow.pop %v870
        %v872 = vmul.f32 %v776, 1.442695
        %v873 = vpow.pop %v872
        %s874 = smul.u32 %s22, 2
        %s875 = sadd.s32 %s874, %s23
        %s876 = smul.u32 %s875, 256
        %v877 = vlaneseq
        %v878 = vshrl.u32 %v877, 7
        %v879 = vadd.s32 %v878, 8
        %v880 = vadd.s32 %v878, 16
        %v881 = vadd.s32 %v878, 24
        %v882 = vadd.s32 %v878, 32
        %v883 = vadd.s32 %v878, 40
        %v884 = vadd.s32 %v878, 48
        %v885 = vadd.s32 %v878, 56
        %v886 = vadd.s32 %v878, 64
        %v887 = vadd.s32 %v878, 72
        %v888 = vadd.s32 %v878, 80
        %v889 = vadd.s32 %v878, 88
        %v890 = vadd.s32 %v878, 96
        %v891 = vadd.s32 %v878, 104
        %v892 = vadd.s32 %v878, 112
        %v893 = vadd.s32 %v878, 120
        %v894 = vadd.s32 %v878, 128
        %v895 = vadd.s32 %v878, 136
        %v896 = vadd.s32 %v878, 144
        %v897 = vadd.s32 %v878, 152
        %v898 = vadd.s32 %v878, 160
        %v899 = vadd.s32 %v878, 168
        %v900 = vadd.s32 %v878, 176
        %v901 = vadd.s32 %v878, 184
        %v902 = vadd.s32 %v878, 192
        %v903 = vadd.s32 %v878, 200
        %v904 = vadd.s32 %v878, 208
        %v905 = vadd.s32 %v878, 216
        %v906 = vadd.s32 %v878, 224
        %v907 = vadd.s32 %v878, 232
        %v908 = vadd.s32 %v878, 240
        %v909 = vadd.s32 %v878, 248
        %v910 = vstv %s876
        %v911 = vadd.s32 %v910, %v878
        %v912 = vadd.s32 %v910, %v879
        %v913 = vadd.s32 %v910, %v880
        %v914 = vadd.s32 %v910, %v881
        %v915 = vadd.s32 %v910, %v882
        %v916 = vadd.s32 %v910, %v883
        %v917 = vadd.s32 %v910, %v884
        %v918 = vadd.s32 %v910, %v885
        %v919 = vadd.s32 %v910, %v886
        %v920 = vadd.s32 %v910, %v887
        %v921 = vadd.s32 %v910, %v888
        %v922 = vadd.s32 %v910, %v889
        %v923 = vadd.s32 %v910, %v890
        %v924 = vadd.s32 %v910, %v891
        %v925 = vadd.s32 %v910, %v892
        %v926 = vadd.s32 %v910, %v893
        %v927 = vadd.s32 %v910, %v894
        %v928 = vadd.s32 %v910, %v895
        %v929 = vadd.s32 %v910, %v896
        %v930 = vadd.s32 %v910, %v897
        %v931 = vadd.s32 %v910, %v898
        %v932 = vadd.s32 %v910, %v899
        %v933 = vadd.s32 %v910, %v900
        %v934 = vadd.s32 %v910, %v901
        %v935 = vadd.s32 %v910, %v902
        %v936 = vadd.s32 %v910, %v903
        %v937 = vadd.s32 %v910, %v904
        %v938 = vadd.s32 %v910, %v905
        %v939 = vadd.s32 %v910, %v906
        %v940 = vadd.s32 %v910, %v907
        %v941 = vadd.s32 %v910, %v908
        %v942 = vadd.s32 %v910, %v909
        %vm943 = vcmp.lt.s32.totalorder %v911, 1000
        %vm944 = vcmp.lt.s32.totalorder %v912, 1000
        %vm945 = vcmp.lt.s32.totalorder %v913, 1000
        %vm946 = vcmp.lt.s32.totalorder %v914, 1000
        %vm947 = vcmp.lt.s32.totalorder %v915, 1000
        %vm948 = vcmp.lt.s32.totalorder %v916, 1000
        %vm949 = vcmp.lt.s32.totalorder %v917, 1000
        %vm950 = vcmp.lt.s32.totalorder %v918, 1000
        %vm951 = vcmp.lt.s32.totalorder %v919, 1000
        %vm952 = vcmp.lt.s32.totalorder %v920, 1000
        %vm953 = vcmp.lt.s32.totalorder %v921, 1000
        %vm954 = vcmp.lt.s32.totalorder %v922, 1000
        %vm955 = vcmp.lt.s32.totalorder %v923, 1000
        %vm956 = vcmp.lt.s32.totalorder %v924, 1000
        %vm957 = vcmp.lt.s32.totalorder %v925, 1000
        %vm958 = vcmp.lt.s32.totalorder %v926, 1000
        %vm959 = vcmp.lt.s32.totalorder %v927, 1000
        %vm960 = vcmp.lt.s32.totalorder %v928, 1000
        %vm961 = vcmp.lt.s32.totalorder %v929, 1000
        %vm962 = vcmp.lt.s32.totalorder %v930, 1000
        %vm963 = vcmp.lt.s32.totalorder %v931, 1000
        %vm964 = vcmp.lt.s32.totalorder %v932, 1000
        %vm965 = vcmp.lt.s32.totalorder %v933, 1000
        %vm966 = vcmp.lt.s32.totalorder %v934, 1000
        %vm967 = vcmp.lt.s32.totalorder %v935, 1000
        %vm968 = vcmp.lt.s32.totalorder %v936, 1000
        %vm969 = vcmp.lt.s32.totalorder %v937, 1000
        %vm970 = vcmp.lt.s32.totalorder %v938, 1000
        %vm971 = vcmp.lt.s32.totalorder %v939, 1000
        %vm972 = vcmp.lt.s32.totalorder %v940, 1000
        %vm973 = vcmp.lt.s32.totalorder %v941, 1000
        %vm974 = vcmp.lt.s32.totalorder %v942, 1000
        %v975 = vsel %vm943, %v811, 0.0
        %v976 = vsel %vm944, %v813, 0.0
        %v977 = vsel %vm945, %v815, 0.0
        %v978 = vsel %vm946, %v817, 0.0
        %v979 = vsel %vm947, %v819, 0.0
        %v980 = vsel %vm948, %v821, 0.0
        %v981 = vsel %vm949, %v823, 0.0
        %v982 = vsel %vm950, %v825, 0.0
        %v983 = vsel %vm951, %v827, 0.0
        %v984 = vsel %vm952, %v829, 0.0
        %v985 = vsel %vm953, %v831, 0.0
        %v986 = vsel %vm954, %v833, 0.0
        %v987 = vsel %vm955, %v835, 0.0
        %v988 = vsel %vm956, %v837, 0.0
        %v989 = vsel %vm957, %v839, 0.0
        %v990 = vsel %vm958, %v841, 0.0
        %v991 = vsel %vm959, %v843, 0.0
        %v992 = vsel %vm960, %v845, 0.0
        %v993 = vsel %vm961, %v847, 0.0
        %v994 = vsel %vm962, %v849, 0.0
        %v995 = vsel %vm963, %v851, 0.0
        %v996 = vsel %vm964, %v853, 0.0
        %v997 = vsel %vm965, %v855, 0.0
        %v998 = vsel %vm966, %v857, 0.0
        %v999 = vsel %vm967, %v859, 0.0
        %v1000 = vsel %vm968, %v861, 0.0
        %v1001 = vsel %vm969, %v863, 0.0
        %v1002 = vsel %vm970, %v865, 0.0
        %v1003 = vsel %vm971, %v867, 0.0
        %v1004 = vsel %vm972, %v869, 0.0
        %v1005 = vsel %vm973, %v871, 0.0
        %v1006 = vsel %vm974, %v873, 0.0
        %p1007 = scmp.eq.s32.totalorder %s23, 0
        // Predicated region
        $region79: #{net_forward.4} parent=73 // pred_check
          %p1008 = pneg %p1007
        $region80: #{net_forward.4} parent=73 // pred_check_branch
          %1010 = sbr.rel (%p1008) target = $region82
        $region81: #{net_forward.4} parent=73 // pred_region
          %vm1011 = vcmask 122880
          %1012 = vst.msk [vmem:[%s326] sm:$0x1] %vm1011, 0.0
        $region82: #{net_forward.4} parent=73 // pred_fallthru
          _
        %v1013 = vld [vmem:[%s326] sm:$0x1]
        %v1014 = vsel %vm777, %v975, 0.0
        %v1015 = vsel %vm777, %v976, 0.0
        %v1016 = vadd.f32 %v1014, %v1015
        %v1017 = vsel %vm777, %v977, 0.0
        %v1018 = vadd.f32 %v1016, %v1017
        %v1019 = vsel %vm777, %v978, 0.0
        %v1020 = vadd.f32 %v1018, %v1019
        %v1021 = vsel %vm777, %v979, 0.0
        %v1022 = vadd.f32 %v1020, %v1021
        %v1023 = vsel %vm777, %v980, 0.0
        %v1024 = vadd.f32 %v1022, %v1023
        %v1025 = vsel %vm777, %v981, 0.0
        %v1026 = vadd.f32 %v1024, %v1025
        %v1027 = vsel %vm777, %v982, 0.0
        %v1028 = vadd.f32 %v1026, %v1027
        %v1029 = vsel %vm777, %v983, 0.0
        %v1030 = vadd.f32 %v1028, %v1029
        %v1031 = vsel %vm777, %v984, 0.0
        %v1032 = vadd.f32 %v1030, %v1031
        %v1033 = vsel %vm777, %v985, 0.0
        %v1034 = vadd.f32 %v1032, %v1033
        %v1035 = vsel %vm777, %v986, 0.0
        %v1036 = vadd.f32 %v1034, %v1035
        %v1037 = vsel %vm777, %v987, 0.0
        %v1038 = vadd.f32 %v1036, %v1037
        %v1039 = vsel %vm777, %v988, 0.0
        %v1040 = vadd.f32 %v1038, %v1039
        %v1041 = vsel %vm777, %v989, 0.0
        %v1042 = vadd.f32 %v1040, %v1041
        %v1043 = vsel %vm777, %v990, 0.0
        %v1044 = vadd.f32 %v1042, %v1043
        %v1045 = vsel %vm777, %v991, 0.0
        %v1046 = vadd.f32 %v1044, %v1045
        %v1047 = vsel %vm777, %v992, 0.0
        %v1048 = vadd.f32 %v1046, %v1047
        %v1049 = vsel %vm777, %v993, 0.0
        %v1050 = vadd.f32 %v1048, %v1049
        %v1051 = vsel %vm777, %v994, 0.0
        %v1052 = vadd.f32 %v1050, %v1051
        %v1053 = vsel %vm777, %v995, 0.0
        %v1054 = vadd.f32 %v1052, %v1053
        %v1055 = vsel %vm777, %v996, 0.0
        %v1056 = vadd.f32 %v1054, %v1055
        %v1057 = vsel %vm777, %v997, 0.0
        %v1058 = vadd.f32 %v1056, %v1057
        %v1059 = vsel %vm777, %v998, 0.0
        %v1060 = vadd.f32 %v1058, %v1059
        %v1061 = vsel %vm777, %v999, 0.0
        %v1062 = vadd.f32 %v1060, %v1061
        %v1063 = vsel %vm777, %v1000, 0.0
        %v1064 = vadd.f32 %v1062, %v1063
        %v1065 = vsel %vm777, %v1001, 0.0
        %v1066 = vadd.f32 %v1064, %v1065
        %v1067 = vsel %vm777, %v1002, 0.0
        %v1068 = vadd.f32 %v1066, %v1067
        %v1069 = vsel %vm777, %v1003, 0.0
        %v1070 = vadd.f32 %v1068, %v1069
        %v1071 = vsel %vm777, %v1004, 0.0
        %v1072 = vadd.f32 %v1070, %v1071
        %v1073 = vsel %vm777, %v1005, 0.0
        %v1074 = vadd.f32 %v1072, %v1073
        %v1075 = vsel %vm777, %v1006, 0.0
        %v1076 = vadd.f32 %v1074, %v1075
        %v1077 = vrot.slane %v1076, 4
        %v1078 = vadd.f32 %v1076, %v1077
        %v1079 = vrot.slane %v1078, 2
        %v1080 = vadd.f32 %v1078, %v1079
        %v1081 = vrot.slane %v1080, 1
        %v1082 = vadd.f32 %v1080, %v1081
        %v1083 = vadd.f32 %v1013, %v1082
        %vm1084 = vcmask 122880
        %1085 = vst.msk [vmem:[%s326] sm:$0x1] %vm1084, %v1083
        %s1086 = sand.u32 %s156, 1
        %s1087 = sand.u32 %s156, 1
        %s1088 = smul.addr %s1087, 256
        %s1089 = scalar_lea.vmem [#allocation3], %s1088
        %p1090 = scmp.lt.s32.totalorder %s22, 1
        %s1091 = scalar_select %p1090, %s22, 1
        %s1092 = scalar_lea.vmem %s6, %s1091
        // Predicated region
        $region83: #{net_forward.4} parent=73 // pred_check
          %p1093 = pneg %p166
        $region84: #{net_forward.4} parent=73 // pred_check_branch
          %1095 = sbr.rel (%p1093) target = $region86
        $region85: #{net_forward.4} parent=73 // pred_region
          %s1096 = smul.u32 %s22, 2
          %s1097 = sadd.s32 %s1096, %s23
          %s1098 = smul.u32 32, %s1097
          %s1099 = ssub.s32 125, %s1098
          %p1100 = scmp.lt.s32.totalorder %s1099, 32
          %s1101 = scalar_select %p1100, %s1099, 32
          %s1102 = smul.u32 8, %s1101
          %p1103 = scmp.ne.s32.totalorder 0, %s1102
          %s1104 = smul.addr %s1098, 8
          %s1105 = scalar_lea.vmem %s5, %s1104
          // Predicated region
          $region87: #{net_forward.4} parent=85 // pred_check
            %p1106 = pneg %p1103
          $region88: #{net_forward.4} parent=85 // pred_check_branch
            %1108 = sbr.rel (%p1106) target = $region90
          $region89: #{net_forward.4} parent=85 // pred_region
            // Predicated region
            $region91: #{net_forward.4} parent=89 // pred_check
              _
            $region92: #{net_forward.4} parent=89 // pred_check_branch
              %1110 = sbr.rel (0) target = $region94
            $region93: #{net_forward.4} parent=89 // pred_region
              // Predicated region
              $region113: #{net_forward.4} parent=93 // pred_check
                _
              $region114: #{net_forward.4} parent=93 // pred_check_branch
                %1222 = sbr.rel (0) target = $region116
              $region115: #{net_forward.4} parent=93 // pred_region
                %s1223 = sshrl.u32 %s1101, 5
                // While loop
                $region117: #{net_forward.4} parent=115 // loop_pre_header
                  _
                $region118: #{net_forward.4} parent=115 // loop_header
                  %s1225 = sphi 0, %s1227
                  %p1226 = scmp.ge.s32.totalorder %s1225, %s1223
                  %s1230 = sphi 0, %s1299
                  %s1231 = sphi %s1089, %s1302
                  %s1232 = sphi %s1105, %s1303
                $region119: #{net_forward.4} parent=115 // loop_header_branch
                  %1229 = sbr.rel (%p1226) target = $region123
                $region120: #{net_forward.4} parent=115 // loop_body
                  %v1233 = vld [vmem:[%s1231] sm:$0xff]
                  %1234 = vst [vmem:[%s1232] sm:$0xff] %v1233
                  %v1235 = vld [vmem:[%s1231 + $0x8] sm:$0xff]
                  %1236 = vst [vmem:[%s1232 + $0x8] sm:$0xff] %v1235
                  %v1237 = vld [vmem:[%s1231 + $0x10] sm:$0xff]
                  %1238 = vst [vmem:[%s1232 + $0x10] sm:$0xff] %v1237
                  %v1239 = vld [vmem:[%s1231 + $0x18] sm:$0xff]
                  %1240 = vst [vmem:[%s1232 + $0x18] sm:$0xff] %v1239
                  %v1241 = vld [vmem:[%s1231 + $0x20] sm:$0xff]
                  %1242 = vst [vmem:[%s1232 + $0x20] sm:$0xff] %v1241
                  %v1243 = vld [vmem:[%s1231 + $0x28] sm:$0xff]
                  %1244 = vst [vmem:[%s1232 + $0x28] sm:$0xff] %v1243
                  %v1245 = vld [vmem:[%s1231 + $0x30] sm:$0xff]
                  %1246 = vst [vmem:[%s1232 + $0x30] sm:$0xff] %v1245
                  %v1247 = vld [vmem:[%s1231 + $0x38] sm:$0xff]
                  %1248 = vst [vmem:[%s1232 + $0x38] sm:$0xff] %v1247
                  %v1249 = vld [vmem:[%s1231 + $0x40] sm:$0xff]
                  %1250 = vst [vmem:[%s1232 + $0x40] sm:$0xff] %v1249
                  %v1251 = vld [vmem:[%s1231 + $0x48] sm:$0xff]
                  %1252 = vst [vmem:[%s1232 + $0x48] sm:$0xff] %v1251
                  %v1253 = vld [vmem:[%s1231 + $0x50] sm:$0xff]
                  %1254 = vst [vmem:[%s1232 + $0x50] sm:$0xff] %v1253
                  %v1255 = vld [vmem:[%s1231 + $0x58] sm:$0xff]
                  %1256 = vst [vmem:[%s1232 + $0x58] sm:$0xff] %v1255
                  %v1257 = vld [vmem:[%s1231 + $0x60] sm:$0xff]
                  %1258 = vst [vmem:[%s1232 + $0x60] sm:$0xff] %v1257
                  %v1259 = vld [vmem:[%s1231 + $0x68] sm:$0xff]
                  %1260 = vst [vmem:[%s1232 + $0x68] sm:$0xff] %v1259
                  %v1261 = vld [vmem:[%s1231 + $0x70] sm:$0xff]
                  %1262 = vst [vmem:[%s1232 + $0x70] sm:$0xff] %v1261
                  %v1263 = vld [vmem:[%s1231 + $0x78] sm:$0xff]
                  %1264 = vst [vmem:[%s1232 + $0x78] sm:$0xff] %v1263
                  %v1265 = vld [vmem:[%s1231 + $0x80] sm:$0xff]
                  %1266 = vst [vmem:[%s1232 + $0x80] sm:$0xff] %v1265
                  %v1267 = vld [vmem:[%s1231 + $0x88] sm:$0xff]
                  %1268 = vst [vmem:[%s1232 + $0x88] sm:$0xff] %v1267
                  %v1269 = vld [vmem:[%s1231 + $0x90] sm:$0xff]
                  %1270 = vst [vmem:[%s1232 + $0x90] sm:$0xff] %v1269
                  %v1271 = vld [vmem:[%s1231 + $0x98] sm:$0xff]
                  %1272 = vst [vmem:[%s1232 + $0x98] sm:$0xff] %v1271
                  %v1273 = vld [vmem:[%s1231 + $0xa0] sm:$0xff]
                  %1274 = vst [vmem:[%s1232 + $0xa0] sm:$0xff] %v1273
                  %v1275 = vld [vmem:[%s1231 + $0xa8] sm:$0xff]
                  %1276 = vst [vmem:[%s1232 + $0xa8] sm:$0xff] %v1275
                  %v1277 = vld [vmem:[%s1231 + $0xb0] sm:$0xff]
                  %1278 = vst [vmem:[%s1232 + $0xb0] sm:$0xff] %v1277
                  %v1279 = vld [vmem:[%s1231 + $0xb8] sm:$0xff]
                  %1280 = vst [vmem:[%s1232 + $0xb8] sm:$0xff] %v1279
                  %v1281 = vld [vmem:[%s1231 + $0xc0] sm:$0xff]
                  %1282 = vst [vmem:[%s1232 + $0xc0] sm:$0xff] %v1281
                  %v1283 = vld [vmem:[%s1231 + $0xc8] sm:$0xff]
                  %1284 = vst [vmem:[%s1232 + $0xc8] sm:$0xff] %v1283
                  %v1285 = vld [vmem:[%s1231 + $0xd0] sm:$0xff]
                  %1286 = vst [vmem:[%s1232 + $0xd0] sm:$0xff] %v1285
                  %v1287 = vld [vmem:[%s1231 + $0xd8] sm:$0xff]
                  %1288 = vst [vmem:[%s1232 + $0xd8] sm:$0xff] %v1287
                  %v1289 = vld [vmem:[%s1231 + $0xe0] sm:$0xff]
                  %1290 = vst [vmem:[%s1232 + $0xe0] sm:$0xff] %v1289
                  %v1291 = vld [vmem:[%s1231 + $0xe8] sm:$0xff]
                  %1292 = vst [vmem:[%s1232 + $0xe8] sm:$0xff] %v1291
                  %v1293 = vld [vmem:[%s1231 + $0xf0] sm:$0xff]
                  %1294 = vst [vmem:[%s1232 + $0xf0] sm:$0xff] %v1293
                  %v1295 = vld [vmem:[%s1231 + $0xf8] sm:$0xff]
                  %1296 = vst [vmem:[%s1232 + $0xf8] sm:$0xff] %v1295
                  %s1297 = sadd.s32 1, %s1230
                  %p1298 = scmp.ge.s32.totalorder %s1297, %s1223
                  %s1299 = scalar_select %p1298, 0, %s1297
                  %s1300 = smul.u32 %s1299, 256
                  %s1301 = smul.u32 %s1299, 256
                  %s1302 = scalar_lea.vmem %s1089, %s1300 [#allocation3]
                  %s1303 = scalar_lea.vmem %s1105, %s1301
                $region121: #{net_forward.4} parent=115 // loop_footer
                  %s1227 = sadd.s32 %s1225, 1
                $region122: #{net_forward.4} parent=115 // loop_footer_branch
                  %1224 = sbr.rel target = $region118
                $region123: #{net_forward.4} parent=115 // loop_exit
                  _
                %s1304 = sshrl.u32 %s1101, 5
                %s1305 = sand.u32 %s1101, 31
                %s1306 = smul.u32 %s1304, 32
                %s1307 = smul.u32 8, %s1306
                %s1308 = scalar_lea.vmem %s1089, %s1307 [#allocation3]
                %s1309 = smul.u32 8, %s1306
                %s1310 = scalar_lea.vmem %s1105, %s1309
                // While loop
                $region124: #{net_forward.4} parent=115 // loop_pre_header
                  _
                $region125: #{net_forward.4} parent=115 // loop_header
                  %s1312 = sphi 0, %s1314
                  %p1313 = scmp.ge.s32.totalorder %s1312, %s1305
                  %s1317 = sphi 0, %s1324
                  %s1318 = sphi %s1308, %s1327
                  %s1319 = sphi %s1310, %s1328
                $region126: #{net_forward.4} parent=115 // loop_header_branch
                  %1316 = sbr.rel (%p1313) target = $region130
                $region127: #{net_forward.4} parent=115 // loop_body
                  %v1320 = vld [vmem:[%s1318] sm:$0xff]
                  %1321 = vst [vmem:[%s1319] sm:$0xff] %v1320
                  %s1322 = sadd.s32 1, %s1317
                  %p1323 = scmp.ge.s32.totalorder %s1322, %s1305
                  %s1324 = scalar_select %p1323, 0, %s1322
                  %s1325 = smul.u32 %s1324, 8
                  %s1326 = smul.u32 %s1324, 8
                  %s1327 = scalar_lea.vmem %s1308, %s1325 [#allocation3]
                  %s1328 = scalar_lea.vmem %s1310, %s1326
                $region128: #{net_forward.4} parent=115 // loop_footer
                  %s1314 = sadd.s32 %s1312, 1
                $region129: #{net_forward.4} parent=115 // loop_footer_branch
                  %1311 = sbr.rel target = $region125
                $region130: #{net_forward.4} parent=115 // loop_exit
                  _
              $region116: #{net_forward.4} parent=93 // pred_fallthru
                _
              // Predicated region
              $region131: #{net_forward.4} parent=93 // pred_check
                _
              $region132: #{net_forward.4} parent=93 // pred_check_branch
                %1330 = sbr.rel target = $region134
              $region133: #{net_forward.4} parent=93 // pred_region
                _
              $region134: #{net_forward.4} parent=93 // pred_fallthru
                _
            $region94: #{net_forward.4} parent=89 // pred_fallthru
              _
            // Predicated region
            $region95: #{net_forward.4} parent=89 // pred_check
              _
            $region96: #{net_forward.4} parent=89 // pred_check_branch
              %1112 = sbr.rel target = $region98
            $region97: #{net_forward.4} parent=89 // pred_region
              %s1114 = ssub.s32 256, 1
              %s1115 = sshrl.u32 %s1101, 5
              // While loop
              $region99: #{net_forward.4} parent=97 // loop_pre_header
                _
              $region100: #{net_forward.4} parent=97 // loop_header
                %s1117 = sphi 0, %s1119
                %p1118 = scmp.ge.s32.totalorder %s1117, %s1115
                %s1122 = sphi 0, %s1191
                %s1123 = sphi %s1089, %s1194
                %s1124 = sphi %s1105, %s1195
              $region101: #{net_forward.4} parent=97 // loop_header_branch
                %1121 = sbr.rel (%p1118) target = $region105
              $region102: #{net_forward.4} parent=97 // loop_body
                %v1125 = vld [vmem:[%s1123] sm:%s1114]
                %1126 = vst [vmem:[%s1124] sm:%s1114] %v1125
                %v1127 = vld [vmem:[%s1123 + $0x8] sm:%s1114]
                %1128 = vst [vmem:[%s1124 + $0x8] sm:%s1114] %v1127
                %v1129 = vld [vmem:[%s1123 + $0x10] sm:%s1114]
                %1130 = vst [vmem:[%s1124 + $0x10] sm:%s1114] %v1129
                %v1131 = vld [vmem:[%s1123 + $0x18] sm:%s1114]
                %1132 = vst [vmem:[%s1124 + $0x18] sm:%s1114] %v1131
                %v1133 = vld [vmem:[%s1123 + $0x20] sm:%s1114]
                %1134 = vst [vmem:[%s1124 + $0x20] sm:%s1114] %v1133
                %v1135 = vld [vmem:[%s1123 + $0x28] sm:%s1114]
                %1136 = vst [vmem:[%s1124 + $0x28] sm:%s1114] %v1135
                %v1137 = vld [vmem:[%s1123 + $0x30] sm:%s1114]
                %1138 = vst [vmem:[%s1124 + $0x30] sm:%s1114] %v1137
                %v1139 = vld [vmem:[%s1123 + $0x38] sm:%s1114]
                %1140 = vst [vmem:[%s1124 + $0x38] sm:%s1114] %v1139
                %v1141 = vld [vmem:[%s1123 + $0x40] sm:%s1114]
                %1142 = vst [vmem:[%s1124 + $0x40] sm:%s1114] %v1141
                %v1143 = vld [vmem:[%s1123 + $0x48] sm:%s1114]
                %1144 = vst [vmem:[%s1124 + $0x48] sm:%s1114] %v1143
                %v1145 = vld [vmem:[%s1123 + $0x50] sm:%s1114]
                %1146 = vst [vmem:[%s1124 + $0x50] sm:%s1114] %v1145
                %v1147 = vld [vmem:[%s1123 + $0x58] sm:%s1114]
                %1148 = vst [vmem:[%s1124 + $0x58] sm:%s1114] %v1147
                %v1149 = vld [vmem:[%s1123 + $0x60] sm:%s1114]
                %1150 = vst [vmem:[%s1124 + $0x60] sm:%s1114] %v1149
                %v1151 = vld [vmem:[%s1123 + $0x68] sm:%s1114]
                %1152 = vst [vmem:[%s1124 + $0x68] sm:%s1114] %v1151
                %v1153 = vld [vmem:[%s1123 + $0x70] sm:%s1114]
                %1154 = vst [vmem:[%s1124 + $0x70] sm:%s1114] %v1153
                %v1155 = vld [vmem:[%s1123 + $0x78] sm:%s1114]
                %1156 = vst [vmem:[%s1124 + $0x78] sm:%s1114] %v1155
                %v1157 = vld [vmem:[%s1123 + $0x80] sm:%s1114]
                %1158 = vst [vmem:[%s1124 + $0x80] sm:%s1114] %v1157
                %v1159 = vld [vmem:[%s1123 + $0x88] sm:%s1114]
                %1160 = vst [vmem:[%s1124 + $0x88] sm:%s1114] %v1159
                %v1161 = vld [vmem:[%s1123 + $0x90] sm:%s1114]
                %1162 = vst [vmem:[%s1124 + $0x90] sm:%s1114] %v1161
                %v1163 = vld [vmem:[%s1123 + $0x98] sm:%s1114]
                %1164 = vst [vmem:[%s1124 + $0x98] sm:%s1114] %v1163
                %v1165 = vld [vmem:[%s1123 + $0xa0] sm:%s1114]
                %1166 = vst [vmem:[%s1124 + $0xa0] sm:%s1114] %v1165
                %v1167 = vld [vmem:[%s1123 + $0xa8] sm:%s1114]
                %1168 = vst [vmem:[%s1124 + $0xa8] sm:%s1114] %v1167
                %v1169 = vld [vmem:[%s1123 + $0xb0] sm:%s1114]
                %1170 = vst [vmem:[%s1124 + $0xb0] sm:%s1114] %v1169
                %v1171 = vld [vmem:[%s1123 + $0xb8] sm:%s1114]
                %1172 = vst [vmem:[%s1124 + $0xb8] sm:%s1114] %v1171
                %v1173 = vld [vmem:[%s1123 + $0xc0] sm:%s1114]
                %1174 = vst [vmem:[%s1124 + $0xc0] sm:%s1114] %v1173
                %v1175 = vld [vmem:[%s1123 + $0xc8] sm:%s1114]
                %1176 = vst [vmem:[%s1124 + $0xc8] sm:%s1114] %v1175
                %v1177 = vld [vmem:[%s1123 + $0xd0] sm:%s1114]
                %1178 = vst [vmem:[%s1124 + $0xd0] sm:%s1114] %v1177
                %v1179 = vld [vmem:[%s1123 + $0xd8] sm:%s1114]
                %1180 = vst [vmem:[%s1124 + $0xd8] sm:%s1114] %v1179
                %v1181 = vld [vmem:[%s1123 + $0xe0] sm:%s1114]
                %1182 = vst [vmem:[%s1124 + $0xe0] sm:%s1114] %v1181
                %v1183 = vld [vmem:[%s1123 + $0xe8] sm:%s1114]
                %1184 = vst [vmem:[%s1124 + $0xe8] sm:%s1114] %v1183
                %v1185 = vld [vmem:[%s1123 + $0xf0] sm:%s1114]
                %1186 = vst [vmem:[%s1124 + $0xf0] sm:%s1114] %v1185
                %v1187 = vld [vmem:[%s1123 + $0xf8] sm:%s1114]
                %1188 = vst [vmem:[%s1124 + $0xf8] sm:%s1114] %v1187
                %s1189 = sadd.s32 1, %s1122
                %p1190 = scmp.ge.s32.totalorder %s1189, %s1115
                %s1191 = scalar_select %p1190, 0, %s1189
                %s1192 = smul.u32 %s1191, 256
                %s1193 = smul.u32 %s1191, 256
                %s1194 = scalar_lea.vmem %s1089, %s1192 [#allocation3]
                %s1195 = scalar_lea.vmem %s1105, %s1193
              $region103: #{net_forward.4} parent=97 // loop_footer
                %s1119 = sadd.s32 %s1117, 1
              $region104: #{net_forward.4} parent=97 // loop_footer_branch
                %1116 = sbr.rel target = $region100
              $region105: #{net_forward.4} parent=97 // loop_exit
                _
              %s1196 = sshrl.u32 %s1101, 5
              %s1197 = sand.u32 %s1101, 31
              %s1198 = smul.u32 %s1196, 32
              %s1199 = smul.u32 8, %s1198
              %s1200 = scalar_lea.vmem %s1089, %s1199 [#allocation3]
              %s1201 = smul.u32 8, %s1198
              %s1202 = scalar_lea.vmem %s1105, %s1201
              // While loop
              $region106: #{net_forward.4} parent=97 // loop_pre_header
                _
              $region107: #{net_forward.4} parent=97 // loop_header
                %s1204 = sphi 0, %s1206
                %p1205 = scmp.ge.s32.totalorder %s1204, %s1197
                %s1209 = sphi 0, %s1216
                %s1210 = sphi %s1200, %s1219
                %s1211 = sphi %s1202, %s1220
              $region108: #{net_forward.4} parent=97 // loop_header_branch
                %1208 = sbr.rel (%p1205) target = $region112
              $region109: #{net_forward.4} parent=97 // loop_body
                %v1212 = vld [vmem:[%s1210] sm:%s1114]
                %1213 = vst [vmem:[%s1211] sm:%s1114] %v1212
                %s1214 = sadd.s32 1, %s1209
                %p1215 = scmp.ge.s32.totalorder %s1214, %s1197
                %s1216 = scalar_select %p1215, 0, %s1214
                %s1217 = smul.u32 %s1216, 8
                %s1218 = smul.u32 %s1216, 8
                %s1219 = scalar_lea.vmem %s1200, %s1217 [#allocation3]
                %s1220 = scalar_lea.vmem %s1202, %s1218
              $region110: #{net_forward.4} parent=97 // loop_footer
                %s1206 = sadd.s32 %s1204, 1
              $region111: #{net_forward.4} parent=97 // loop_footer_branch
                %1203 = sbr.rel target = $region107
              $region112: #{net_forward.4} parent=97 // loop_exit
                _
            $region98: #{net_forward.4} parent=89 // pred_fallthru
              _
          $region90: #{net_forward.4} parent=85 // pred_fallthru
            _
          %1331 = vnop
        $region86: #{net_forward.4} parent=73 // pred_fallthru
          _
        // Predicated region
        $region135: #{net_forward.4} parent=73 // pred_check
          %p1332 = pneg %p192
        $region136: #{net_forward.4} parent=73 // pred_check_branch
          %1334 = sbr.rel (%p1332) target = $region138
        $region137: #{net_forward.4} parent=73 // pred_region
          _
        $region138: #{net_forward.4} parent=73 // pred_fallthru
          _
      $region74: #{net_forward.4} parent=5 // pred_fallthru
        _
      %p1335 = scmp.le.s32.totalorder 2, %s13
      // Predicated region
      $region139: #{net_forward.4} parent=5 // pred_check
        %p1336 = pneg %p1335
      $region140: #{net_forward.4} parent=5 // pred_check_branch
        %1338 = sbr.rel (%p1336) target = $region142
      $region141: #{net_forward.4} parent=5 // pred_region
        %s1339 = ssub.s32 %s13, 2
        // Predicated region
        $region143: #{net_forward.4} parent=141 // pred_check
          %p1340 = pneg %p172
        $region144: #{net_forward.4} parent=141 // pred_check_branch
          %1342 = sbr.rel (%p1340) target = $region146
        $region145: #{net_forward.4} parent=141 // pred_region
          %s1343 = sand.u32 %s157, 1
          %s1344 = sand.u32 %s157, 1
          %s1345 = smul.addr %s1344, 256
          %s1346 = scalar_lea.vmem [#allocation3], %s1345
        $region146: #{net_forward.4} parent=141 // pred_fallthru
          _
        // Predicated region
        $region147: #{net_forward.4} parent=141 // pred_check
          %p1347 = pneg %p198
        $region148: #{net_forward.4} parent=141 // pred_check_branch
          %1349 = sbr.rel (%p1347) target = $region150
        $region149: #{net_forward.4} parent=141 // pred_region
          %p1350 = scmp.lt.s32.totalorder %s24, 1
          %s1351 = scalar_select %p1350, %s24, 1
          %s1352 = scalar_lea.vmem %s6, %s1351
        $region150: #{net_forward.4} parent=141 // pred_fallthru
          _
      $region142: #{net_forward.4} parent=5 // pred_fallthru
        _
    $region6: #{net_forward.4} parent=1 // loop_footer
      %s17 = sadd.s32 1, %s13
    $region7: #{net_forward.4} parent=1 // loop_footer_branch
      %12 = sbr.rel target = $region3
    $region8: #{net_forward.4} parent=1 // loop_exit
      _

</llo_original>
